<compile_context>
chip_gen: v6e
topology: v6e:2x2x1
jax: 0.10.0
libtpu: 0.0.40
codegen_flags: <defaults>
</compile_context>

<pallas_src>
import functools

import jax
import jax.numpy as jnp
from jax.experimental import pallas as pl
from jax.experimental.pallas import tpu as pltpu


def _maxout_disc_kernel(x_ref, w1_ref, b1_ref, w2_ref, b2_ref, wf_ref, bf_ref,
                        o_ref, *, k, hp, sigmoid):
    """One batch tile of the maxout-discriminator forward.

    Weights are pre-folded: each maxout layer's k branches are stored as a
    single (in, k*hp) matrix, so the layer is one wide MXU matmul followed by a
    max over k lane-contiguous hp-wide slices.
    """
    x = x_ref[...]                                                  # (TB, D) bf16

    # ---- Maxout 1: single (TB, D) x (D, k*hp) matmul, bias added once ----
    z1 = jnp.dot(x, w1_ref[...], preferred_element_type=jnp.float32) + b1_ref[...]
    h1 = z1[:, :hp]
    for i in range(1, k):
        h1 = jnp.maximum(h1, z1[:, i * hp:(i + 1) * hp])

    # dropout (training=False) -> identity

    # ---- Maxout 2: single (TB, hp) x (hp, k*hp) matmul ----
    z2 = jnp.dot(h1.astype(w2_ref.dtype), w2_ref[...],
                 preferred_element_type=jnp.float32) + b2_ref[...]
    h2 = z2[:, :hp]
    for i in range(1, k):
        h2 = jnp.maximum(h2, z2[:, i * hp:(i + 1) * hp])

    # dropout (training=False) -> identity

    # ---- Final linear (hp -> 1) as VPU multiply + lane reduction ----
    y = jnp.sum(h2 * wf_ref[...], axis=-1, keepdims=True) + bf_ref[...]
    if sigmoid:
        y = jax.nn.sigmoid(y)
    o_ref[...] = y.astype(o_ref.dtype)


def discriminator_forward(x_nchw, packed_params, *, k, hp,
                          last_layer_sigmoid=True, tb=128):
    """x_nchw: (B, C, H, W) float32. Returns (B, 1) float32."""
    w1, b1, w2, b2, wf, bf = packed_params
    B = x_nchw.shape[0]
    x = x_nchw.reshape(B, -1)                                       # matches x.view(B, -1)
    D = x.shape[1]

    # Pad batch to a multiple of the batch tile so the MXU sees full-height tiles.
    n_tiles = pl.cdiv(B, tb)
    Bp = n_tiles * tb
    if Bp != B:
        x = jnp.pad(x, ((0, Bp - B), (0, 0)))
    x = x.astype(w1.dtype)                                          # bf16 feed to MXU

    kernel = functools.partial(_maxout_disc_kernel, k=k, hp=hp,
                               sigmoid=last_layer_sigmoid)
    const2d = lambda i: (0, 0)                                      # weights: resident, DMA'd once
    out = pl.pallas_call(
        kernel,
        out_shape=jax.ShapeDtypeStruct((Bp, 1), jnp.float32),
        grid=(n_tiles,),
        in_specs=[
            pl.BlockSpec((tb, D), lambda i: (i, 0)),                # x streams / double-buffers
            pl.BlockSpec(w1.shape, const2d),
            pl.BlockSpec(b1.shape, const2d),
            pl.BlockSpec(w2.shape, const2d),
            pl.BlockSpec(b2.shape, const2d),
            pl.BlockSpec(wf.shape, const2d),
            pl.BlockSpec(bf.shape, const2d),
        ],
        out_specs=pl.BlockSpec((tb, 1), lambda i: (i, 0)),
        compiler_params=pltpu.CompilerParams(
            dimension_semantics=("parallel",)),                     # megacore on v7x
    )(x, w1, b1, w2, b2, wf, bf)
    return out[:B]


def init_params(key, img_size, hidden=240, k=5):
    """Deterministic init mimicking nn.Linear's U(-1/sqrt(in), 1/sqrt(in))."""
    d_in = 1
    for s in img_size:
        d_in *= s

    def linear(key, fan_in, fan_out):
        kw, kb = jax.random.split(key)
        bound = 1.0 / jnp.sqrt(jnp.float32(fan_in))
        w = jax.random.uniform(kw, (fan_in, fan_out), jnp.float32, -bound, bound)
        b = jax.random.uniform(kb, (fan_out,), jnp.float32, -bound, bound)
        return w, b

    keys = jax.random.split(key, 2 * k + 1)
    l1 = [linear(keys[i], d_in, hidden) for i in range(k)]
    l2 = [linear(keys[k + i], hidden, hidden) for i in range(k)]
    w1 = jnp.stack([w for w, _ in l1])          # (k, D, H)
    b1 = jnp.stack([b for _, b in l1])          # (k, H)
    w2 = jnp.stack([w for w, _ in l2])          # (k, H, H)
    b2 = jnp.stack([b for _, b in l2])          # (k, H)
    wf, bf = linear(keys[2 * k], hidden, 1)     # (H, 1), (1,)
    return (w1, b1, w2, b2, wf, bf)


def pack_params(params, *, hp=256, weight_dtype=jnp.bfloat16):
    """Fold the k maxout branches into one wide matrix per layer, pad the hidden
    dim to `hp` (multiple of 128 lanes), and cast weights to bf16."""
    w1, b1, w2, b2, wf, bf = params
    k, D, H = w1.shape
    ph = hp - H

    w1f = jnp.transpose(jnp.pad(w1, ((0, 0), (0, 0), (0, ph))),
                        (1, 0, 2)).reshape(D, k * hp).astype(weight_dtype)
    b1f = jnp.pad(b1, ((0, 0), (0, ph))).reshape(1, k * hp).astype(jnp.float32)

    w2f = jnp.transpose(jnp.pad(w2, ((0, 0), (0, ph), (0, ph))),
                        (1, 0, 2)).reshape(hp, k * hp).astype(weight_dtype)
    b2f = jnp.pad(b2, ((0, 0), (0, ph))).reshape(1, k * hp).astype(jnp.float32)

    wff = jnp.pad(wf[:, 0], ((0, ph),)).reshape(1, hp).astype(jnp.float32)
    bff = bf.reshape(1, 1).astype(jnp.float32)
    return (w1f, b1f, w2f, b2f, wff, bff)


def _reference_forward_f32(x_nchw, params, last_layer_sigmoid=True):
    """Pure-JAX f32 reference with the original (unfolded) layout."""
    w1, b1, w2, b2, wf, bf = params
    x = x_nchw.reshape(x_nchw.shape[0], -1).astype(jnp.float32)
    h1 = jnp.max(jnp.einsum('bd,kdh->kbh', x, w1) + b1[:, None, :], axis=0)
    h2 = jnp.max(jnp.einsum('bh,khg->kbg', h1, w2) + b2[:, None, :], axis=0)
    y = h2 @ wf + bf
    return jax.nn.sigmoid(y) if last_layer_sigmoid else y


def _reference_forward_packed(x_nchw, packed, *, k, hp, last_layer_sigmoid=True):
    """Pure-JAX reference using the packed/bf16 layout (kernel-matching numerics)."""
    w1f, b1f, w2f, b2f, wff, bff = packed
    B = x_nchw.shape[0]
    x = x_nchw.reshape(B, -1).astype(w1f.dtype)
    z1 = jnp.dot(x, w1f, preferred_element_type=jnp.float32) + b1f
    h1 = jnp.max(z1.reshape(B, k, hp), axis=1)
    z2 = jnp.dot(h1.astype(w2f.dtype), w2f, preferred_element_type=jnp.float32) + b2f
    h2 = jnp.max(z2.reshape(B, k, hp), axis=1)
    y = jnp.sum(h2 * wff, axis=-1, keepdims=True) + bff
    return jax.nn.sigmoid(y) if last_layer_sigmoid else y


if __name__ == "__main__":
    img_size = (1, 16, 16)            # model_config['img_size'] -> D = 256
    hidden = 240
    k = 5
    hp = 256                          # hidden padded to a multiple of 128 lanes
    last_layer_sigmoid = True         # model_config['D_last_layer_sigmoid']
    B = 2

    key = jax.random.PRNGKey(0)
    k_params, k_x = jax.random.split(key)
    params = init_params(k_params, img_size, hidden=hidden, k=k)
    packed = pack_params(params, hp=hp)
    x = jax.random.normal(k_x, (B,) + img_size, dtype=jnp.float32)

    out = discriminator_forward(x, packed, k=k, hp=hp,
                                last_layer_sigmoid=last_layer_sigmoid)
    out = jax.block_until_ready(out)
    assert out.shape == (B, 1)

    # Tight check vs. a reference using identical (bf16) numerics.
    ref_packed = _reference_forward_packed(x, packed, k=k, hp=hp,
                                           last_layer_sigmoid=last_layer_sigmoid)
    assert jnp.allclose(out, ref_packed, atol=1e-4, rtol=1e-4), \
        float(jnp.max(jnp.abs(out - ref_packed)))

    # Looser semantic check vs. the f32, unfolded original layout.
    ref_f32 = _reference_forward_f32(x, params, last_layer_sigmoid=last_layer_sigmoid)
    assert jnp.allclose(out, ref_f32, atol=3e-2, rtol=3e-2), \
        float(jnp.max(jnp.abs(out - ref_f32)))

    print("KERNEL_OK")
</pallas_src>

<mosaic_0001>
module attributes {stable_mosaic.version = 11 : i64} {
  func.func @_maxout_disc_kernel(%arg0: i32, %arg1: memref<128x256xbf16, #tpu.memory_space<vmem>>, %arg2: memref<256x1280xbf16, #tpu.memory_space<vmem>>, %arg3: memref<1x1280xf32, #tpu.memory_space<vmem>>, %arg4: memref<256x1280xbf16, #tpu.memory_space<vmem>>, %arg5: memref<1x1280xf32, #tpu.memory_space<vmem>>, %arg6: memref<1x256xf32, #tpu.memory_space<vmem>>, %arg7: memref<1x1xf32, #tpu.memory_space<vmem>>, %arg8: memref<128x1xf32, #tpu.memory_space<vmem>>) attributes {dimension_semantics = [#tpu.dimension_semantics<parallel>], iteration_bounds = array<i64: 1>, scalar_prefetch = 0 : i64, scratch_operands = 0 : i64, tpu.core_type = #tpu.core_type<tc>, window_params = [{transform_indices = @transform_0, window_bounds = array<i64: 128, 256>}, {pipeline_mode = #tpu.pipeline_mode<synchronous>, transform_indices = @transform_1, window_bounds = array<i64: 256, 1280>}, {pipeline_mode = #tpu.pipeline_mode<synchronous>, transform_indices = @transform_2, window_bounds = array<i64: 1, 1280>}, {pipeline_mode = #tpu.pipeline_mode<synchronous>, transform_indices = @transform_3, window_bounds = array<i64: 256, 1280>}, {pipeline_mode = #tpu.pipeline_mode<synchronous>, transform_indices = @transform_4, window_bounds = array<i64: 1, 1280>}, {pipeline_mode = #tpu.pipeline_mode<synchronous>, transform_indices = @transform_5, window_bounds = array<i64: 1, 256>}, {pipeline_mode = #tpu.pipeline_mode<synchronous>, transform_indices = @transform_6, window_bounds = array<i64: 1, 1>}, {transform_indices = @transform_7, window_bounds = array<i64: 128, 1>}]} {
    %c0 = arith.constant 0 : index
    %c0_0 = arith.constant 0 : index
    %0 = vector.load %arg1[%c0, %c0_0] : memref<128x256xbf16, #tpu.memory_space<vmem>>, vector<128x256xbf16>
    %c0_1 = arith.constant 0 : index
    %c0_2 = arith.constant 0 : index
    %1 = vector.load %arg2[%c0_1, %c0_2] : memref<256x1280xbf16, #tpu.memory_space<vmem>>, vector<256x1280xbf16>
    %cst = arith.constant dense<0.000000e+00> : vector<128x1280xf32>
    %2 = tpu.matmul %0, %1, %cst {dimension_numbers = #tpu.dot_dimension_numbers<[1], [0], [0], [1], [0, 0, 1, 1], [], []>} : vector<128x256xbf16>, vector<256x1280xbf16>, vector<128x1280xf32> -> vector<128x1280xf32>
    %c0_3 = arith.constant 0 : index
    %c0_4 = arith.constant 0 : index
    %3 = vector.load %arg3[%c0_3, %c0_4] : memref<1x1280xf32, #tpu.memory_space<vmem>>, vector<1x1280xf32>
    %4 = vector.broadcast %3 : vector<1x1280xf32> to vector<128x1280xf32>
    %5 = arith.addf %2, %4 : vector<128x1280xf32>
    %6 = vector.extract_strided_slice %5 {offsets = [0, 0], sizes = [128, 256], strides = [1, 1]} : vector<128x1280xf32> to vector<128x256xf32>
    %7 = vector.extract_strided_slice %5 {offsets = [0, 256], sizes = [128, 256], strides = [1, 1]} : vector<128x1280xf32> to vector<128x256xf32>
    %8 = arith.maximumf %6, %7 : vector<128x256xf32>
    %9 = vector.extract_strided_slice %5 {offsets = [0, 512], sizes = [128, 256], strides = [1, 1]} : vector<128x1280xf32> to vector<128x256xf32>
    %10 = arith.maximumf %8, %9 : vector<128x256xf32>
    %11 = vector.extract_strided_slice %5 {offsets = [0, 768], sizes = [128, 256], strides = [1, 1]} : vector<128x1280xf32> to vector<128x256xf32>
    %12 = arith.maximumf %10, %11 : vector<128x256xf32>
    %13 = vector.extract_strided_slice %5 {offsets = [0, 1024], sizes = [128, 256], strides = [1, 1]} : vector<128x1280xf32> to vector<128x256xf32>
    %14 = arith.maximumf %12, %13 : vector<128x256xf32>
    %15 = arith.truncf %14 : vector<128x256xf32> to vector<128x256xbf16>
    %c0_5 = arith.constant 0 : index
    %c0_6 = arith.constant 0 : index
    %16 = vector.load %arg4[%c0_5, %c0_6] : memref<256x1280xbf16, #tpu.memory_space<vmem>>, vector<256x1280xbf16>
    %cst_7 = arith.constant dense<0.000000e+00> : vector<128x1280xf32>
    %17 = tpu.matmul %15, %16, %cst_7 {dimension_numbers = #tpu.dot_dimension_numbers<[1], [0], [0], [1], [0, 0, 1, 1], [], []>} : vector<128x256xbf16>, vector<256x1280xbf16>, vector<128x1280xf32> -> vector<128x1280xf32>
    %c0_8 = arith.constant 0 : index
    %c0_9 = arith.constant 0 : index
    %18 = vector.load %arg5[%c0_8, %c0_9] : memref<1x1280xf32, #tpu.memory_space<vmem>>, vector<1x1280xf32>
    %19 = vector.broadcast %18 : vector<1x1280xf32> to vector<128x1280xf32>
    %20 = arith.addf %17, %19 : vector<128x1280xf32>
    %21 = vector.extract_strided_slice %20 {offsets = [0, 0], sizes = [128, 256], strides = [1, 1]} : vector<128x1280xf32> to vector<128x256xf32>
    %22 = vector.extract_strided_slice %20 {offsets = [0, 256], sizes = [128, 256], strides = [1, 1]} : vector<128x1280xf32> to vector<128x256xf32>
    %23 = arith.maximumf %21, %22 : vector<128x256xf32>
    %24 = vector.extract_strided_slice %20 {offsets = [0, 512], sizes = [128, 256], strides = [1, 1]} : vector<128x1280xf32> to vector<128x256xf32>
    %25 = arith.maximumf %23, %24 : vector<128x256xf32>
    %26 = vector.extract_strided_slice %20 {offsets = [0, 768], sizes = [128, 256], strides = [1, 1]} : vector<128x1280xf32> to vector<128x256xf32>
    %27 = arith.maximumf %25, %26 : vector<128x256xf32>
    %28 = vector.extract_strided_slice %20 {offsets = [0, 1024], sizes = [128, 256], strides = [1, 1]} : vector<128x1280xf32> to vector<128x256xf32>
    %29 = arith.maximumf %27, %28 : vector<128x256xf32>
    %c0_10 = arith.constant 0 : index
    %c0_11 = arith.constant 0 : index
    %30 = vector.load %arg6[%c0_10, %c0_11] : memref<1x256xf32, #tpu.memory_space<vmem>>, vector<1x256xf32>
    %31 = vector.broadcast %30 : vector<1x256xf32> to vector<128x256xf32>
    %32 = arith.mulf %29, %31 : vector<128x256xf32>
    %cst_12 = arith.constant dense<0.000000e+00> : vector<128xf32>
    %33 = vector.multi_reduction <add>, %32, %cst_12 [1] : vector<128x256xf32> to vector<128xf32>
    %34 = vector.shape_cast %33 : vector<128xf32> to vector<128x1xf32>
    %c0_13 = arith.constant 0 : index
    %c0_14 = arith.constant 0 : index
    %35 = vector.load %arg7[%c0_13, %c0_14] : memref<1x1xf32, #tpu.memory_space<vmem>>, vector<1x1xf32>
    %36 = vector.broadcast %35 : vector<1x1xf32> to vector<128x1xf32>
    %37 = arith.addf %34, %36 : vector<128x1xf32>
    %38 = arith.negf %37 : vector<128x1xf32>
    %39 = math.exp %38 : vector<128x1xf32>
    %cst_15 = arith.constant 1.000000e+00 : f32
    %40 = vector.broadcast %cst_15 : f32 to vector<128x1xf32>
    %41 = arith.addf %40, %39 : vector<128x1xf32>
    %42 = arith.divf %40, %41 : vector<128x1xf32>
    %c0_16 = arith.constant 0 : index
    %c0_17 = arith.constant 0 : index
    %43 = vector.load %arg8[%c0_16, %c0_17] : memref<128x1xf32, #tpu.memory_space<vmem>>, vector<128x1xf32>
    tpu.vector_store %arg8[%c0_16, %c0_17], %42 {strides = array<i32>} : memref<128x1xf32, #tpu.memory_space<vmem>>, vector<128x1xf32>,
    return
  }
  func.func @transform_0(%arg0: i32) -> (i32, i32) {
    %c0_i32 = arith.constant 0 : i32
    %c0_i32_0 = arith.constant 0 : i32
    return %arg0, %c0_i32 : i32, i32
  }
  func.func @transform_1(%arg0: i32) -> (i32, i32) {
    %c0_i32 = arith.constant 0 : i32
    %c0_i32_0 = arith.constant 0 : i32
    %c0_i32_1 = arith.constant 0 : i32
    return %c0_i32, %c0_i32_0 : i32, i32
  }
  func.func @transform_2(%arg0: i32) -> (i32, i32) {
    %c0_i32 = arith.constant 0 : i32
    %c0_i32_0 = arith.constant 0 : i32
    %c0_i32_1 = arith.constant 0 : i32
    return %c0_i32, %c0_i32_0 : i32, i32
  }
  func.func @transform_3(%arg0: i32) -> (i32, i32) {
    %c0_i32 = arith.constant 0 : i32
    %c0_i32_0 = arith.constant 0 : i32
    %c0_i32_1 = arith.constant 0 : i32
    return %c0_i32, %c0_i32_0 : i32, i32
  }
  func.func @transform_4(%arg0: i32) -> (i32, i32) {
    %c0_i32 = arith.constant 0 : i32
    %c0_i32_0 = arith.constant 0 : i32
    %c0_i32_1 = arith.constant 0 : i32
    return %c0_i32, %c0_i32_0 : i32, i32
  }
  func.func @transform_5(%arg0: i32) -> (i32, i32) {
    %c0_i32 = arith.constant 0 : i32
    %c0_i32_0 = arith.constant 0 : i32
    %c0_i32_1 = arith.constant 0 : i32
    return %c0_i32, %c0_i32_0 : i32, i32
  }
  func.func @transform_6(%arg0: i32) -> (i32, i32) {
    %c0_i32 = arith.constant 0 : i32
    %c0_i32_0 = arith.constant 0 : i32
    %c0_i32_1 = arith.constant 0 : i32
    return %c0_i32, %c0_i32_0 : i32, i32
  }
  func.func @transform_7(%arg0: i32) -> (i32, i32) {
    %c0_i32 = arith.constant 0 : i32
    %c0_i32_0 = arith.constant 0 : i32
    return %arg0, %c0_i32 : i32, i32
  }
}

</mosaic_0001>

<llo_original>
// kernel: tpu_custom_call.1
$region0: #{tpu_custom_call.1}
  #allocation0 [shape = 'u32[]', space=smem, size = 0x4, offset = 0x4, fixed_abs, tag = 'smem constant byte address 0x4 - core index']
  #allocation1 [shape = 'u32[144,128]{1,0:T(1,128)}', space=vmem, size = 0x12000, scoped, tag = 'internal scratch']
  #allocation2 [shape = 'f32[1,1]{1,0:T(1,128)S(1)}', space=vmem, size = 0x200, scoped, tag = 'scoped memory for tpu_custom_call.1']
  %s0 = inlined_call_operand.hbm [shape: bf16[128,256], index: 0, kind: input, shape index: {}]
  %s1 = inlined_call_operand.hbm [shape: bf16[256,1280], index: 1, kind: input, shape index: {}]
  %s2 = inlined_call_operand.hbm [shape: f32[1,1280], index: 2, kind: input, shape index: {}]
  %s3 = inlined_call_operand.hbm [shape: bf16[256,1280], index: 3, kind: input, shape index: {}]
  %s4 = inlined_call_operand.hbm [shape: f32[1,1280], index: 4, kind: input, shape index: {}]
  %s5 = inlined_call_operand.vmem [shape: f32[1,256], index: 5, kind: input, shape index: {}]
  %s6 = inlined_call_operand.<no memory space> [shape: f32[1,1], index: 6, kind: input, shape index: {}]
  %s7 = inlined_call_operand.vmem [shape: f32[128,1], index: 7, kind: output, shape index: {}]
  %s8 = sld [smem:[#allocation0]]
  $region58: #{tpu_custom_call.1} parent=0
    _
  %s10 = ssub.s32 1, %s8
  %s11 = scalar_select 0, %s10, %s8
  %v12 = vstv %s6
  %13 = vst [vmem:[#allocation2] sm:$0x1] %v12
  $region1: #{tpu_custom_call.1} parent=0
    #allocation3 [shape = 'u8[65536]{0}', space=vmem, size = 0x10000, scoped, tag = 'input window, operand 0, single buffered']
    #allocation4 [shape = 's32[1]{0}', space=sflag, size = 0x4, scoped, tag = 'scoped memory for tpu_custom_call.1']
    #allocation5 [shape = 'u8[655360]{0}', space=vmem, size = 0xa0000, scoped, tag = 'input window, operand 1, single buffered']
    #allocation6 [shape = 's32[1]{0}', space=sflag, size = 0x4, scoped, tag = 'scoped memory for tpu_custom_call.1']
    #allocation7 [shape = 'u8[5120]{0}', space=vmem, size = 0x1400, scoped, tag = 'input window, operand 2, single buffered']
    #allocation8 [shape = 'u8[655360]{0}', space=vmem, size = 0xa0000, scoped, tag = 'input window, operand 3, single buffered']
    #allocation9 [shape = 's32[1]{0}', space=sflag, size = 0x4, scoped, tag = 'scoped memory for tpu_custom_call.1']
    #allocation10 [shape = 'u8[5120]{0}', space=vmem, size = 0x1400, scoped, tag = 'input window, operand 4, single buffered']
    %14 = vsyncpa [#allocation4], 0
    %15 = vsyncpa [#allocation6], 0
    %16 = vsyncpa [#allocation9], 0
    // Predicated region
    $region2: #{tpu_custom_call.1} parent=1 // pred_check
      _
    $region3: #{tpu_custom_call.1} parent=1 // pred_check_branch
      %18 = sbr.rel (0) target = $region5
    $region4: #{tpu_custom_call.1} parent=1 // pred_region
      %s20 = ssub.s32 2048, 2048
      %21 = vsyncadd [#allocation4], %s20
      %s22 = sshll.u32 [#allocation3], 4
      %s23 = int_to_ptr.vmem [resolvable:$true] %s22
      %28 = dma.hbm_to_vmem [thread:$0]  %s0, 2048, %s23, [#allocation4], 128, 128, 8
    $region5: #{tpu_custom_call.1} parent=1 // pred_fallthru
      _
    // Predicated region
    $region6: #{tpu_custom_call.1} parent=1 // pred_check
      _
    $region7: #{tpu_custom_call.1} parent=1 // pred_check_branch
      %30 = sbr.rel (0) target = $region9
    $region8: #{tpu_custom_call.1} parent=1 // pred_region
      %s32 = ssub.s32 20480, 20480
      %33 = vsyncadd [#allocation6], %s32
      %s34 = sshll.u32 [#allocation5], 4
      %s35 = int_to_ptr.vmem [resolvable:$true] %s34
      %40 = dma.hbm_to_vmem [thread:$0]  %s1, 20480, %s35, [#allocation6], 640, 640, 40
    $region9: #{tpu_custom_call.1} parent=1 // pred_fallthru
      _
    // Predicated region
    $region10: #{tpu_custom_call.1} parent=1 // pred_check
      _
    $region11: #{tpu_custom_call.1} parent=1 // pred_check_branch
      %42 = sbr.rel (0) target = $region13
    $region12: #{tpu_custom_call.1} parent=1 // pred_region
      %s44 = ssub.s32 160, 160
      %45 = vsyncadd [#allocation6], %s44
      %s47 = sshll.u32 [#allocation7], 4
      %s48 = int_to_ptr.vmem [resolvable:$true] %s47
      %50 = dma.hbm_to_vmem [thread:$0]  %s2, 160, %s48, [#allocation6]
    $region13: #{tpu_custom_call.1} parent=1 // pred_fallthru
      _
    // Predicated region
    $region14: #{tpu_custom_call.1} parent=1 // pred_check
      _
    $region15: #{tpu_custom_call.1} parent=1 // pred_check_branch
      %52 = sbr.rel (0) target = $region17
    $region16: #{tpu_custom_call.1} parent=1 // pred_region
      %s54 = ssub.s32 20480, 20480
      %55 = vsyncadd [#allocation9], %s54
      %s56 = sshll.u32 [#allocation8], 4
      %s57 = int_to_ptr.vmem [resolvable:$true] %s56
      %62 = dma.hbm_to_vmem [thread:$0]  %s3, 20480, %s57, [#allocation9], 640, 640, 40
    $region17: #{tpu_custom_call.1} parent=1 // pred_fallthru
      _
    // Predicated region
    $region18: #{tpu_custom_call.1} parent=1 // pred_check
      _
    $region19: #{tpu_custom_call.1} parent=1 // pred_check_branch
      %64 = sbr.rel (0) target = $region21
    $region20: #{tpu_custom_call.1} parent=1 // pred_region
      %s66 = ssub.s32 160, 160
      %67 = vsyncadd [#allocation9], %s66
      %s69 = sshll.u32 [#allocation10], 4
      %s70 = int_to_ptr.vmem [resolvable:$true] %s69
      %72 = dma.hbm_to_vmem [thread:$0]  %s4, 160, %s70, [#allocation9]
    $region21: #{tpu_custom_call.1} parent=1 // pred_fallthru
      _
    // Predicated region
    $region22: #{tpu_custom_call.1} parent=1 // pred_check
      _
    $region23: #{tpu_custom_call.1} parent=1 // pred_check_branch
      %74 = sbr.rel (0) target = $region25
    $region24: #{tpu_custom_call.1} parent=1 // pred_region
      _
    $region25: #{tpu_custom_call.1} parent=1 // pred_fallthru
      _
    // Predicated region
    $region26: #{tpu_custom_call.1} parent=1 // pred_check
      _
    $region27: #{tpu_custom_call.1} parent=1 // pred_check_branch
      %76 = sbr.rel (0) target = $region29
    $region28: #{tpu_custom_call.1} parent=1 // pred_region
      _
    $region29: #{tpu_custom_call.1} parent=1 // pred_fallthru
      _
    // Predicated region
    $region30: #{tpu_custom_call.1} parent=1 // pred_check
      _
    $region31: #{tpu_custom_call.1} parent=1 // pred_check_branch
      %78 = sbr.rel (0) target = $region33
    $region32: #{tpu_custom_call.1} parent=1 // pred_region
      %79 = dma.done [#allocation4], 2048
    $region33: #{tpu_custom_call.1} parent=1 // pred_fallthru
      _
    // Predicated region
    $region34: #{tpu_custom_call.1} parent=1 // pred_check
      _
    $region35: #{tpu_custom_call.1} parent=1 // pred_check_branch
      %81 = sbr.rel (0) target = $region37
    $region36: #{tpu_custom_call.1} parent=1 // pred_region
      %82 = dma.done [#allocation6], 20480
    $region37: #{tpu_custom_call.1} parent=1 // pred_fallthru
      _
    // Predicated region
    $region38: #{tpu_custom_call.1} parent=1 // pred_check
      _
    $region39: #{tpu_custom_call.1} parent=1 // pred_check_branch
      %84 = sbr.rel (0) target = $region41
    $region40: #{tpu_custom_call.1} parent=1 // pred_region
      %85 = dma.done [#allocation6], 160
    $region41: #{tpu_custom_call.1} parent=1 // pred_fallthru
      _
    // Predicated region
    $region42: #{tpu_custom_call.1} parent=1 // pred_check
      _
    $region43: #{tpu_custom_call.1} parent=1 // pred_check_branch
      %87 = sbr.rel (0) target = $region45
    $region44: #{tpu_custom_call.1} parent=1 // pred_region
      %88 = dma.done [#allocation9], 20480
    $region45: #{tpu_custom_call.1} parent=1 // pred_fallthru
      _
    // Predicated region
    $region46: #{tpu_custom_call.1} parent=1 // pred_check
      _
    $region47: #{tpu_custom_call.1} parent=1 // pred_check_branch
      %90 = sbr.rel (0) target = $region49
    $region48: #{tpu_custom_call.1} parent=1 // pred_region
      %91 = dma.done [#allocation9], 160
    $region49: #{tpu_custom_call.1} parent=1 // pred_fallthru
      _
    %v92 = vld [vmem:[#allocation3] sm:$0xff]
    %v93 = vld [vmem:[#allocation3 + $0x8] sm:$0xff]
    %v94 = vld [vmem:[#allocation3 + $0x10] sm:$0xff]
    %v95 = vld [vmem:[#allocation3 + $0x18] sm:$0xff]
    %v96 = vld [vmem:[#allocation3 + $0x20] sm:$0xff]
    %v97 = vld [vmem:[#allocation3 + $0x28] sm:$0xff]
    %v98 = vld [vmem:[#allocation3 + $0x30] sm:$0xff]
    %v99 = vld [vmem:[#allocation3 + $0x38] sm:$0xff]
    %v100 = vld [vmem:[#allocation3 + $0x40] sm:$0xff]
    %v101 = vld [vmem:[#allocation3 + $0x48] sm:$0xff]
    %v102 = vld [vmem:[#allocation3 + $0x50] sm:$0xff]
    %v103 = vld [vmem:[#allocation3 + $0x58] sm:$0xff]
    %v104 = vld [vmem:[#allocation3 + $0x60] sm:$0xff]
    %v105 = vld [vmem:[#allocation3 + $0x68] sm:$0xff]
    %v106 = vld [vmem:[#allocation3 + $0x70] sm:$0xff]
    %v107 = vld [vmem:[#allocation3 + $0x78] sm:$0xff]
    %v108 = vld [vmem:[#allocation5] sm:$0xff]
    %v109 = vld [vmem:[#allocation5 + $0x8] sm:$0xff]
    %v110 = vld [vmem:[#allocation5 + $0x10] sm:$0xff]
    %v111 = vld [vmem:[#allocation5 + $0x18] sm:$0xff]
    %v112 = vld [vmem:[#allocation5 + $0x20] sm:$0xff]
    %v113 = vld [vmem:[#allocation5 + $0x28] sm:$0xff]
    %v114 = vld [vmem:[#allocation5 + $0x30] sm:$0xff]
    %v115 = vld [vmem:[#allocation5 + $0x38] sm:$0xff]
    %v116 = vld [vmem:[#allocation5 + $0x40] sm:$0xff]
    %v117 = vld [vmem:[#allocation5 + $0x48] sm:$0xff]
    %v118 = vld [vmem:[#allocation5 + $0x50] sm:$0xff]
    %v119 = vld [vmem:[#allocation5 + $0x58] sm:$0xff]
    %v120 = vld [vmem:[#allocation5 + $0x60] sm:$0xff]
    %v121 = vld [vmem:[#allocation5 + $0x68] sm:$0xff]
    %v122 = vld [vmem:[#allocation5 + $0x70] sm:$0xff]
    %v123 = vld [vmem:[#allocation5 + $0x78] sm:$0xff]
    %v124 = vld [vmem:[#allocation5 + $0x80] sm:$0xff]
    %v125 = vld [vmem:[#allocation5 + $0x88] sm:$0xff]
    %v126 = vld [vmem:[#allocation5 + $0x90] sm:$0xff]
    %v127 = vld [vmem:[#allocation5 + $0x98] sm:$0xff]
    %v128 = vld [vmem:[#allocation5 + $0xa0] sm:$0xff]
    %v129 = vld [vmem:[#allocation5 + $0xa8] sm:$0xff]
    %v130 = vld [vmem:[#allocation5 + $0xb0] sm:$0xff]
    %v131 = vld [vmem:[#allocation5 + $0xb8] sm:$0xff]
    %v132 = vld [vmem:[#allocation5 + $0xc0] sm:$0xff]
    %v133 = vld [vmem:[#allocation5 + $0xc8] sm:$0xff]
    %v134 = vld [vmem:[#allocation5 + $0xd0] sm:$0xff]
    %v135 = vld [vmem:[#allocation5 + $0xd8] sm:$0xff]
    %v136 = vld [vmem:[#allocation5 + $0xe0] sm:$0xff]
    %v137 = vld [vmem:[#allocation5 + $0xe8] sm:$0xff]
    %v138 = vld [vmem:[#allocation5 + $0xf0] sm:$0xff]
    %v139 = vld [vmem:[#allocation5 + $0xf8] sm:$0xff]
    %v140 = vld [vmem:[#allocation5 + $0x100] sm:$0xff]
    %v141 = vld [vmem:[#allocation5 + $0x108] sm:$0xff]
    %v142 = vld [vmem:[#allocation5 + $0x110] sm:$0xff]
    %v143 = vld [vmem:[#allocation5 + $0x118] sm:$0xff]
    %v144 = vld [vmem:[#allocation5 + $0x120] sm:$0xff]
    %v145 = vld [vmem:[#allocation5 + $0x128] sm:$0xff]
    %v146 = vld [vmem:[#allocation5 + $0x130] sm:$0xff]
    %v147 = vld [vmem:[#allocation5 + $0x138] sm:$0xff]
    %v148 = vld [vmem:[#allocation5 + $0x140] sm:$0xff]
    %v149 = vld [vmem:[#allocation5 + $0x148] sm:$0xff]
    %v150 = vld [vmem:[#allocation5 + $0x150] sm:$0xff]
    %v151 = vld [vmem:[#allocation5 + $0x158] sm:$0xff]
    %v152 = vld [vmem:[#allocation5 + $0x160] sm:$0xff]
    %v153 = vld [vmem:[#allocation5 + $0x168] sm:$0xff]
    %v154 = vld [vmem:[#allocation5 + $0x170] sm:$0xff]
    %v155 = vld [vmem:[#allocation5 + $0x178] sm:$0xff]
    %v156 = vld [vmem:[#allocation5 + $0x180] sm:$0xff]
    %v157 = vld [vmem:[#allocation5 + $0x188] sm:$0xff]
    %v158 = vld [vmem:[#allocation5 + $0x190] sm:$0xff]
    %v159 = vld [vmem:[#allocation5 + $0x198] sm:$0xff]
    %v160 = vld [vmem:[#allocation5 + $0x1a0] sm:$0xff]
    %v161 = vld [vmem:[#allocation5 + $0x1a8] sm:$0xff]
    %v162 = vld [vmem:[#allocation5 + $0x1b0] sm:$0xff]
    %v163 = vld [vmem:[#allocation5 + $0x1b8] sm:$0xff]
    %v164 = vld [vmem:[#allocation5 + $0x1c0] sm:$0xff]
    %v165 = vld [vmem:[#allocation5 + $0x1c8] sm:$0xff]
    %v166 = vld [vmem:[#allocation5 + $0x1d0] sm:$0xff]
    %v167 = vld [vmem:[#allocation5 + $0x1d8] sm:$0xff]
    %v168 = vld [vmem:[#allocation5 + $0x1e0] sm:$0xff]
    %v169 = vld [vmem:[#allocation5 + $0x1e8] sm:$0xff]
    %v170 = vld [vmem:[#allocation5 + $0x1f0] sm:$0xff]
    %v171 = vld [vmem:[#allocation5 + $0x1f8] sm:$0xff]
    %v172 = vld [vmem:[#allocation5 + $0x200] sm:$0xff]
    %v173 = vld [vmem:[#allocation5 + $0x208] sm:$0xff]
    %v174 = vld [vmem:[#allocation5 + $0x210] sm:$0xff]
    %v175 = vld [vmem:[#allocation5 + $0x218] sm:$0xff]
    %v176 = vld [vmem:[#allocation5 + $0x220] sm:$0xff]
    %v177 = vld [vmem:[#allocation5 + $0x228] sm:$0xff]
    %v178 = vld [vmem:[#allocation5 + $0x230] sm:$0xff]
    %v179 = vld [vmem:[#allocation5 + $0x238] sm:$0xff]
    %v180 = vld [vmem:[#allocation5 + $0x240] sm:$0xff]
    %v181 = vld [vmem:[#allocation5 + $0x248] sm:$0xff]
    %v182 = vld [vmem:[#allocation5 + $0x250] sm:$0xff]
    %v183 = vld [vmem:[#allocation5 + $0x258] sm:$0xff]
    %v184 = vld [vmem:[#allocation5 + $0x260] sm:$0xff]
    %v185 = vld [vmem:[#allocation5 + $0x268] sm:$0xff]
    %v186 = vld [vmem:[#allocation5 + $0x270] sm:$0xff]
    %v187 = vld [vmem:[#allocation5 + $0x278] sm:$0xff]
    %v188 = vld [vmem:[#allocation5 + $0x280] sm:$0xff]
    %v189 = vld [vmem:[#allocation5 + $0x288] sm:$0xff]
    %v190 = vld [vmem:[#allocation5 + $0x290] sm:$0xff]
    %v191 = vld [vmem:[#allocation5 + $0x298] sm:$0xff]
    %v192 = vld [vmem:[#allocation5 + $0x2a0] sm:$0xff]
    %v193 = vld [vmem:[#allocation5 + $0x2a8] sm:$0xff]
    %v194 = vld [vmem:[#allocation5 + $0x2b0] sm:$0xff]
    %v195 = vld [vmem:[#allocation5 + $0x2b8] sm:$0xff]
    %v196 = vld [vmem:[#allocation5 + $0x2c0] sm:$0xff]
    %v197 = vld [vmem:[#allocation5 + $0x2c8] sm:$0xff]
    %v198 = vld [vmem:[#allocation5 + $0x2d0] sm:$0xff]
    %v199 = vld [vmem:[#allocation5 + $0x2d8] sm:$0xff]
    %v200 = vld [vmem:[#allocation5 + $0x2e0] sm:$0xff]
    %v201 = vld [vmem:[#allocation5 + $0x2e8] sm:$0xff]
    %v202 = vld [vmem:[#allocation5 + $0x2f0] sm:$0xff]
    %v203 = vld [vmem:[#allocation5 + $0x2f8] sm:$0xff]
    %v204 = vld [vmem:[#allocation5 + $0x300] sm:$0xff]
    %v205 = vld [vmem:[#allocation5 + $0x308] sm:$0xff]
    %v206 = vld [vmem:[#allocation5 + $0x310] sm:$0xff]
    %v207 = vld [vmem:[#allocation5 + $0x318] sm:$0xff]
    %v208 = vld [vmem:[#allocation5 + $0x320] sm:$0xff]
    %v209 = vld [vmem:[#allocation5 + $0x328] sm:$0xff]
    %v210 = vld [vmem:[#allocation5 + $0x330] sm:$0xff]
    %v211 = vld [vmem:[#allocation5 + $0x338] sm:$0xff]
    %v212 = vld [vmem:[#allocation5 + $0x340] sm:$0xff]
    %v213 = vld [vmem:[#allocation5 + $0x348] sm:$0xff]
    %v214 = vld [vmem:[#allocation5 + $0x350] sm:$0xff]
    %v215 = vld [vmem:[#allocation5 + $0x358] sm:$0xff]
    %v216 = vld [vmem:[#allocation5 + $0x360] sm:$0xff]
    %v217 = vld [vmem:[#allocation5 + $0x368] sm:$0xff]
    %v218 = vld [vmem:[#allocation5 + $0x370] sm:$0xff]
    %v219 = vld [vmem:[#allocation5 + $0x378] sm:$0xff]
    %v220 = vld [vmem:[#allocation5 + $0x380] sm:$0xff]
    %v221 = vld [vmem:[#allocation5 + $0x388] sm:$0xff]
    %v222 = vld [vmem:[#allocation5 + $0x390] sm:$0xff]
    %v223 = vld [vmem:[#allocation5 + $0x398] sm:$0xff]
    %v224 = vld [vmem:[#allocation5 + $0x3a0] sm:$0xff]
    %v225 = vld [vmem:[#allocation5 + $0x3a8] sm:$0xff]
    %v226 = vld [vmem:[#allocation5 + $0x3b0] sm:$0xff]
    %v227 = vld [vmem:[#allocation5 + $0x3b8] sm:$0xff]
    %v228 = vld [vmem:[#allocation5 + $0x3c0] sm:$0xff]
    %v229 = vld [vmem:[#allocation5 + $0x3c8] sm:$0xff]
    %v230 = vld [vmem:[#allocation5 + $0x3d0] sm:$0xff]
    %v231 = vld [vmem:[#allocation5 + $0x3d8] sm:$0xff]
    %v232 = vld [vmem:[#allocation5 + $0x3e0] sm:$0xff]
    %v233 = vld [vmem:[#allocation5 + $0x3e8] sm:$0xff]
    %v234 = vld [vmem:[#allocation5 + $0x3f0] sm:$0xff]
    %v235 = vld [vmem:[#allocation5 + $0x3f8] sm:$0xff]
    %v236 = vld [vmem:[#allocation5 + $0x400] sm:$0xff]
    %v237 = vld [vmem:[#allocation5 + $0x408] sm:$0xff]
    %v238 = vld [vmem:[#allocation5 + $0x410] sm:$0xff]
    %v239 = vld [vmem:[#allocation5 + $0x418] sm:$0xff]
    %v240 = vld [vmem:[#allocation5 + $0x420] sm:$0xff]
    %v241 = vld [vmem:[#allocation5 + $0x428] sm:$0xff]
    %v242 = vld [vmem:[#allocation5 + $0x430] sm:$0xff]
    %v243 = vld [vmem:[#allocation5 + $0x438] sm:$0xff]
    %v244 = vld [vmem:[#allocation5 + $0x440] sm:$0xff]
    %v245 = vld [vmem:[#allocation5 + $0x448] sm:$0xff]
    %v246 = vld [vmem:[#allocation5 + $0x450] sm:$0xff]
    %v247 = vld [vmem:[#allocation5 + $0x458] sm:$0xff]
    %v248 = vld [vmem:[#allocation5 + $0x460] sm:$0xff]
    %v249 = vld [vmem:[#allocation5 + $0x468] sm:$0xff]
    %v250 = vld [vmem:[#allocation5 + $0x470] sm:$0xff]
    %v251 = vld [vmem:[#allocation5 + $0x478] sm:$0xff]
    %v252 = vld [vmem:[#allocation5 + $0x480] sm:$0xff]
    %v253 = vld [vmem:[#allocation5 + $0x488] sm:$0xff]
    %v254 = vld [vmem:[#allocation5 + $0x490] sm:$0xff]
    %v255 = vld [vmem:[#allocation5 + $0x498] sm:$0xff]
    %v256 = vld [vmem:[#allocation5 + $0x4a0] sm:$0xff]
    %v257 = vld [vmem:[#allocation5 + $0x4a8] sm:$0xff]
    %v258 = vld [vmem:[#allocation5 + $0x4b0] sm:$0xff]
    %v259 = vld [vmem:[#allocation5 + $0x4b8] sm:$0xff]
    %v260 = vld [vmem:[#allocation5 + $0x4c0] sm:$0xff]
    %v261 = vld [vmem:[#allocation5 + $0x4c8] sm:$0xff]
    %v262 = vld [vmem:[#allocation5 + $0x4d0] sm:$0xff]
    %v263 = vld [vmem:[#allocation5 + $0x4d8] sm:$0xff]
    %v264 = vld [vmem:[#allocation5 + $0x4e0] sm:$0xff]
    %v265 = vld [vmem:[#allocation5 + $0x4e8] sm:$0xff]
    %v266 = vld [vmem:[#allocation5 + $0x4f0] sm:$0xff]
    %v267 = vld [vmem:[#allocation5 + $0x4f8] sm:$0xff]
    %v268 = vld [vmem:[#allocation7] sm:$0xff]
    %v269 = vld [vmem:[#allocation7 + $0x8] sm:$0x3]
    %v272 = vlaneseq
    %v273 = vshrl.u32 %v272, 7
    %v274 = vsub.s32 0, %v273
    %v275 = vrot.slane %v268, %v274
    %v276 = vlaneseq
    %v277 = vshrl.u32 %v276, 7
    %v278 = vsub.s32 1, %v277
    %v279 = vrot.slane %v268, %v278
    %v280 = vlaneseq
    %v281 = vshrl.u32 %v280, 7
    %v282 = vsub.s32 2, %v281
    %v283 = vrot.slane %v268, %v282
    %v284 = vlaneseq
    %v285 = vshrl.u32 %v284, 7
    %v286 = vsub.s32 3, %v285
    %v287 = vrot.slane %v268, %v286
    %v288 = vlaneseq
    %v289 = vshrl.u32 %v288, 7
    %v290 = vsub.s32 4, %v289
    %v291 = vrot.slane %v268, %v290
    %v292 = vlaneseq
    %v293 = vshrl.u32 %v292, 7
    %v294 = vsub.s32 5, %v293
    %v295 = vrot.slane %v268, %v294
    %v296 = vlaneseq
    %v297 = vshrl.u32 %v296, 7
    %v298 = vsub.s32 6, %v297
    %v299 = vrot.slane %v268, %v298
    %v300 = vlaneseq
    %v301 = vshrl.u32 %v300, 7
    %v302 = vsub.s32 7, %v301
    %v303 = vrot.slane %v268, %v302
    %v304 = vlaneseq
    %v305 = vshrl.u32 %v304, 7
    %v306 = vsub.s32 0, %v305
    %v307 = vrot.slane %v269, %v306
    %v308 = vlaneseq
    %v309 = vshrl.u32 %v308, 7
    %v310 = vsub.s32 1, %v309
    %v311 = vrot.slane %v269, %v310
    %v338 = vunpack.c.l.b16 %v92
    %v339 = vunpack.c.h.b16 %v92
    %v340 = vunpack.c.l.b16 %v93
    %v341 = vunpack.c.h.b16 %v93
    %v342 = vunpack.c.l.b16 %v94
    %v343 = vunpack.c.h.b16 %v94
    %v344 = vunpack.c.l.b16 %v95
    %v345 = vunpack.c.h.b16 %v95
    %v346 = vunpack.c.l.b16 %v96
    %v347 = vunpack.c.h.b16 %v96
    %v348 = vunpack.c.l.b16 %v97
    %v349 = vunpack.c.h.b16 %v97
    %v350 = vunpack.c.l.b16 %v98
    %v351 = vunpack.c.h.b16 %v98
    %v352 = vunpack.c.l.b16 %v99
    %v353 = vunpack.c.h.b16 %v99
    %v354 = vunpack.c.l.b16 %v100
    %v355 = vunpack.c.h.b16 %v100
    %v356 = vunpack.c.l.b16 %v101
    %v357 = vunpack.c.h.b16 %v101
    %v358 = vunpack.c.l.b16 %v102
    %v359 = vunpack.c.h.b16 %v102
    %v360 = vunpack.c.l.b16 %v103
    %v361 = vunpack.c.h.b16 %v103
    %v362 = vunpack.c.l.b16 %v104
    %v363 = vunpack.c.h.b16 %v104
    %v364 = vunpack.c.l.b16 %v105
    %v365 = vunpack.c.h.b16 %v105
    %v366 = vunpack.c.l.b16 %v106
    %v367 = vunpack.c.h.b16 %v106
    %v368 = vunpack.c.l.b16 %v107
    %v369 = vunpack.c.h.b16 %v107
    %v370 = vpack.c.b16 %v340, %v338
    %v371 = vpack.c.b16 %v341, %v339
    %v372 = vpack.c.b16 %v344, %v342
    %v373 = vpack.c.b16 %v345, %v343
    %v374 = vpack.c.b16 %v348, %v346
    %v375 = vpack.c.b16 %v349, %v347
    %v376 = vpack.c.b16 %v352, %v350
    %v377 = vpack.c.b16 %v353, %v351
    %v378 = vpack.c.b16 %v356, %v354
    %v379 = vpack.c.b16 %v357, %v355
    %v380 = vpack.c.b16 %v360, %v358
    %v381 = vpack.c.b16 %v361, %v359
    %v382 = vpack.c.b16 %v364, %v362
    %v383 = vpack.c.b16 %v365, %v363
    %v384 = vpack.c.b16 %v368, %v366
    %v385 = vpack.c.b16 %v369, %v367
    %v562 = vunpack.c.l.b16 %v108
    %v563 = vunpack.c.h.b16 %v108
    %v564 = vunpack.c.l.b16 %v109
    %v565 = vunpack.c.h.b16 %v109
    %v566 = vunpack.c.l.b16 %v110
    %v567 = vunpack.c.h.b16 %v110
    %v568 = vunpack.c.l.b16 %v111
    %v569 = vunpack.c.h.b16 %v111
    %v570 = vunpack.c.l.b16 %v112
    %v571 = vunpack.c.h.b16 %v112
    %v572 = vunpack.c.l.b16 %v113
    %v573 = vunpack.c.h.b16 %v113
    %v574 = vunpack.c.l.b16 %v114
    %v575 = vunpack.c.h.b16 %v114
    %v576 = vunpack.c.l.b16 %v115
    %v577 = vunpack.c.h.b16 %v115
    %v578 = vunpack.c.l.b16 %v116
    %v579 = vunpack.c.h.b16 %v116
    %v580 = vunpack.c.l.b16 %v117
    %v581 = vunpack.c.h.b16 %v117
    %v582 = vunpack.c.l.b16 %v118
    %v583 = vunpack.c.h.b16 %v118
    %v584 = vunpack.c.l.b16 %v119
    %v585 = vunpack.c.h.b16 %v119
    %v586 = vunpack.c.l.b16 %v120
    %v587 = vunpack.c.h.b16 %v120
    %v588 = vunpack.c.l.b16 %v121
    %v589 = vunpack.c.h.b16 %v121
    %v590 = vunpack.c.l.b16 %v122
    %v591 = vunpack.c.h.b16 %v122
    %v592 = vunpack.c.l.b16 %v123
    %v593 = vunpack.c.h.b16 %v123
    %v594 = vunpack.c.l.b16 %v124
    %v595 = vunpack.c.h.b16 %v124
    %v596 = vunpack.c.l.b16 %v125
    %v597 = vunpack.c.h.b16 %v125
    %v598 = vunpack.c.l.b16 %v126
    %v599 = vunpack.c.h.b16 %v126
    %v600 = vunpack.c.l.b16 %v127
    %v601 = vunpack.c.h.b16 %v127
    %v602 = vunpack.c.l.b16 %v128
    %v603 = vunpack.c.h.b16 %v128
    %v604 = vunpack.c.l.b16 %v129
    %v605 = vunpack.c.h.b16 %v129
    %v606 = vunpack.c.l.b16 %v130
    %v607 = vunpack.c.h.b16 %v130
    %v608 = vunpack.c.l.b16 %v131
    %v609 = vunpack.c.h.b16 %v131
    %v610 = vunpack.c.l.b16 %v132
    %v611 = vunpack.c.h.b16 %v132
    %v612 = vunpack.c.l.b16 %v133
    %v613 = vunpack.c.h.b16 %v133
    %v614 = vunpack.c.l.b16 %v134
    %v615 = vunpack.c.h.b16 %v134
    %v616 = vunpack.c.l.b16 %v135
    %v617 = vunpack.c.h.b16 %v135
    %v618 = vunpack.c.l.b16 %v136
    %v619 = vunpack.c.h.b16 %v136
    %v620 = vunpack.c.l.b16 %v137
    %v621 = vunpack.c.h.b16 %v137
    %v622 = vunpack.c.l.b16 %v138
    %v623 = vunpack.c.h.b16 %v138
    %v624 = vunpack.c.l.b16 %v139
    %v625 = vunpack.c.h.b16 %v139
    %v626 = vunpack.c.l.b16 %v140
    %v627 = vunpack.c.h.b16 %v140
    %v628 = vunpack.c.l.b16 %v141
    %v629 = vunpack.c.h.b16 %v141
    %v630 = vunpack.c.l.b16 %v142
    %v631 = vunpack.c.h.b16 %v142
    %v632 = vunpack.c.l.b16 %v143
    %v633 = vunpack.c.h.b16 %v143
    %v634 = vunpack.c.l.b16 %v144
    %v635 = vunpack.c.h.b16 %v144
    %v636 = vunpack.c.l.b16 %v145
    %v637 = vunpack.c.h.b16 %v145
    %v638 = vunpack.c.l.b16 %v146
    %v639 = vunpack.c.h.b16 %v146
    %v640 = vunpack.c.l.b16 %v147
    %v641 = vunpack.c.h.b16 %v147
    %v642 = vunpack.c.l.b16 %v148
    %v643 = vunpack.c.h.b16 %v148
    %v644 = vunpack.c.l.b16 %v149
    %v645 = vunpack.c.h.b16 %v149
    %v646 = vunpack.c.l.b16 %v150
    %v647 = vunpack.c.h.b16 %v150
    %v648 = vunpack.c.l.b16 %v151
    %v649 = vunpack.c.h.b16 %v151
    %v650 = vunpack.c.l.b16 %v152
    %v651 = vunpack.c.h.b16 %v152
    %v652 = vunpack.c.l.b16 %v153
    %v653 = vunpack.c.h.b16 %v153
    %v654 = vunpack.c.l.b16 %v154
    %v655 = vunpack.c.h.b16 %v154
    %v656 = vunpack.c.l.b16 %v155
    %v657 = vunpack.c.h.b16 %v155
    %v658 = vunpack.c.l.b16 %v156
    %v659 = vunpack.c.h.b16 %v156
    %v660 = vunpack.c.l.b16 %v157
    %v661 = vunpack.c.h.b16 %v157
    %v662 = vunpack.c.l.b16 %v158
    %v663 = vunpack.c.h.b16 %v158
    %v664 = vunpack.c.l.b16 %v159
    %v665 = vunpack.c.h.b16 %v159
    %v666 = vunpack.c.l.b16 %v160
    %v667 = vunpack.c.h.b16 %v160
    %v668 = vunpack.c.l.b16 %v161
    %v669 = vunpack.c.h.b16 %v161
    %v670 = vunpack.c.l.b16 %v162
    %v671 = vunpack.c.h.b16 %v162
    %v672 = vunpack.c.l.b16 %v163
    %v673 = vunpack.c.h.b16 %v163
    %v674 = vunpack.c.l.b16 %v164
    %v675 = vunpack.c.h.b16 %v164
    %v676 = vunpack.c.l.b16 %v165
    %v677 = vunpack.c.h.b16 %v165
    %v678 = vunpack.c.l.b16 %v166
    %v679 = vunpack.c.h.b16 %v166
    %v680 = vunpack.c.l.b16 %v167
    %v681 = vunpack.c.h.b16 %v167
    %v682 = vunpack.c.l.b16 %v168
    %v683 = vunpack.c.h.b16 %v168
    %v684 = vunpack.c.l.b16 %v169
    %v685 = vunpack.c.h.b16 %v169
    %v686 = vunpack.c.l.b16 %v170
    %v687 = vunpack.c.h.b16 %v170
    %v688 = vunpack.c.l.b16 %v171
    %v689 = vunpack.c.h.b16 %v171
    %v690 = vunpack.c.l.b16 %v172
    %v691 = vunpack.c.h.b16 %v172
    %v692 = vunpack.c.l.b16 %v173
    %v693 = vunpack.c.h.b16 %v173
    %v694 = vunpack.c.l.b16 %v174
    %v695 = vunpack.c.h.b16 %v174
    %v696 = vunpack.c.l.b16 %v175
    %v697 = vunpack.c.h.b16 %v175
    %v698 = vunpack.c.l.b16 %v176
    %v699 = vunpack.c.h.b16 %v176
    %v700 = vunpack.c.l.b16 %v177
    %v701 = vunpack.c.h.b16 %v177
    %v702 = vunpack.c.l.b16 %v178
    %v703 = vunpack.c.h.b16 %v178
    %v704 = vunpack.c.l.b16 %v179
    %v705 = vunpack.c.h.b16 %v179
    %v706 = vunpack.c.l.b16 %v180
    %v707 = vunpack.c.h.b16 %v180
    %v708 = vunpack.c.l.b16 %v181
    %v709 = vunpack.c.h.b16 %v181
    %v710 = vunpack.c.l.b16 %v182
    %v711 = vunpack.c.h.b16 %v182
    %v712 = vunpack.c.l.b16 %v183
    %v713 = vunpack.c.h.b16 %v183
    %v714 = vunpack.c.l.b16 %v184
    %v715 = vunpack.c.h.b16 %v184
    %v716 = vunpack.c.l.b16 %v185
    %v717 = vunpack.c.h.b16 %v185
    %v718 = vunpack.c.l.b16 %v186
    %v719 = vunpack.c.h.b16 %v186
    %v720 = vunpack.c.l.b16 %v187
    %v721 = vunpack.c.h.b16 %v187
    %v722 = vunpack.c.l.b16 %v188
    %v723 = vunpack.c.h.b16 %v188
    %v724 = vunpack.c.l.b16 %v189
    %v725 = vunpack.c.h.b16 %v189
    %v726 = vunpack.c.l.b16 %v190
    %v727 = vunpack.c.h.b16 %v190
    %v728 = vunpack.c.l.b16 %v191
    %v729 = vunpack.c.h.b16 %v191
    %v730 = vunpack.c.l.b16 %v192
    %v731 = vunpack.c.h.b16 %v192
    %v732 = vunpack.c.l.b16 %v193
    %v733 = vunpack.c.h.b16 %v193
    %v734 = vunpack.c.l.b16 %v194
    %v735 = vunpack.c.h.b16 %v194
    %v736 = vunpack.c.l.b16 %v195
    %v737 = vunpack.c.h.b16 %v195
    %v738 = vunpack.c.l.b16 %v196
    %v739 = vunpack.c.h.b16 %v196
    %v740 = vunpack.c.l.b16 %v197
    %v741 = vunpack.c.h.b16 %v197
    %v742 = vunpack.c.l.b16 %v198
    %v743 = vunpack.c.h.b16 %v198
    %v744 = vunpack.c.l.b16 %v199
    %v745 = vunpack.c.h.b16 %v199
    %v746 = vunpack.c.l.b16 %v200
    %v747 = vunpack.c.h.b16 %v200
    %v748 = vunpack.c.l.b16 %v201
    %v749 = vunpack.c.h.b16 %v201
    %v750 = vunpack.c.l.b16 %v202
    %v751 = vunpack.c.h.b16 %v202
    %v752 = vunpack.c.l.b16 %v203
    %v753 = vunpack.c.h.b16 %v203
    %v754 = vunpack.c.l.b16 %v204
    %v755 = vunpack.c.h.b16 %v204
    %v756 = vunpack.c.l.b16 %v205
    %v757 = vunpack.c.h.b16 %v205
    %v758 = vunpack.c.l.b16 %v206
    %v759 = vunpack.c.h.b16 %v206
    %v760 = vunpack.c.l.b16 %v207
    %v761 = vunpack.c.h.b16 %v207
    %v762 = vunpack.c.l.b16 %v208
    %v763 = vunpack.c.h.b16 %v208
    %v764 = vunpack.c.l.b16 %v209
    %v765 = vunpack.c.h.b16 %v209
    %v766 = vunpack.c.l.b16 %v210
    %v767 = vunpack.c.h.b16 %v210
    %v768 = vunpack.c.l.b16 %v211
    %v769 = vunpack.c.h.b16 %v211
    %v770 = vunpack.c.l.b16 %v212
    %v771 = vunpack.c.h.b16 %v212
    %v772 = vunpack.c.l.b16 %v213
    %v773 = vunpack.c.h.b16 %v213
    %v774 = vunpack.c.l.b16 %v214
    %v775 = vunpack.c.h.b16 %v214
    %v776 = vunpack.c.l.b16 %v215
    %v777 = vunpack.c.h.b16 %v215
    %v778 = vunpack.c.l.b16 %v216
    %v779 = vunpack.c.h.b16 %v216
    %v780 = vunpack.c.l.b16 %v217
    %v781 = vunpack.c.h.b16 %v217
    %v782 = vunpack.c.l.b16 %v218
    %v783 = vunpack.c.h.b16 %v218
    %v784 = vunpack.c.l.b16 %v219
    %v785 = vunpack.c.h.b16 %v219
    %v786 = vunpack.c.l.b16 %v220
    %v787 = vunpack.c.h.b16 %v220
    %v788 = vunpack.c.l.b16 %v221
    %v789 = vunpack.c.h.b16 %v221
    %v790 = vunpack.c.l.b16 %v222
    %v791 = vunpack.c.h.b16 %v222
    %v792 = vunpack.c.l.b16 %v223
    %v793 = vunpack.c.h.b16 %v223
    %v794 = vunpack.c.l.b16 %v224
    %v795 = vunpack.c.h.b16 %v224
    %v796 = vunpack.c.l.b16 %v225
    %v797 = vunpack.c.h.b16 %v225
    %v798 = vunpack.c.l.b16 %v226
    %v799 = vunpack.c.h.b16 %v226
    %v800 = vunpack.c.l.b16 %v227
    %v801 = vunpack.c.h.b16 %v227
    %v802 = vunpack.c.l.b16 %v228
    %v803 = vunpack.c.h.b16 %v228
    %v804 = vunpack.c.l.b16 %v229
    %v805 = vunpack.c.h.b16 %v229
    %v806 = vunpack.c.l.b16 %v230
    %v807 = vunpack.c.h.b16 %v230
    %v808 = vunpack.c.l.b16 %v231
    %v809 = vunpack.c.h.b16 %v231
    %v810 = vunpack.c.l.b16 %v232
    %v811 = vunpack.c.h.b16 %v232
    %v812 = vunpack.c.l.b16 %v233
    %v813 = vunpack.c.h.b16 %v233
    %v814 = vunpack.c.l.b16 %v234
    %v815 = vunpack.c.h.b16 %v234
    %v816 = vunpack.c.l.b16 %v235
    %v817 = vunpack.c.h.b16 %v235
    %v818 = vunpack.c.l.b16 %v236
    %v819 = vunpack.c.h.b16 %v236
    %v820 = vunpack.c.l.b16 %v237
    %v821 = vunpack.c.h.b16 %v237
    %v822 = vunpack.c.l.b16 %v238
    %v823 = vunpack.c.h.b16 %v238
    %v824 = vunpack.c.l.b16 %v239
    %v825 = vunpack.c.h.b16 %v239
    %v826 = vunpack.c.l.b16 %v240
    %v827 = vunpack.c.h.b16 %v240
    %v828 = vunpack.c.l.b16 %v241
    %v829 = vunpack.c.h.b16 %v241
    %v830 = vunpack.c.l.b16 %v242
    %v831 = vunpack.c.h.b16 %v242
    %v832 = vunpack.c.l.b16 %v243
    %v833 = vunpack.c.h.b16 %v243
    %v834 = vunpack.c.l.b16 %v244
    %v835 = vunpack.c.h.b16 %v244
    %v836 = vunpack.c.l.b16 %v245
    %v837 = vunpack.c.h.b16 %v245
    %v838 = vunpack.c.l.b16 %v246
    %v839 = vunpack.c.h.b16 %v246
    %v840 = vunpack.c.l.b16 %v247
    %v841 = vunpack.c.h.b16 %v247
    %v842 = vunpack.c.l.b16 %v248
    %v843 = vunpack.c.h.b16 %v248
    %v844 = vunpack.c.l.b16 %v249
    %v845 = vunpack.c.h.b16 %v249
    %v846 = vunpack.c.l.b16 %v250
    %v847 = vunpack.c.h.b16 %v250
    %v848 = vunpack.c.l.b16 %v251
    %v849 = vunpack.c.h.b16 %v251
    %v850 = vunpack.c.l.b16 %v252
    %v851 = vunpack.c.h.b16 %v252
    %v852 = vunpack.c.l.b16 %v253
    %v853 = vunpack.c.h.b16 %v253
    %v854 = vunpack.c.l.b16 %v254
    %v855 = vunpack.c.h.b16 %v254
    %v856 = vunpack.c.l.b16 %v255
    %v857 = vunpack.c.h.b16 %v255
    %v858 = vunpack.c.l.b16 %v256
    %v859 = vunpack.c.h.b16 %v256
    %v860 = vunpack.c.l.b16 %v257
    %v861 = vunpack.c.h.b16 %v257
    %v862 = vunpack.c.l.b16 %v258
    %v863 = vunpack.c.h.b16 %v258
    %v864 = vunpack.c.l.b16 %v259
    %v865 = vunpack.c.h.b16 %v259
    %v866 = vunpack.c.l.b16 %v260
    %v867 = vunpack.c.h.b16 %v260
    %v868 = vunpack.c.l.b16 %v261
    %v869 = vunpack.c.h.b16 %v261
    %v870 = vunpack.c.l.b16 %v262
    %v871 = vunpack.c.h.b16 %v262
    %v872 = vunpack.c.l.b16 %v263
    %v873 = vunpack.c.h.b16 %v263
    %v874 = vunpack.c.l.b16 %v264
    %v875 = vunpack.c.h.b16 %v264
    %v876 = vunpack.c.l.b16 %v265
    %v877 = vunpack.c.h.b16 %v265
    %v878 = vunpack.c.l.b16 %v266
    %v879 = vunpack.c.h.b16 %v266
    %v880 = vunpack.c.l.b16 %v267
    %v881 = vunpack.c.h.b16 %v267
    %v882 = vpack.c.b16 %v572, %v562
    %v883 = vpack.c.b16 %v573, %v563
    %v884 = vpack.c.b16 %v574, %v564
    %v885 = vpack.c.b16 %v575, %v565
    %v886 = vpack.c.b16 %v576, %v566
    %v887 = vpack.c.b16 %v577, %v567
    %v888 = vpack.c.b16 %v578, %v568
    %v889 = vpack.c.b16 %v579, %v569
    %v890 = vpack.c.b16 %v580, %v570
    %v891 = vpack.c.b16 %v581, %v571
    %v892 = vpack.c.b16 %v592, %v582
    %v893 = vpack.c.b16 %v593, %v583
    %v894 = vpack.c.b16 %v594, %v584
    %v895 = vpack.c.b16 %v595, %v585
    %v896 = vpack.c.b16 %v596, %v586
    %v897 = vpack.c.b16 %v597, %v587
    %v898 = vpack.c.b16 %v598, %v588
    %v899 = vpack.c.b16 %v599, %v589
    %v900 = vpack.c.b16 %v600, %v590
    %v901 = vpack.c.b16 %v601, %v591
    %v902 = vpack.c.b16 %v612, %v602
    %v903 = vpack.c.b16 %v613, %v603
    %v904 = vpack.c.b16 %v614, %v604
    %v905 = vpack.c.b16 %v615, %v605
    %v906 = vpack.c.b16 %v616, %v606
    %v907 = vpack.c.b16 %v617, %v607
    %v908 = vpack.c.b16 %v618, %v608
    %v909 = vpack.c.b16 %v619, %v609
    %v910 = vpack.c.b16 %v620, %v610
    %v911 = vpack.c.b16 %v621, %v611
    %v912 = vpack.c.b16 %v632, %v622
    %v913 = vpack.c.b16 %v633, %v623
    %v914 = vpack.c.b16 %v634, %v624
    %v915 = vpack.c.b16 %v635, %v625
    %v916 = vpack.c.b16 %v636, %v626
    %v917 = vpack.c.b16 %v637, %v627
    %v918 = vpack.c.b16 %v638, %v628
    %v919 = vpack.c.b16 %v639, %v629
    %v920 = vpack.c.b16 %v640, %v630
    %v921 = vpack.c.b16 %v641, %v631
    %v922 = vpack.c.b16 %v652, %v642
    %v923 = vpack.c.b16 %v653, %v643
    %v924 = vpack.c.b16 %v654, %v644
    %v925 = vpack.c.b16 %v655, %v645
    %v926 = vpack.c.b16 %v656, %v646
    %v927 = vpack.c.b16 %v657, %v647
    %v928 = vpack.c.b16 %v658, %v648
    %v929 = vpack.c.b16 %v659, %v649
    %v930 = vpack.c.b16 %v660, %v650
    %v931 = vpack.c.b16 %v661, %v651
    %v932 = vpack.c.b16 %v672, %v662
    %v933 = vpack.c.b16 %v673, %v663
    %v934 = vpack.c.b16 %v674, %v664
    %v935 = vpack.c.b16 %v675, %v665
    %v936 = vpack.c.b16 %v676, %v666
    %v937 = vpack.c.b16 %v677, %v667
    %v938 = vpack.c.b16 %v678, %v668
    %v939 = vpack.c.b16 %v679, %v669
    %v940 = vpack.c.b16 %v680, %v670
    %v941 = vpack.c.b16 %v681, %v671
    %v942 = vpack.c.b16 %v692, %v682
    %v943 = vpack.c.b16 %v693, %v683
    %v944 = vpack.c.b16 %v694, %v684
    %v945 = vpack.c.b16 %v695, %v685
    %v946 = vpack.c.b16 %v696, %v686
    %v947 = vpack.c.b16 %v697, %v687
    %v948 = vpack.c.b16 %v698, %v688
    %v949 = vpack.c.b16 %v699, %v689
    %v950 = vpack.c.b16 %v700, %v690
    %v951 = vpack.c.b16 %v701, %v691
    %v952 = vpack.c.b16 %v712, %v702
    %v953 = vpack.c.b16 %v713, %v703
    %v954 = vpack.c.b16 %v714, %v704
    %v955 = vpack.c.b16 %v715, %v705
    %v956 = vpack.c.b16 %v716, %v706
    %v957 = vpack.c.b16 %v717, %v707
    %v958 = vpack.c.b16 %v718, %v708
    %v959 = vpack.c.b16 %v719, %v709
    %v960 = vpack.c.b16 %v720, %v710
    %v961 = vpack.c.b16 %v721, %v711
    %v962 = vpack.c.b16 %v732, %v722
    %v963 = vpack.c.b16 %v733, %v723
    %v964 = vpack.c.b16 %v734, %v724
    %v965 = vpack.c.b16 %v735, %v725
    %v966 = vpack.c.b16 %v736, %v726
    %v967 = vpack.c.b16 %v737, %v727
    %v968 = vpack.c.b16 %v738, %v728
    %v969 = vpack.c.b16 %v739, %v729
    %v970 = vpack.c.b16 %v740, %v730
    %v971 = vpack.c.b16 %v741, %v731
    %v972 = vpack.c.b16 %v752, %v742
    %v973 = vpack.c.b16 %v753, %v743
    %v974 = vpack.c.b16 %v754, %v744
    %v975 = vpack.c.b16 %v755, %v745
    %v976 = vpack.c.b16 %v756, %v746
    %v977 = vpack.c.b16 %v757, %v747
    %v978 = vpack.c.b16 %v758, %v748
    %v979 = vpack.c.b16 %v759, %v749
    %v980 = vpack.c.b16 %v760, %v750
    %v981 = vpack.c.b16 %v761, %v751
    %v982 = vpack.c.b16 %v772, %v762
    %v983 = vpack.c.b16 %v773, %v763
    %v984 = vpack.c.b16 %v774, %v764
    %v985 = vpack.c.b16 %v775, %v765
    %v986 = vpack.c.b16 %v776, %v766
    %v987 = vpack.c.b16 %v777, %v767
    %v988 = vpack.c.b16 %v778, %v768
    %v989 = vpack.c.b16 %v779, %v769
    %v990 = vpack.c.b16 %v780, %v770
    %v991 = vpack.c.b16 %v781, %v771
    %v992 = vpack.c.b16 %v792, %v782
    %v993 = vpack.c.b16 %v793, %v783
    %v994 = vpack.c.b16 %v794, %v784
    %v995 = vpack.c.b16 %v795, %v785
    %v996 = vpack.c.b16 %v796, %v786
    %v997 = vpack.c.b16 %v797, %v787
    %v998 = vpack.c.b16 %v798, %v788
    %v999 = vpack.c.b16 %v799, %v789
    %v1000 = vpack.c.b16 %v800, %v790
    %v1001 = vpack.c.b16 %v801, %v791
    %v1002 = vpack.c.b16 %v812, %v802
    %v1003 = vpack.c.b16 %v813, %v803
    %v1004 = vpack.c.b16 %v814, %v804
    %v1005 = vpack.c.b16 %v815, %v805
    %v1006 = vpack.c.b16 %v816, %v806
    %v1007 = vpack.c.b16 %v817, %v807
    %v1008 = vpack.c.b16 %v818, %v808
    %v1009 = vpack.c.b16 %v819, %v809
    %v1010 = vpack.c.b16 %v820, %v810
    %v1011 = vpack.c.b16 %v821, %v811
    %v1012 = vpack.c.b16 %v832, %v822
    %v1013 = vpack.c.b16 %v833, %v823
    %v1014 = vpack.c.b16 %v834, %v824
    %v1015 = vpack.c.b16 %v835, %v825
    %v1016 = vpack.c.b16 %v836, %v826
    %v1017 = vpack.c.b16 %v837, %v827
    %v1018 = vpack.c.b16 %v838, %v828
    %v1019 = vpack.c.b16 %v839, %v829
    %v1020 = vpack.c.b16 %v840, %v830
    %v1021 = vpack.c.b16 %v841, %v831
    %v1022 = vpack.c.b16 %v852, %v842
    %v1023 = vpack.c.b16 %v853, %v843
    %v1024 = vpack.c.b16 %v854, %v844
    %v1025 = vpack.c.b16 %v855, %v845
    %v1026 = vpack.c.b16 %v856, %v846
    %v1027 = vpack.c.b16 %v857, %v847
    %v1028 = vpack.c.b16 %v858, %v848
    %v1029 = vpack.c.b16 %v859, %v849
    %v1030 = vpack.c.b16 %v860, %v850
    %v1031 = vpack.c.b16 %v861, %v851
    %v1032 = vpack.c.b16 %v872, %v862
    %v1033 = vpack.c.b16 %v873, %v863
    %v1034 = vpack.c.b16 %v874, %v864
    %v1035 = vpack.c.b16 %v875, %v865
    %v1036 = vpack.c.b16 %v876, %v866
    %v1037 = vpack.c.b16 %v877, %v867
    %v1038 = vpack.c.b16 %v878, %v868
    %v1039 = vpack.c.b16 %v879, %v869
    %v1040 = vpack.c.b16 %v880, %v870
    %v1041 = vpack.c.b16 %v881, %v871
    %1202 = vmatprep.subr.bf16.mxu0 %v953
    %1203 = vmatpush1.bf16.msra.mxu0 %v952
    %1204 = vmatprep.subr.bf16.mxu0 %v943
    %1205 = vmatpush1.bf16.msra.mxu0 %v942
    %1206 = vmatprep.subr.bf16.mxu0 %v933
    %1207 = vmatpush1.bf16.msra.mxu0 %v932
    %1208 = vmatprep.subr.bf16.mxu0 %v923
    %1209 = vmatpush1.bf16.msra.mxu0 %v922
    %1210 = vmatprep.subr.bf16.mxu0 %v913
    %1211 = vmatpush1.bf16.msra.mxu0 %v912
    %1212 = vmatprep.subr.bf16.mxu0 %v903
    %1213 = vmatpush1.bf16.msra.mxu0 %v902
    %1214 = vmatprep.subr.bf16.mxu0 %v893
    %1215 = vmatpush1.bf16.msra.mxu0 %v892
    %1216 = vmatprep.subr.bf16.mxu0 %v883
    %1217 = vmatpush1.bf16.msra.mxu0 %v882
    %1218 = vmatprep.subr.bf16.mxu0 %v1033
    %1219 = vmatpush2.bf16.msra.mxu0 %v1032
    %1220 = vmatprep.subr.bf16.mxu0 %v1023
    %1221 = vmatpush2.bf16.msra.mxu0 %v1022
    %1222 = vmatprep.subr.bf16.mxu0 %v1013
    %1223 = vmatpush2.bf16.msra.mxu0 %v1012
    %1224 = vmatprep.subr.bf16.mxu0 %v1003
    %1225 = vmatpush2.bf16.msra.mxu0 %v1002
    %1226 = vmatprep.subr.bf16.mxu0 %v993
    %1227 = vmatpush2.bf16.msra.mxu0 %v992
    %1228 = vmatprep.subr.bf16.mxu0 %v983
    %1229 = vmatpush2.bf16.msra.mxu0 %v982
    %1230 = vmatprep.subr.bf16.mxu0 %v973
    %1231 = vmatpush2.bf16.msra.mxu0 %v972
    %1232 = vmatprep.subr.bf16.mxu0 %v963
    %1233 = vmatpush2.bf16.msra.mxu0 %v962
    %1234 = vmatprep.mubr.bf16.mxu0 %v371
    %1235 = vmatmul.mubr.bf16.gmra.mxu0 %v370
    %v1236 = vpop.f32.mrf.mxu0
    %v1237 = vadd.f32 %v275, %v1236
    %v1238 = vpop.f32.mrf.mxu0
    %v1239 = vadd.f32 %v279, %v1238
    %v1240 = vpop.f32.mrf.mxu0
    %v1241 = vadd.f32 %v275, %v1240
    %v1242 = vpop.f32.mrf.mxu0
    %v1243 = vadd.f32 %v279, %v1242
    %1244 = vmatprep.mubr.bf16.mxu0 %v373
    %1245 = vmatmul.mubr.bf16.gmra.mxu0 %v372
    %v1246 = vpop.f32.mrf.mxu0
    %v1247 = vadd.f32 %v275, %v1246
    %v1248 = vpop.f32.mrf.mxu0
    %v1249 = vadd.f32 %v279, %v1248
    %v1250 = vpop.f32.mrf.mxu0
    %v1251 = vadd.f32 %v275, %v1250
    %v1252 = vpop.f32.mrf.mxu0
    %v1253 = vadd.f32 %v279, %v1252
    %1254 = vmatprep.mubr.bf16.mxu0 %v375
    %1255 = vmatmul.mubr.bf16.gmra.mxu0 %v374
    %v1256 = vpop.f32.mrf.mxu0
    %v1257 = vadd.f32 %v275, %v1256
    %v1258 = vpop.f32.mrf.mxu0
    %v1259 = vadd.f32 %v279, %v1258
    %v1260 = vpop.f32.mrf.mxu0
    %v1261 = vadd.f32 %v275, %v1260
    %v1262 = vpop.f32.mrf.mxu0
    %v1263 = vadd.f32 %v279, %v1262
    %1264 = vmatprep.mubr.bf16.mxu0 %v377
    %1265 = vmatmul.mubr.bf16.gmra.mxu0 %v376
    %v1266 = vpop.f32.mrf.mxu0
    %v1267 = vadd.f32 %v275, %v1266
    %v1268 = vpop.f32.mrf.mxu0
    %v1269 = vadd.f32 %v279, %v1268
    %v1270 = vpop.f32.mrf.mxu0
    %v1271 = vadd.f32 %v275, %v1270
    %v1272 = vpop.f32.mrf.mxu0
    %v1273 = vadd.f32 %v279, %v1272
    %1274 = vmatprep.mubr.bf16.mxu0 %v379
    %1275 = vmatmul.mubr.bf16.gmra.mxu0 %v378
    %v1276 = vpop.f32.mrf.mxu0
    %v1277 = vadd.f32 %v275, %v1276
    %v1278 = vpop.f32.mrf.mxu0
    %v1279 = vadd.f32 %v279, %v1278
    %v1280 = vpop.f32.mrf.mxu0
    %v1281 = vadd.f32 %v275, %v1280
    %v1282 = vpop.f32.mrf.mxu0
    %v1283 = vadd.f32 %v279, %v1282
    %1284 = vmatprep.mubr.bf16.mxu0 %v381
    %1285 = vmatmul.mubr.bf16.gmra.mxu0 %v380
    %v1286 = vpop.f32.mrf.mxu0
    %v1287 = vadd.f32 %v275, %v1286
    %v1288 = vpop.f32.mrf.mxu0
    %v1289 = vadd.f32 %v279, %v1288
    %v1290 = vpop.f32.mrf.mxu0
    %v1291 = vadd.f32 %v275, %v1290
    %v1292 = vpop.f32.mrf.mxu0
    %v1293 = vadd.f32 %v279, %v1292
    %1294 = vmatprep.mubr.bf16.mxu0 %v383
    %1295 = vmatmul.mubr.bf16.gmra.mxu0 %v382
    %v1296 = vpop.f32.mrf.mxu0
    %v1297 = vadd.f32 %v275, %v1296
    %v1298 = vpop.f32.mrf.mxu0
    %v1299 = vadd.f32 %v279, %v1298
    %v1300 = vpop.f32.mrf.mxu0
    %v1301 = vadd.f32 %v275, %v1300
    %v1302 = vpop.f32.mrf.mxu0
    %v1303 = vadd.f32 %v279, %v1302
    %1304 = vmatprep.mubr.bf16.mxu0 %v385
    %1305 = vmatmul.mubr.bf16.gmra.mxu0 %v384
    %v1306 = vpop.f32.mrf.mxu0
    %v1307 = vadd.f32 %v275, %v1306
    %v1308 = vpop.f32.mrf.mxu0
    %v1309 = vadd.f32 %v279, %v1308
    %v1310 = vpop.f32.mrf.mxu0
    %v1311 = vadd.f32 %v275, %v1310
    %v1312 = vpop.f32.mrf.mxu0
    %v1313 = vadd.f32 %v279, %v1312
    %1314 = vdwg.mxu0
    %1315 = vmatprep.subr.bf16.mxu0 %v955
    %1316 = vmatpush1.bf16.msra.mxu0 %v954
    %1317 = vmatprep.subr.bf16.mxu0 %v945
    %1318 = vmatpush1.bf16.msra.mxu0 %v944
    %1319 = vmatprep.subr.bf16.mxu0 %v935
    %1320 = vmatpush1.bf16.msra.mxu0 %v934
    %1321 = vmatprep.subr.bf16.mxu0 %v925
    %1322 = vmatpush1.bf16.msra.mxu0 %v924
    %1323 = vmatprep.subr.bf16.mxu0 %v915
    %1324 = vmatpush1.bf16.msra.mxu0 %v914
    %1325 = vmatprep.subr.bf16.mxu0 %v905
    %1326 = vmatpush1.bf16.msra.mxu0 %v904
    %1327 = vmatprep.subr.bf16.mxu0 %v895
    %1328 = vmatpush1.bf16.msra.mxu0 %v894
    %1329 = vmatprep.subr.bf16.mxu0 %v885
    %1330 = vmatpush1.bf16.msra.mxu0 %v884
    %1331 = vmatprep.subr.bf16.mxu0 %v1035
    %1332 = vmatpush2.bf16.msra.mxu0 %v1034
    %1333 = vmatprep.subr.bf16.mxu0 %v1025
    %1334 = vmatpush2.bf16.msra.mxu0 %v1024
    %1335 = vmatprep.subr.bf16.mxu0 %v1015
    %1336 = vmatpush2.bf16.msra.mxu0 %v1014
    %1337 = vmatprep.subr.bf16.mxu0 %v1005
    %1338 = vmatpush2.bf16.msra.mxu0 %v1004
    %1339 = vmatprep.subr.bf16.mxu0 %v995
    %1340 = vmatpush2.bf16.msra.mxu0 %v994
    %1341 = vmatprep.subr.bf16.mxu0 %v985
    %1342 = vmatpush2.bf16.msra.mxu0 %v984
    %1343 = vmatprep.subr.bf16.mxu0 %v975
    %1344 = vmatpush2.bf16.msra.mxu0 %v974
    %1345 = vmatprep.subr.bf16.mxu0 %v965
    %1346 = vmatpush2.bf16.msra.mxu0 %v964
    %1347 = vmatprep.mubr.bf16.mxu0 %v371
    %1348 = vmatmul.mubr.bf16.gmra.mxu0 %v370
    %v1349 = vpop.f32.mrf.mxu0
    %v1350 = vadd.f32 %v283, %v1349
    %v1351 = vpop.f32.mrf.mxu0
    %v1352 = vadd.f32 %v287, %v1351
    %v1353 = vpop.f32.mrf.mxu0
    %v1354 = vadd.f32 %v283, %v1353
    %v1355 = vpop.f32.mrf.mxu0
    %v1356 = vadd.f32 %v287, %v1355
    %1357 = vmatprep.mubr.bf16.mxu0 %v373
    %1358 = vmatmul.mubr.bf16.gmra.mxu0 %v372
    %v1359 = vpop.f32.mrf.mxu0
    %v1360 = vadd.f32 %v283, %v1359
    %v1361 = vpop.f32.mrf.mxu0
    %v1362 = vadd.f32 %v287, %v1361
    %v1363 = vpop.f32.mrf.mxu0
    %v1364 = vadd.f32 %v283, %v1363
    %v1365 = vpop.f32.mrf.mxu0
    %v1366 = vadd.f32 %v287, %v1365
    %1367 = vmatprep.mubr.bf16.mxu0 %v375
    %1368 = vmatmul.mubr.bf16.gmra.mxu0 %v374
    %v1369 = vpop.f32.mrf.mxu0
    %v1370 = vadd.f32 %v283, %v1369
    %v1371 = vpop.f32.mrf.mxu0
    %v1372 = vadd.f32 %v287, %v1371
    %v1373 = vpop.f32.mrf.mxu0
    %v1374 = vadd.f32 %v283, %v1373
    %v1375 = vpop.f32.mrf.mxu0
    %v1376 = vadd.f32 %v287, %v1375
    %1377 = vmatprep.mubr.bf16.mxu0 %v377
    %1378 = vmatmul.mubr.bf16.gmra.mxu0 %v376
    %v1379 = vpop.f32.mrf.mxu0
    %v1380 = vadd.f32 %v283, %v1379
    %v1381 = vpop.f32.mrf.mxu0
    %v1382 = vadd.f32 %v287, %v1381
    %v1383 = vpop.f32.mrf.mxu0
    %v1384 = vadd.f32 %v283, %v1383
    %v1385 = vpop.f32.mrf.mxu0
    %v1386 = vadd.f32 %v287, %v1385
    %1387 = vmatprep.mubr.bf16.mxu0 %v379
    %1388 = vmatmul.mubr.bf16.gmra.mxu0 %v378
    %v1389 = vpop.f32.mrf.mxu0
    %v1390 = vadd.f32 %v283, %v1389
    %v1391 = vpop.f32.mrf.mxu0
    %v1392 = vadd.f32 %v287, %v1391
    %v1393 = vpop.f32.mrf.mxu0
    %v1394 = vadd.f32 %v283, %v1393
    %v1395 = vpop.f32.mrf.mxu0
    %v1396 = vadd.f32 %v287, %v1395
    %1397 = vmatprep.mubr.bf16.mxu0 %v381
    %1398 = vmatmul.mubr.bf16.gmra.mxu0 %v380
    %v1399 = vpop.f32.mrf.mxu0
    %v1400 = vadd.f32 %v283, %v1399
    %v1401 = vpop.f32.mrf.mxu0
    %v1402 = vadd.f32 %v287, %v1401
    %v1403 = vpop.f32.mrf.mxu0
    %v1404 = vadd.f32 %v283, %v1403
    %v1405 = vpop.f32.mrf.mxu0
    %v1406 = vadd.f32 %v287, %v1405
    %1407 = vmatprep.mubr.bf16.mxu0 %v383
    %1408 = vmatmul.mubr.bf16.gmra.mxu0 %v382
    %v1409 = vpop.f32.mrf.mxu0
    %v1410 = vadd.f32 %v283, %v1409
    %v1411 = vpop.f32.mrf.mxu0
    %v1412 = vadd.f32 %v287, %v1411
    %v1413 = vpop.f32.mrf.mxu0
    %v1414 = vadd.f32 %v283, %v1413
    %v1415 = vpop.f32.mrf.mxu0
    %v1416 = vadd.f32 %v287, %v1415
    %1417 = vmatprep.mubr.bf16.mxu0 %v385
    %1418 = vmatmul.mubr.bf16.gmra.mxu0 %v384
    %v1419 = vpop.f32.mrf.mxu0
    %v1420 = vadd.f32 %v283, %v1419
    %v1421 = vpop.f32.mrf.mxu0
    %v1422 = vadd.f32 %v287, %v1421
    %v1423 = vpop.f32.mrf.mxu0
    %v1424 = vadd.f32 %v283, %v1423
    %v1425 = vpop.f32.mrf.mxu0
    %v1426 = vadd.f32 %v287, %v1425
    %1427 = vdwg.mxu0
    %1428 = vmatprep.subr.bf16.mxu0 %v957
    %1429 = vmatpush1.bf16.msra.mxu0 %v956
    %1430 = vmatprep.subr.bf16.mxu0 %v947
    %1431 = vmatpush1.bf16.msra.mxu0 %v946
    %1432 = vmatprep.subr.bf16.mxu0 %v937
    %1433 = vmatpush1.bf16.msra.mxu0 %v936
    %1434 = vmatprep.subr.bf16.mxu0 %v927
    %1435 = vmatpush1.bf16.msra.mxu0 %v926
    %1436 = vmatprep.subr.bf16.mxu0 %v917
    %1437 = vmatpush1.bf16.msra.mxu0 %v916
    %1438 = vmatprep.subr.bf16.mxu0 %v907
    %1439 = vmatpush1.bf16.msra.mxu0 %v906
    %1440 = vmatprep.subr.bf16.mxu0 %v897
    %1441 = vmatpush1.bf16.msra.mxu0 %v896
    %1442 = vmatprep.subr.bf16.mxu0 %v887
    %1443 = vmatpush1.bf16.msra.mxu0 %v886
    %1444 = vmatprep.subr.bf16.mxu0 %v1037
    %1445 = vmatpush2.bf16.msra.mxu0 %v1036
    %1446 = vmatprep.subr.bf16.mxu0 %v1027
    %1447 = vmatpush2.bf16.msra.mxu0 %v1026
    %1448 = vmatprep.subr.bf16.mxu0 %v1017
    %1449 = vmatpush2.bf16.msra.mxu0 %v1016
    %1450 = vmatprep.subr.bf16.mxu0 %v1007
    %1451 = vmatpush2.bf16.msra.mxu0 %v1006
    %1452 = vmatprep.subr.bf16.mxu0 %v997
    %1453 = vmatpush2.bf16.msra.mxu0 %v996
    %1454 = vmatprep.subr.bf16.mxu0 %v987
    %1455 = vmatpush2.bf16.msra.mxu0 %v986
    %1456 = vmatprep.subr.bf16.mxu0 %v977
    %1457 = vmatpush2.bf16.msra.mxu0 %v976
    %1458 = vmatprep.subr.bf16.mxu0 %v967
    %1459 = vmatpush2.bf16.msra.mxu0 %v966
    %1460 = vmatprep.mubr.bf16.mxu0 %v371
    %1461 = vmatmul.mubr.bf16.gmra.mxu0 %v370
    %v1462 = vpop.f32.mrf.mxu0
    %v1463 = vadd.f32 %v291, %v1462
    %v1464 = vpop.f32.mrf.mxu0
    %v1465 = vadd.f32 %v295, %v1464
    %v1466 = vpop.f32.mrf.mxu0
    %v1467 = vadd.f32 %v291, %v1466
    %v1468 = vpop.f32.mrf.mxu0
    %v1469 = vadd.f32 %v295, %v1468
    %1470 = vmatprep.mubr.bf16.mxu0 %v373
    %1471 = vmatmul.mubr.bf16.gmra.mxu0 %v372
    %v1472 = vpop.f32.mrf.mxu0
    %v1473 = vadd.f32 %v291, %v1472
    %v1474 = vpop.f32.mrf.mxu0
    %v1475 = vadd.f32 %v295, %v1474
    %v1476 = vpop.f32.mrf.mxu0
    %v1477 = vadd.f32 %v291, %v1476
    %v1478 = vpop.f32.mrf.mxu0
    %v1479 = vadd.f32 %v295, %v1478
    %1480 = vmatprep.mubr.bf16.mxu0 %v375
    %1481 = vmatmul.mubr.bf16.gmra.mxu0 %v374
    %v1482 = vpop.f32.mrf.mxu0
    %v1483 = vadd.f32 %v291, %v1482
    %v1484 = vpop.f32.mrf.mxu0
    %v1485 = vadd.f32 %v295, %v1484
    %v1486 = vpop.f32.mrf.mxu0
    %v1487 = vadd.f32 %v291, %v1486
    %v1488 = vpop.f32.mrf.mxu0
    %v1489 = vadd.f32 %v295, %v1488
    %1490 = vmatprep.mubr.bf16.mxu0 %v377
    %1491 = vmatmul.mubr.bf16.gmra.mxu0 %v376
    %v1492 = vpop.f32.mrf.mxu0
    %v1493 = vadd.f32 %v291, %v1492
    %v1494 = vpop.f32.mrf.mxu0
    %v1495 = vadd.f32 %v295, %v1494
    %v1496 = vpop.f32.mrf.mxu0
    %v1497 = vadd.f32 %v291, %v1496
    %v1498 = vpop.f32.mrf.mxu0
    %v1499 = vadd.f32 %v295, %v1498
    %1500 = vmatprep.mubr.bf16.mxu0 %v379
    %1501 = vmatmul.mubr.bf16.gmra.mxu0 %v378
    %v1502 = vpop.f32.mrf.mxu0
    %v1503 = vadd.f32 %v291, %v1502
    %v1504 = vpop.f32.mrf.mxu0
    %v1505 = vadd.f32 %v295, %v1504
    %v1506 = vpop.f32.mrf.mxu0
    %v1507 = vadd.f32 %v291, %v1506
    %v1508 = vpop.f32.mrf.mxu0
    %v1509 = vadd.f32 %v295, %v1508
    %1510 = vmatprep.mubr.bf16.mxu0 %v381
    %1511 = vmatmul.mubr.bf16.gmra.mxu0 %v380
    %v1512 = vpop.f32.mrf.mxu0
    %v1513 = vadd.f32 %v291, %v1512
    %v1514 = vpop.f32.mrf.mxu0
    %v1515 = vadd.f32 %v295, %v1514
    %v1516 = vpop.f32.mrf.mxu0
    %v1517 = vadd.f32 %v291, %v1516
    %v1518 = vpop.f32.mrf.mxu0
    %v1519 = vadd.f32 %v295, %v1518
    %1520 = vmatprep.mubr.bf16.mxu0 %v383
    %1521 = vmatmul.mubr.bf16.gmra.mxu0 %v382
    %v1522 = vpop.f32.mrf.mxu0
    %v1523 = vadd.f32 %v291, %v1522
    %v1524 = vpop.f32.mrf.mxu0
    %v1525 = vadd.f32 %v295, %v1524
    %v1526 = vpop.f32.mrf.mxu0
    %v1527 = vadd.f32 %v291, %v1526
    %v1528 = vpop.f32.mrf.mxu0
    %v1529 = vadd.f32 %v295, %v1528
    %1530 = vmatprep.mubr.bf16.mxu0 %v385
    %1531 = vmatmul.mubr.bf16.gmra.mxu0 %v384
    %v1532 = vpop.f32.mrf.mxu0
    %v1533 = vadd.f32 %v291, %v1532
    %v1534 = vpop.f32.mrf.mxu0
    %v1535 = vadd.f32 %v295, %v1534
    %v1536 = vpop.f32.mrf.mxu0
    %v1537 = vadd.f32 %v291, %v1536
    %v1538 = vpop.f32.mrf.mxu0
    %v1539 = vadd.f32 %v295, %v1538
    %1540 = vdwg.mxu0
    %1541 = vmatprep.subr.bf16.mxu0 %v959
    %1542 = vmatpush1.bf16.msra.mxu0 %v958
    %1543 = vmatprep.subr.bf16.mxu0 %v949
    %1544 = vmatpush1.bf16.msra.mxu0 %v948
    %1545 = vmatprep.subr.bf16.mxu0 %v939
    %1546 = vmatpush1.bf16.msra.mxu0 %v938
    %1547 = vmatprep.subr.bf16.mxu0 %v929
    %1548 = vmatpush1.bf16.msra.mxu0 %v928
    %1549 = vmatprep.subr.bf16.mxu0 %v919
    %1550 = vmatpush1.bf16.msra.mxu0 %v918
    %1551 = vmatprep.subr.bf16.mxu0 %v909
    %1552 = vmatpush1.bf16.msra.mxu0 %v908
    %1553 = vmatprep.subr.bf16.mxu0 %v899
    %1554 = vmatpush1.bf16.msra.mxu0 %v898
    %1555 = vmatprep.subr.bf16.mxu0 %v889
    %1556 = vmatpush1.bf16.msra.mxu0 %v888
    %1557 = vmatprep.subr.bf16.mxu0 %v1039
    %1558 = vmatpush2.bf16.msra.mxu0 %v1038
    %1559 = vmatprep.subr.bf16.mxu0 %v1029
    %1560 = vmatpush2.bf16.msra.mxu0 %v1028
    %1561 = vmatprep.subr.bf16.mxu0 %v1019
    %1562 = vmatpush2.bf16.msra.mxu0 %v1018
    %1563 = vmatprep.subr.bf16.mxu0 %v1009
    %1564 = vmatpush2.bf16.msra.mxu0 %v1008
    %1565 = vmatprep.subr.bf16.mxu0 %v999
    %1566 = vmatpush2.bf16.msra.mxu0 %v998
    %1567 = vmatprep.subr.bf16.mxu0 %v989
    %1568 = vmatpush2.bf16.msra.mxu0 %v988
    %1569 = vmatprep.subr.bf16.mxu0 %v979
    %1570 = vmatpush2.bf16.msra.mxu0 %v978
    %1571 = vmatprep.subr.bf16.mxu0 %v969
    %1572 = vmatpush2.bf16.msra.mxu0 %v968
    %1573 = vmatprep.mubr.bf16.mxu0 %v371
    %1574 = vmatmul.mubr.bf16.gmra.mxu0 %v370
    %v1575 = vpop.f32.mrf.mxu0
    %v1576 = vadd.f32 %v299, %v1575
    %v1577 = vpop.f32.mrf.mxu0
    %v1578 = vadd.f32 %v303, %v1577
    %v1579 = vpop.f32.mrf.mxu0
    %v1580 = vadd.f32 %v299, %v1579
    %v1581 = vpop.f32.mrf.mxu0
    %v1582 = vadd.f32 %v303, %v1581
    %1583 = vmatprep.mubr.bf16.mxu0 %v373
    %1584 = vmatmul.mubr.bf16.gmra.mxu0 %v372
    %v1585 = vpop.f32.mrf.mxu0
    %v1586 = vadd.f32 %v299, %v1585
    %v1587 = vpop.f32.mrf.mxu0
    %v1588 = vadd.f32 %v303, %v1587
    %v1589 = vpop.f32.mrf.mxu0
    %v1590 = vadd.f32 %v299, %v1589
    %v1591 = vpop.f32.mrf.mxu0
    %v1592 = vadd.f32 %v303, %v1591
    %1593 = vmatprep.mubr.bf16.mxu0 %v375
    %1594 = vmatmul.mubr.bf16.gmra.mxu0 %v374
    %v1595 = vpop.f32.mrf.mxu0
    %v1596 = vadd.f32 %v299, %v1595
    %v1597 = vpop.f32.mrf.mxu0
    %v1598 = vadd.f32 %v303, %v1597
    %v1599 = vpop.f32.mrf.mxu0
    %v1600 = vadd.f32 %v299, %v1599
    %v1601 = vpop.f32.mrf.mxu0
    %v1602 = vadd.f32 %v303, %v1601
    %1603 = vmatprep.mubr.bf16.mxu0 %v377
    %1604 = vmatmul.mubr.bf16.gmra.mxu0 %v376
    %v1605 = vpop.f32.mrf.mxu0
    %v1606 = vadd.f32 %v299, %v1605
    %v1607 = vpop.f32.mrf.mxu0
    %v1608 = vadd.f32 %v303, %v1607
    %v1609 = vpop.f32.mrf.mxu0
    %v1610 = vadd.f32 %v299, %v1609
    %v1611 = vpop.f32.mrf.mxu0
    %v1612 = vadd.f32 %v303, %v1611
    %1613 = vmatprep.mubr.bf16.mxu0 %v379
    %1614 = vmatmul.mubr.bf16.gmra.mxu0 %v378
    %v1615 = vpop.f32.mrf.mxu0
    %v1616 = vadd.f32 %v299, %v1615
    %v1617 = vpop.f32.mrf.mxu0
    %v1618 = vadd.f32 %v303, %v1617
    %v1619 = vpop.f32.mrf.mxu0
    %v1620 = vadd.f32 %v299, %v1619
    %v1621 = vpop.f32.mrf.mxu0
    %v1622 = vadd.f32 %v303, %v1621
    %1623 = vmatprep.mubr.bf16.mxu0 %v381
    %1624 = vmatmul.mubr.bf16.gmra.mxu0 %v380
    %v1625 = vpop.f32.mrf.mxu0
    %v1626 = vadd.f32 %v299, %v1625
    %v1627 = vpop.f32.mrf.mxu0
    %v1628 = vadd.f32 %v303, %v1627
    %v1629 = vpop.f32.mrf.mxu0
    %v1630 = vadd.f32 %v299, %v1629
    %v1631 = vpop.f32.mrf.mxu0
    %v1632 = vadd.f32 %v303, %v1631
    %1633 = vmatprep.mubr.bf16.mxu0 %v383
    %1634 = vmatmul.mubr.bf16.gmra.mxu0 %v382
    %v1635 = vpop.f32.mrf.mxu0
    %v1636 = vadd.f32 %v299, %v1635
    %v1637 = vpop.f32.mrf.mxu0
    %v1638 = vadd.f32 %v303, %v1637
    %v1639 = vpop.f32.mrf.mxu0
    %v1640 = vadd.f32 %v299, %v1639
    %v1641 = vpop.f32.mrf.mxu0
    %v1642 = vadd.f32 %v303, %v1641
    %1643 = vmatprep.mubr.bf16.mxu0 %v385
    %1644 = vmatmul.mubr.bf16.gmra.mxu0 %v384
    %v1645 = vpop.f32.mrf.mxu0
    %v1646 = vadd.f32 %v299, %v1645
    %v1647 = vpop.f32.mrf.mxu0
    %v1648 = vadd.f32 %v303, %v1647
    %v1649 = vpop.f32.mrf.mxu0
    %v1650 = vadd.f32 %v299, %v1649
    %v1651 = vpop.f32.mrf.mxu0
    %v1652 = vadd.f32 %v303, %v1651
    %1653 = vdwg.mxu0
    %1654 = vmatprep.subr.bf16.mxu0 %v961
    %1655 = vmatpush1.bf16.msra.mxu0 %v960
    %1656 = vmatprep.subr.bf16.mxu0 %v951
    %1657 = vmatpush1.bf16.msra.mxu0 %v950
    %1658 = vmatprep.subr.bf16.mxu0 %v941
    %1659 = vmatpush1.bf16.msra.mxu0 %v940
    %1660 = vmatprep.subr.bf16.mxu0 %v931
    %1661 = vmatpush1.bf16.msra.mxu0 %v930
    %1662 = vmatprep.subr.bf16.mxu0 %v921
    %1663 = vmatpush1.bf16.msra.mxu0 %v920
    %1664 = vmatprep.subr.bf16.mxu0 %v911
    %1665 = vmatpush1.bf16.msra.mxu0 %v910
    %1666 = vmatprep.subr.bf16.mxu0 %v901
    %1667 = vmatpush1.bf16.msra.mxu0 %v900
    %1668 = vmatprep.subr.bf16.mxu0 %v891
    %1669 = vmatpush1.bf16.msra.mxu0 %v890
    %1670 = vmatprep.subr.bf16.mxu0 %v1041
    %1671 = vmatpush2.bf16.msra.mxu0 %v1040
    %1672 = vmatprep.subr.bf16.mxu0 %v1031
    %1673 = vmatpush2.bf16.msra.mxu0 %v1030
    %1674 = vmatprep.subr.bf16.mxu0 %v1021
    %1675 = vmatpush2.bf16.msra.mxu0 %v1020
    %1676 = vmatprep.subr.bf16.mxu0 %v1011
    %1677 = vmatpush2.bf16.msra.mxu0 %v1010
    %1678 = vmatprep.subr.bf16.mxu0 %v1001
    %1679 = vmatpush2.bf16.msra.mxu0 %v1000
    %1680 = vmatprep.subr.bf16.mxu0 %v991
    %1681 = vmatpush2.bf16.msra.mxu0 %v990
    %1682 = vmatprep.subr.bf16.mxu0 %v981
    %1683 = vmatpush2.bf16.msra.mxu0 %v980
    %1684 = vmatprep.subr.bf16.mxu0 %v971
    %1685 = vmatpush2.bf16.msra.mxu0 %v970
    %1686 = vmatprep.mubr.bf16.mxu0 %v371
    %1687 = vmatmul.mubr.bf16.gmra.mxu0 %v370
    %v1688 = vpop.f32.mrf.mxu0
    %v1689 = vadd.f32 %v307, %v1688
    %v1690 = vpop.f32.mrf.mxu0
    %v1691 = vadd.f32 %v311, %v1690
    %v1692 = vpop.f32.mrf.mxu0
    %v1693 = vadd.f32 %v307, %v1692
    %v1694 = vpop.f32.mrf.mxu0
    %v1695 = vadd.f32 %v311, %v1694
    %1696 = vmatprep.mubr.bf16.mxu0 %v373
    %1697 = vmatmul.mubr.bf16.gmra.mxu0 %v372
    %v1698 = vpop.f32.mrf.mxu0
    %v1699 = vadd.f32 %v307, %v1698
    %v1700 = vpop.f32.mrf.mxu0
    %v1701 = vadd.f32 %v311, %v1700
    %v1702 = vpop.f32.mrf.mxu0
    %v1703 = vadd.f32 %v307, %v1702
    %v1704 = vpop.f32.mrf.mxu0
    %v1705 = vadd.f32 %v311, %v1704
    %1706 = vmatprep.mubr.bf16.mxu0 %v375
    %1707 = vmatmul.mubr.bf16.gmra.mxu0 %v374
    %v1708 = vpop.f32.mrf.mxu0
    %v1709 = vadd.f32 %v307, %v1708
    %v1710 = vpop.f32.mrf.mxu0
    %v1711 = vadd.f32 %v311, %v1710
    %v1712 = vpop.f32.mrf.mxu0
    %v1713 = vadd.f32 %v307, %v1712
    %v1714 = vpop.f32.mrf.mxu0
    %v1715 = vadd.f32 %v311, %v1714
    %1716 = vmatprep.mubr.bf16.mxu0 %v377
    %1717 = vmatmul.mubr.bf16.gmra.mxu0 %v376
    %v1718 = vpop.f32.mrf.mxu0
    %v1719 = vadd.f32 %v307, %v1718
    %v1720 = vpop.f32.mrf.mxu0
    %v1721 = vadd.f32 %v311, %v1720
    %v1722 = vpop.f32.mrf.mxu0
    %v1723 = vadd.f32 %v307, %v1722
    %v1724 = vpop.f32.mrf.mxu0
    %v1725 = vadd.f32 %v311, %v1724
    %1726 = vmatprep.mubr.bf16.mxu0 %v379
    %1727 = vmatmul.mubr.bf16.gmra.mxu0 %v378
    %v1728 = vpop.f32.mrf.mxu0
    %v1729 = vadd.f32 %v307, %v1728
    %v1730 = vpop.f32.mrf.mxu0
    %v1731 = vadd.f32 %v311, %v1730
    %v1732 = vpop.f32.mrf.mxu0
    %v1733 = vadd.f32 %v307, %v1732
    %v1734 = vpop.f32.mrf.mxu0
    %v1735 = vadd.f32 %v311, %v1734
    %1736 = vmatprep.mubr.bf16.mxu0 %v381
    %1737 = vmatmul.mubr.bf16.gmra.mxu0 %v380
    %v1738 = vpop.f32.mrf.mxu0
    %v1739 = vadd.f32 %v307, %v1738
    %v1740 = vpop.f32.mrf.mxu0
    %v1741 = vadd.f32 %v311, %v1740
    %v1742 = vpop.f32.mrf.mxu0
    %v1743 = vadd.f32 %v307, %v1742
    %v1744 = vpop.f32.mrf.mxu0
    %v1745 = vadd.f32 %v311, %v1744
    %1746 = vmatprep.mubr.bf16.mxu0 %v383
    %1747 = vmatmul.mubr.bf16.gmra.mxu0 %v382
    %v1748 = vpop.f32.mrf.mxu0
    %v1749 = vadd.f32 %v307, %v1748
    %v1750 = vpop.f32.mrf.mxu0
    %v1751 = vadd.f32 %v311, %v1750
    %v1752 = vpop.f32.mrf.mxu0
    %v1753 = vadd.f32 %v307, %v1752
    %v1754 = vpop.f32.mrf.mxu0
    %v1755 = vadd.f32 %v311, %v1754
    %1756 = vmatprep.mubr.bf16.mxu0 %v385
    %1757 = vmatmul.mubr.bf16.gmra.mxu0 %v384
    %v1758 = vpop.f32.mrf.mxu0
    %v1759 = vadd.f32 %v307, %v1758
    %v1760 = vpop.f32.mrf.mxu0
    %v1761 = vadd.f32 %v311, %v1760
    %v1762 = vpop.f32.mrf.mxu0
    %v1763 = vadd.f32 %v307, %v1762
    %v1764 = vpop.f32.mrf.mxu0
    %v1765 = vadd.f32 %v311, %v1764
    %1766 = vdwg.mxu0
    %v1767 = vmax.f32 %v1237, %v1350
    %v1768 = vmax.f32 %v1239, %v1352
    %v1769 = vmax.f32 %v1241, %v1354
    %v1770 = vmax.f32 %v1243, %v1356
    %v1771 = vmax.f32 %v1247, %v1360
    %v1772 = vmax.f32 %v1249, %v1362
    %v1773 = vmax.f32 %v1251, %v1364
    %v1774 = vmax.f32 %v1253, %v1366
    %v1775 = vmax.f32 %v1257, %v1370
    %v1776 = vmax.f32 %v1259, %v1372
    %v1777 = vmax.f32 %v1261, %v1374
    %v1778 = vmax.f32 %v1263, %v1376
    %v1779 = vmax.f32 %v1267, %v1380
    %v1780 = vmax.f32 %v1269, %v1382
    %v1781 = vmax.f32 %v1271, %v1384
    %v1782 = vmax.f32 %v1273, %v1386
    %v1783 = vmax.f32 %v1277, %v1390
    %v1784 = vmax.f32 %v1279, %v1392
    %v1785 = vmax.f32 %v1281, %v1394
    %v1786 = vmax.f32 %v1283, %v1396
    %v1787 = vmax.f32 %v1287, %v1400
    %v1788 = vmax.f32 %v1289, %v1402
    %v1789 = vmax.f32 %v1291, %v1404
    %v1790 = vmax.f32 %v1293, %v1406
    %v1791 = vmax.f32 %v1297, %v1410
    %v1792 = vmax.f32 %v1299, %v1412
    %v1793 = vmax.f32 %v1301, %v1414
    %v1794 = vmax.f32 %v1303, %v1416
    %v1795 = vmax.f32 %v1307, %v1420
    %v1796 = vmax.f32 %v1309, %v1422
    %v1797 = vmax.f32 %v1311, %v1424
    %v1798 = vmax.f32 %v1313, %v1426
    %v1799 = vmax.f32 %v1767, %v1463
    %v1800 = vmax.f32 %v1768, %v1465
    %v1801 = vmax.f32 %v1769, %v1467
    %v1802 = vmax.f32 %v1770, %v1469
    %v1803 = vmax.f32 %v1771, %v1473
    %v1804 = vmax.f32 %v1772, %v1475
    %v1805 = vmax.f32 %v1773, %v1477
    %v1806 = vmax.f32 %v1774, %v1479
    %v1807 = vmax.f32 %v1775, %v1483
    %v1808 = vmax.f32 %v1776, %v1485
    %v1809 = vmax.f32 %v1777, %v1487
    %v1810 = vmax.f32 %v1778, %v1489
    %v1811 = vmax.f32 %v1779, %v1493
    %v1812 = vmax.f32 %v1780, %v1495
    %v1813 = vmax.f32 %v1781, %v1497
    %v1814 = vmax.f32 %v1782, %v1499
    %v1815 = vmax.f32 %v1783, %v1503
    %v1816 = vmax.f32 %v1784, %v1505
    %v1817 = vmax.f32 %v1785, %v1507
    %v1818 = vmax.f32 %v1786, %v1509
    %v1819 = vmax.f32 %v1787, %v1513
    %v1820 = vmax.f32 %v1788, %v1515
    %v1821 = vmax.f32 %v1789, %v1517
    %v1822 = vmax.f32 %v1790, %v1519
    %v1823 = vmax.f32 %v1791, %v1523
    %v1824 = vmax.f32 %v1792, %v1525
    %v1825 = vmax.f32 %v1793, %v1527
    %v1826 = vmax.f32 %v1794, %v1529
    %v1827 = vmax.f32 %v1795, %v1533
    %v1828 = vmax.f32 %v1796, %v1535
    %v1829 = vmax.f32 %v1797, %v1537
    %v1830 = vmax.f32 %v1798, %v1539
    %v1831 = vmax.f32 %v1799, %v1576
    %v1832 = vmax.f32 %v1800, %v1578
    %v1833 = vmax.f32 %v1801, %v1580
    %v1834 = vmax.f32 %v1802, %v1582
    %v1835 = vmax.f32 %v1803, %v1586
    %v1836 = vmax.f32 %v1804, %v1588
    %v1837 = vmax.f32 %v1805, %v1590
    %v1838 = vmax.f32 %v1806, %v1592
    %v1839 = vmax.f32 %v1807, %v1596
    %v1840 = vmax.f32 %v1808, %v1598
    %v1841 = vmax.f32 %v1809, %v1600
    %v1842 = vmax.f32 %v1810, %v1602
    %v1843 = vmax.f32 %v1811, %v1606
    %v1844 = vmax.f32 %v1812, %v1608
    %v1845 = vmax.f32 %v1813, %v1610
    %v1846 = vmax.f32 %v1814, %v1612
    %v1847 = vmax.f32 %v1815, %v1616
    %v1848 = vmax.f32 %v1816, %v1618
    %v1849 = vmax.f32 %v1817, %v1620
    %v1850 = vmax.f32 %v1818, %v1622
    %v1851 = vmax.f32 %v1819, %v1626
    %v1852 = vmax.f32 %v1820, %v1628
    %v1853 = vmax.f32 %v1821, %v1630
    %v1854 = vmax.f32 %v1822, %v1632
    %v1855 = vmax.f32 %v1823, %v1636
    %v1856 = vmax.f32 %v1824, %v1638
    %v1857 = vmax.f32 %v1825, %v1640
    %v1858 = vmax.f32 %v1826, %v1642
    %v1859 = vmax.f32 %v1827, %v1646
    %v1860 = vmax.f32 %v1828, %v1648
    %v1861 = vmax.f32 %v1829, %v1650
    %v1862 = vmax.f32 %v1830, %v1652
    %v1863 = vmax.f32 %v1831, %v1689
    %v1864 = vmax.f32 %v1832, %v1691
    %v1865 = vmax.f32 %v1833, %v1693
    %v1866 = vmax.f32 %v1834, %v1695
    %v1867 = vmax.f32 %v1835, %v1699
    %v1868 = vmax.f32 %v1836, %v1701
    %v1869 = vmax.f32 %v1837, %v1703
    %v1870 = vmax.f32 %v1838, %v1705
    %v1871 = vmax.f32 %v1839, %v1709
    %v1872 = vmax.f32 %v1840, %v1711
    %v1873 = vmax.f32 %v1841, %v1713
    %v1874 = vmax.f32 %v1842, %v1715
    %v1875 = vmax.f32 %v1843, %v1719
    %v1876 = vmax.f32 %v1844, %v1721
    %v1877 = vmax.f32 %v1845, %v1723
    %v1878 = vmax.f32 %v1846, %v1725
    %v1879 = vmax.f32 %v1847, %v1729
    %v1880 = vmax.f32 %v1848, %v1731
    %v1881 = vmax.f32 %v1849, %v1733
    %v1882 = vmax.f32 %v1850, %v1735
    %v1883 = vmax.f32 %v1851, %v1739
    %v1884 = vmax.f32 %v1852, %v1741
    %v1885 = vmax.f32 %v1853, %v1743
    %v1886 = vmax.f32 %v1854, %v1745
    %v1887 = vmax.f32 %v1855, %v1749
    %v1888 = vmax.f32 %v1856, %v1751
    %v1889 = vmax.f32 %v1857, %v1753
    %v1890 = vmax.f32 %v1858, %v1755
    %v1891 = vmax.f32 %v1859, %v1759
    %v1892 = vmax.f32 %v1860, %v1761
    %v1893 = vmax.f32 %v1861, %v1763
    %v1894 = vmax.f32 %v1862, %v1765
    %v1895 = vpack.c.bf16 %v1865, %v1863
    %v1896 = vpack.c.bf16 %v1866, %v1864
    %v1897 = vpack.c.bf16 %v1869, %v1867
    %v1898 = vpack.c.bf16 %v1870, %v1868
    %v1899 = vpack.c.bf16 %v1873, %v1871
    %v1900 = vpack.c.bf16 %v1874, %v1872
    %v1901 = vpack.c.bf16 %v1877, %v1875
    %v1902 = vpack.c.bf16 %v1878, %v1876
    %v1903 = vpack.c.bf16 %v1881, %v1879
    %v1904 = vpack.c.bf16 %v1882, %v1880
    %v1905 = vpack.c.bf16 %v1885, %v1883
    %v1906 = vpack.c.bf16 %v1886, %v1884
    %v1907 = vpack.c.bf16 %v1889, %v1887
    %v1908 = vpack.c.bf16 %v1890, %v1888
    %v1909 = vpack.c.bf16 %v1893, %v1891
    %v1910 = vpack.c.bf16 %v1894, %v1892
    %v1911 = vld [vmem:[#allocation8] sm:$0xff]
    %v1912 = vld [vmem:[#allocation8 + $0x8] sm:$0xff]
    %v1913 = vld [vmem:[#allocation8 + $0x10] sm:$0xff]
    %v1914 = vld [vmem:[#allocation8 + $0x18] sm:$0xff]
    %v1915 = vld [vmem:[#allocation8 + $0x20] sm:$0xff]
    %v1916 = vld [vmem:[#allocation8 + $0x28] sm:$0xff]
    %v1917 = vld [vmem:[#allocation8 + $0x30] sm:$0xff]
    %v1918 = vld [vmem:[#allocation8 + $0x38] sm:$0xff]
    %v1919 = vld [vmem:[#allocation8 + $0x40] sm:$0xff]
    %v1920 = vld [vmem:[#allocation8 + $0x48] sm:$0xff]
    %v1921 = vld [vmem:[#allocation8 + $0x50] sm:$0xff]
    %v1922 = vld [vmem:[#allocation8 + $0x58] sm:$0xff]
    %v1923 = vld [vmem:[#allocation8 + $0x60] sm:$0xff]
    %v1924 = vld [vmem:[#allocation8 + $0x68] sm:$0xff]
    %v1925 = vld [vmem:[#allocation8 + $0x70] sm:$0xff]
    %v1926 = vld [vmem:[#allocation8 + $0x78] sm:$0xff]
    %v1927 = vld [vmem:[#allocation8 + $0x80] sm:$0xff]
    %v1928 = vld [vmem:[#allocation8 + $0x88] sm:$0xff]
    %v1929 = vld [vmem:[#allocation8 + $0x90] sm:$0xff]
    %v1930 = vld [vmem:[#allocation8 + $0x98] sm:$0xff]
    %v1931 = vld [vmem:[#allocation8 + $0xa0] sm:$0xff]
    %v1932 = vld [vmem:[#allocation8 + $0xa8] sm:$0xff]
    %v1933 = vld [vmem:[#allocation8 + $0xb0] sm:$0xff]
    %v1934 = vld [vmem:[#allocation8 + $0xb8] sm:$0xff]
    %v1935 = vld [vmem:[#allocation8 + $0xc0] sm:$0xff]
    %v1936 = vld [vmem:[#allocation8 + $0xc8] sm:$0xff]
    %v1937 = vld [vmem:[#allocation8 + $0xd0] sm:$0xff]
    %v1938 = vld [vmem:[#allocation8 + $0xd8] sm:$0xff]
    %v1939 = vld [vmem:[#allocation8 + $0xe0] sm:$0xff]
    %v1940 = vld [vmem:[#allocation8 + $0xe8] sm:$0xff]
    %v1941 = vld [vmem:[#allocation8 + $0xf0] sm:$0xff]
    %v1942 = vld [vmem:[#allocation8 + $0xf8] sm:$0xff]
    %v1943 = vld [vmem:[#allocation8 + $0x100] sm:$0xff]
    %v1944 = vld [vmem:[#allocation8 + $0x108] sm:$0xff]
    %v1945 = vld [vmem:[#allocation8 + $0x110] sm:$0xff]
    %v1946 = vld [vmem:[#allocation8 + $0x118] sm:$0xff]
    %v1947 = vld [vmem:[#allocation8 + $0x120] sm:$0xff]
    %v1948 = vld [vmem:[#allocation8 + $0x128] sm:$0xff]
    %v1949 = vld [vmem:[#allocation8 + $0x130] sm:$0xff]
    %v1950 = vld [vmem:[#allocation8 + $0x138] sm:$0xff]
    %v1951 = vld [vmem:[#allocation8 + $0x140] sm:$0xff]
    %v1952 = vld [vmem:[#allocation8 + $0x148] sm:$0xff]
    %v1953 = vld [vmem:[#allocation8 + $0x150] sm:$0xff]
    %v1954 = vld [vmem:[#allocation8 + $0x158] sm:$0xff]
    %v1955 = vld [vmem:[#allocation8 + $0x160] sm:$0xff]
    %v1956 = vld [vmem:[#allocation8 + $0x168] sm:$0xff]
    %v1957 = vld [vmem:[#allocation8 + $0x170] sm:$0xff]
    %v1958 = vld [vmem:[#allocation8 + $0x178] sm:$0xff]
    %v1959 = vld [vmem:[#allocation8 + $0x180] sm:$0xff]
    %v1960 = vld [vmem:[#allocation8 + $0x188] sm:$0xff]
    %v1961 = vld [vmem:[#allocation8 + $0x190] sm:$0xff]
    %v1962 = vld [vmem:[#allocation8 + $0x198] sm:$0xff]
    %v1963 = vld [vmem:[#allocation8 + $0x1a0] sm:$0xff]
    %v1964 = vld [vmem:[#allocation8 + $0x1a8] sm:$0xff]
    %v1965 = vld [vmem:[#allocation8 + $0x1b0] sm:$0xff]
    %v1966 = vld [vmem:[#allocation8 + $0x1b8] sm:$0xff]
    %v1967 = vld [vmem:[#allocation8 + $0x1c0] sm:$0xff]
    %v1968 = vld [vmem:[#allocation8 + $0x1c8] sm:$0xff]
    %v1969 = vld [vmem:[#allocation8 + $0x1d0] sm:$0xff]
    %v1970 = vld [vmem:[#allocation8 + $0x1d8] sm:$0xff]
    %v1971 = vld [vmem:[#allocation8 + $0x1e0] sm:$0xff]
    %v1972 = vld [vmem:[#allocation8 + $0x1e8] sm:$0xff]
    %v1973 = vld [vmem:[#allocation8 + $0x1f0] sm:$0xff]
    %v1974 = vld [vmem:[#allocation8 + $0x1f8] sm:$0xff]
    %v1975 = vld [vmem:[#allocation8 + $0x200] sm:$0xff]
    %v1976 = vld [vmem:[#allocation8 + $0x208] sm:$0xff]
    %v1977 = vld [vmem:[#allocation8 + $0x210] sm:$0xff]
    %v1978 = vld [vmem:[#allocation8 + $0x218] sm:$0xff]
    %v1979 = vld [vmem:[#allocation8 + $0x220] sm:$0xff]
    %v1980 = vld [vmem:[#allocation8 + $0x228] sm:$0xff]
    %v1981 = vld [vmem:[#allocation8 + $0x230] sm:$0xff]
    %v1982 = vld [vmem:[#allocation8 + $0x238] sm:$0xff]
    %v1983 = vld [vmem:[#allocation8 + $0x240] sm:$0xff]
    %v1984 = vld [vmem:[#allocation8 + $0x248] sm:$0xff]
    %v1985 = vld [vmem:[#allocation8 + $0x250] sm:$0xff]
    %v1986 = vld [vmem:[#allocation8 + $0x258] sm:$0xff]
    %v1987 = vld [vmem:[#allocation8 + $0x260] sm:$0xff]
    %v1988 = vld [vmem:[#allocation8 + $0x268] sm:$0xff]
    %v1989 = vld [vmem:[#allocation8 + $0x270] sm:$0xff]
    %v1990 = vld [vmem:[#allocation8 + $0x278] sm:$0xff]
    %v1991 = vld [vmem:[#allocation8 + $0x280] sm:$0xff]
    %v1992 = vld [vmem:[#allocation8 + $0x288] sm:$0xff]
    %v1993 = vld [vmem:[#allocation8 + $0x290] sm:$0xff]
    %v1994 = vld [vmem:[#allocation8 + $0x298] sm:$0xff]
    %v1995 = vld [vmem:[#allocation8 + $0x2a0] sm:$0xff]
    %v1996 = vld [vmem:[#allocation8 + $0x2a8] sm:$0xff]
    %v1997 = vld [vmem:[#allocation8 + $0x2b0] sm:$0xff]
    %v1998 = vld [vmem:[#allocation8 + $0x2b8] sm:$0xff]
    %v1999 = vld [vmem:[#allocation8 + $0x2c0] sm:$0xff]
    %v2000 = vld [vmem:[#allocation8 + $0x2c8] sm:$0xff]
    %v2001 = vld [vmem:[#allocation8 + $0x2d0] sm:$0xff]
    %v2002 = vld [vmem:[#allocation8 + $0x2d8] sm:$0xff]
    %v2003 = vld [vmem:[#allocation8 + $0x2e0] sm:$0xff]
    %v2004 = vld [vmem:[#allocation8 + $0x2e8] sm:$0xff]
    %v2005 = vld [vmem:[#allocation8 + $0x2f0] sm:$0xff]
    %v2006 = vld [vmem:[#allocation8 + $0x2f8] sm:$0xff]
    %v2007 = vld [vmem:[#allocation8 + $0x300] sm:$0xff]
    %v2008 = vld [vmem:[#allocation8 + $0x308] sm:$0xff]
    %v2009 = vld [vmem:[#allocation8 + $0x310] sm:$0xff]
    %v2010 = vld [vmem:[#allocation8 + $0x318] sm:$0xff]
    %v2011 = vld [vmem:[#allocation8 + $0x320] sm:$0xff]
    %v2012 = vld [vmem:[#allocation8 + $0x328] sm:$0xff]
    %v2013 = vld [vmem:[#allocation8 + $0x330] sm:$0xff]
    %v2014 = vld [vmem:[#allocation8 + $0x338] sm:$0xff]
    %v2015 = vld [vmem:[#allocation8 + $0x340] sm:$0xff]
    %v2016 = vld [vmem:[#allocation8 + $0x348] sm:$0xff]
    %v2017 = vld [vmem:[#allocation8 + $0x350] sm:$0xff]
    %v2018 = vld [vmem:[#allocation8 + $0x358] sm:$0xff]
    %v2019 = vld [vmem:[#allocation8 + $0x360] sm:$0xff]
    %v2020 = vld [vmem:[#allocation8 + $0x368] sm:$0xff]
    %v2021 = vld [vmem:[#allocation8 + $0x370] sm:$0xff]
    %v2022 = vld [vmem:[#allocation8 + $0x378] sm:$0xff]
    %v2023 = vld [vmem:[#allocation8 + $0x380] sm:$0xff]
    %v2024 = vld [vmem:[#allocation8 + $0x388] sm:$0xff]
    %v2025 = vld [vmem:[#allocation8 + $0x390] sm:$0xff]
    %v2026 = vld [vmem:[#allocation8 + $0x398] sm:$0xff]
    %v2027 = vld [vmem:[#allocation8 + $0x3a0] sm:$0xff]
    %v2028 = vld [vmem:[#allocation8 + $0x3a8] sm:$0xff]
    %v2029 = vld [vmem:[#allocation8 + $0x3b0] sm:$0xff]
    %v2030 = vld [vmem:[#allocation8 + $0x3b8] sm:$0xff]
    %v2031 = vld [vmem:[#allocation8 + $0x3c0] sm:$0xff]
    %v2032 = vld [vmem:[#allocation8 + $0x3c8] sm:$0xff]
    %v2033 = vld [vmem:[#allocation8 + $0x3d0] sm:$0xff]
    %v2034 = vld [vmem:[#allocation8 + $0x3d8] sm:$0xff]
    %v2035 = vld [vmem:[#allocation8 + $0x3e0] sm:$0xff]
    %v2036 = vld [vmem:[#allocation8 + $0x3e8] sm:$0xff]
    %v2037 = vld [vmem:[#allocation8 + $0x3f0] sm:$0xff]
    %v2038 = vld [vmem:[#allocation8 + $0x3f8] sm:$0xff]
    %v2039 = vld [vmem:[#allocation8 + $0x400] sm:$0xff]
    %v2040 = vld [vmem:[#allocation8 + $0x408] sm:$0xff]
    %v2041 = vld [vmem:[#allocation8 + $0x410] sm:$0xff]
    %v2042 = vld [vmem:[#allocation8 + $0x418] sm:$0xff]
    %v2043 = vld [vmem:[#allocation8 + $0x420] sm:$0xff]
    %v2044 = vld [vmem:[#allocation8 + $0x428] sm:$0xff]
    %v2045 = vld [vmem:[#allocation8 + $0x430] sm:$0xff]
    %v2046 = vld [vmem:[#allocation8 + $0x438] sm:$0xff]
    %v2047 = vld [vmem:[#allocation8 + $0x440] sm:$0xff]
    %v2048 = vld [vmem:[#allocation8 + $0x448] sm:$0xff]
    %v2049 = vld [vmem:[#allocation8 + $0x450] sm:$0xff]
    %v2050 = vld [vmem:[#allocation8 + $0x458] sm:$0xff]
    %v2051 = vld [vmem:[#allocation8 + $0x460] sm:$0xff]
    %v2052 = vld [vmem:[#allocation8 + $0x468] sm:$0xff]
    %v2053 = vld [vmem:[#allocation8 + $0x470] sm:$0xff]
    %v2054 = vld [vmem:[#allocation8 + $0x478] sm:$0xff]
    %v2055 = vld [vmem:[#allocation8 + $0x480] sm:$0xff]
    %v2056 = vld [vmem:[#allocation8 + $0x488] sm:$0xff]
    %v2057 = vld [vmem:[#allocation8 + $0x490] sm:$0xff]
    %v2058 = vld [vmem:[#allocation8 + $0x498] sm:$0xff]
    %v2059 = vld [vmem:[#allocation8 + $0x4a0] sm:$0xff]
    %v2060 = vld [vmem:[#allocation8 + $0x4a8] sm:$0xff]
    %v2061 = vld [vmem:[#allocation8 + $0x4b0] sm:$0xff]
    %v2062 = vld [vmem:[#allocation8 + $0x4b8] sm:$0xff]
    %v2063 = vld [vmem:[#allocation8 + $0x4c0] sm:$0xff]
    %v2064 = vld [vmem:[#allocation8 + $0x4c8] sm:$0xff]
    %v2065 = vld [vmem:[#allocation8 + $0x4d0] sm:$0xff]
    %v2066 = vld [vmem:[#allocation8 + $0x4d8] sm:$0xff]
    %v2067 = vld [vmem:[#allocation8 + $0x4e0] sm:$0xff]
    %v2068 = vld [vmem:[#allocation8 + $0x4e8] sm:$0xff]
    %v2069 = vld [vmem:[#allocation8 + $0x4f0] sm:$0xff]
    %v2070 = vld [vmem:[#allocation8 + $0x4f8] sm:$0xff]
    %v2071 = vld [vmem:[#allocation10] sm:$0xff]
    %v2072 = vld [vmem:[#allocation10 + $0x8] sm:$0x3]
    %v2075 = vlaneseq
    %v2076 = vshrl.u32 %v2075, 7
    %v2077 = vsub.s32 0, %v2076
    %v2078 = vrot.slane %v2071, %v2077
    %v2079 = vlaneseq
    %v2080 = vshrl.u32 %v2079, 7
    %v2081 = vsub.s32 1, %v2080
    %v2082 = vrot.slane %v2071, %v2081
    %v2083 = vlaneseq
    %v2084 = vshrl.u32 %v2083, 7
    %v2085 = vsub.s32 2, %v2084
    %v2086 = vrot.slane %v2071, %v2085
    %v2087 = vlaneseq
    %v2088 = vshrl.u32 %v2087, 7
    %v2089 = vsub.s32 3, %v2088
    %v2090 = vrot.slane %v2071, %v2089
    %v2091 = vlaneseq
    %v2092 = vshrl.u32 %v2091, 7
    %v2093 = vsub.s32 4, %v2092
    %v2094 = vrot.slane %v2071, %v2093
    %v2095 = vlaneseq
    %v2096 = vshrl.u32 %v2095, 7
    %v2097 = vsub.s32 5, %v2096
    %v2098 = vrot.slane %v2071, %v2097
    %v2099 = vlaneseq
    %v2100 = vshrl.u32 %v2099, 7
    %v2101 = vsub.s32 6, %v2100
    %v2102 = vrot.slane %v2071, %v2101
    %v2103 = vlaneseq
    %v2104 = vshrl.u32 %v2103, 7
    %v2105 = vsub.s32 7, %v2104
    %v2106 = vrot.slane %v2071, %v2105
    %v2107 = vlaneseq
    %v2108 = vshrl.u32 %v2107, 7
    %v2109 = vsub.s32 0, %v2108
    %v2110 = vrot.slane %v2072, %v2109
    %v2111 = vlaneseq
    %v2112 = vshrl.u32 %v2111, 7
    %v2113 = vsub.s32 1, %v2112
    %v2114 = vrot.slane %v2072, %v2113
    %v2285 = vunpack.c.l.b16 %v1911
    %v2286 = vunpack.c.h.b16 %v1911
    %v2287 = vunpack.c.l.b16 %v1912
    %v2288 = vunpack.c.h.b16 %v1912
    %v2289 = vunpack.c.l.b16 %v1913
    %v2290 = vunpack.c.h.b16 %v1913
    %v2291 = vunpack.c.l.b16 %v1914
    %v2292 = vunpack.c.h.b16 %v1914
    %v2293 = vunpack.c.l.b16 %v1915
    %v2294 = vunpack.c.h.b16 %v1915
    %v2295 = vunpack.c.l.b16 %v1916
    %v2296 = vunpack.c.h.b16 %v1916
    %v2297 = vunpack.c.l.b16 %v1917
    %v2298 = vunpack.c.h.b16 %v1917
    %v2299 = vunpack.c.l.b16 %v1918
    %v2300 = vunpack.c.h.b16 %v1918
    %v2301 = vunpack.c.l.b16 %v1919
    %v2302 = vunpack.c.h.b16 %v1919
    %v2303 = vunpack.c.l.b16 %v1920
    %v2304 = vunpack.c.h.b16 %v1920
    %v2305 = vunpack.c.l.b16 %v1921
    %v2306 = vunpack.c.h.b16 %v1921
    %v2307 = vunpack.c.l.b16 %v1922
    %v2308 = vunpack.c.h.b16 %v1922
    %v2309 = vunpack.c.l.b16 %v1923
    %v2310 = vunpack.c.h.b16 %v1923
    %v2311 = vunpack.c.l.b16 %v1924
    %v2312 = vunpack.c.h.b16 %v1924
    %v2313 = vunpack.c.l.b16 %v1925
    %v2314 = vunpack.c.h.b16 %v1925
    %v2315 = vunpack.c.l.b16 %v1926
    %v2316 = vunpack.c.h.b16 %v1926
    %v2317 = vunpack.c.l.b16 %v1927
    %v2318 = vunpack.c.h.b16 %v1927
    %v2319 = vunpack.c.l.b16 %v1928
    %v2320 = vunpack.c.h.b16 %v1928
    %v2321 = vunpack.c.l.b16 %v1929
    %v2322 = vunpack.c.h.b16 %v1929
    %v2323 = vunpack.c.l.b16 %v1930
    %v2324 = vunpack.c.h.b16 %v1930
    %v2325 = vunpack.c.l.b16 %v1931
    %v2326 = vunpack.c.h.b16 %v1931
    %v2327 = vunpack.c.l.b16 %v1932
    %v2328 = vunpack.c.h.b16 %v1932
    %v2329 = vunpack.c.l.b16 %v1933
    %v2330 = vunpack.c.h.b16 %v1933
    %v2331 = vunpack.c.l.b16 %v1934
    %v2332 = vunpack.c.h.b16 %v1934
    %v2333 = vunpack.c.l.b16 %v1935
    %v2334 = vunpack.c.h.b16 %v1935
    %v2335 = vunpack.c.l.b16 %v1936
    %v2336 = vunpack.c.h.b16 %v1936
    %v2337 = vunpack.c.l.b16 %v1937
    %v2338 = vunpack.c.h.b16 %v1937
    %v2339 = vunpack.c.l.b16 %v1938
    %v2340 = vunpack.c.h.b16 %v1938
    %v2341 = vunpack.c.l.b16 %v1939
    %v2342 = vunpack.c.h.b16 %v1939
    %v2343 = vunpack.c.l.b16 %v1940
    %v2344 = vunpack.c.h.b16 %v1940
    %v2345 = vunpack.c.l.b16 %v1941
    %v2346 = vunpack.c.h.b16 %v1941
    %v2347 = vunpack.c.l.b16 %v1942
    %v2348 = vunpack.c.h.b16 %v1942
    %v2349 = vunpack.c.l.b16 %v1943
    %v2350 = vunpack.c.h.b16 %v1943
    %v2351 = vunpack.c.l.b16 %v1944
    %v2352 = vunpack.c.h.b16 %v1944
    %v2353 = vunpack.c.l.b16 %v1945
    %v2354 = vunpack.c.h.b16 %v1945
    %v2355 = vunpack.c.l.b16 %v1946
    %v2356 = vunpack.c.h.b16 %v1946
    %v2357 = vunpack.c.l.b16 %v1947
    %v2358 = vunpack.c.h.b16 %v1947
    %v2359 = vunpack.c.l.b16 %v1948
    %v2360 = vunpack.c.h.b16 %v1948
    %v2361 = vunpack.c.l.b16 %v1949
    %v2362 = vunpack.c.h.b16 %v1949
    %v2363 = vunpack.c.l.b16 %v1950
    %v2364 = vunpack.c.h.b16 %v1950
    %v2365 = vunpack.c.l.b16 %v1951
    %v2366 = vunpack.c.h.b16 %v1951
    %v2367 = vunpack.c.l.b16 %v1952
    %v2368 = vunpack.c.h.b16 %v1952
    %v2369 = vunpack.c.l.b16 %v1953
    %v2370 = vunpack.c.h.b16 %v1953
    %v2371 = vunpack.c.l.b16 %v1954
    %v2372 = vunpack.c.h.b16 %v1954
    %v2373 = vunpack.c.l.b16 %v1955
    %v2374 = vunpack.c.h.b16 %v1955
    %v2375 = vunpack.c.l.b16 %v1956
    %v2376 = vunpack.c.h.b16 %v1956
    %v2377 = vunpack.c.l.b16 %v1957
    %v2378 = vunpack.c.h.b16 %v1957
    %v2379 = vunpack.c.l.b16 %v1958
    %v2380 = vunpack.c.h.b16 %v1958
    %v2381 = vunpack.c.l.b16 %v1959
    %v2382 = vunpack.c.h.b16 %v1959
    %v2383 = vunpack.c.l.b16 %v1960
    %v2384 = vunpack.c.h.b16 %v1960
    %v2385 = vunpack.c.l.b16 %v1961
    %v2386 = vunpack.c.h.b16 %v1961
    %v2387 = vunpack.c.l.b16 %v1962
    %v2388 = vunpack.c.h.b16 %v1962
    %v2389 = vunpack.c.l.b16 %v1963
    %v2390 = vunpack.c.h.b16 %v1963
    %v2391 = vunpack.c.l.b16 %v1964
    %v2392 = vunpack.c.h.b16 %v1964
    %v2393 = vunpack.c.l.b16 %v1965
    %v2394 = vunpack.c.h.b16 %v1965
    %v2395 = vunpack.c.l.b16 %v1966
    %v2396 = vunpack.c.h.b16 %v1966
    %v2397 = vunpack.c.l.b16 %v1967
    %v2398 = vunpack.c.h.b16 %v1967
    %v2399 = vunpack.c.l.b16 %v1968
    %v2400 = vunpack.c.h.b16 %v1968
    %v2401 = vunpack.c.l.b16 %v1969
    %v2402 = vunpack.c.h.b16 %v1969
    %v2403 = vunpack.c.l.b16 %v1970
    %v2404 = vunpack.c.h.b16 %v1970
    %v2405 = vunpack.c.l.b16 %v1971
    %v2406 = vunpack.c.h.b16 %v1971
    %v2407 = vunpack.c.l.b16 %v1972
    %v2408 = vunpack.c.h.b16 %v1972
    %v2409 = vunpack.c.l.b16 %v1973
    %v2410 = vunpack.c.h.b16 %v1973
    %v2411 = vunpack.c.l.b16 %v1974
    %v2412 = vunpack.c.h.b16 %v1974
    %v2413 = vunpack.c.l.b16 %v1975
    %v2414 = vunpack.c.h.b16 %v1975
    %v2415 = vunpack.c.l.b16 %v1976
    %v2416 = vunpack.c.h.b16 %v1976
    %v2417 = vunpack.c.l.b16 %v1977
    %v2418 = vunpack.c.h.b16 %v1977
    %v2419 = vunpack.c.l.b16 %v1978
    %v2420 = vunpack.c.h.b16 %v1978
    %v2421 = vunpack.c.l.b16 %v1979
    %v2422 = vunpack.c.h.b16 %v1979
    %v2423 = vunpack.c.l.b16 %v1980
    %v2424 = vunpack.c.h.b16 %v1980
    %v2425 = vunpack.c.l.b16 %v1981
    %v2426 = vunpack.c.h.b16 %v1981
    %v2427 = vunpack.c.l.b16 %v1982
    %v2428 = vunpack.c.h.b16 %v1982
    %v2429 = vunpack.c.l.b16 %v1983
    %v2430 = vunpack.c.h.b16 %v1983
    %v2431 = vunpack.c.l.b16 %v1984
    %v2432 = vunpack.c.h.b16 %v1984
    %v2433 = vunpack.c.l.b16 %v1985
    %v2434 = vunpack.c.h.b16 %v1985
    %v2435 = vunpack.c.l.b16 %v1986
    %v2436 = vunpack.c.h.b16 %v1986
    %v2437 = vunpack.c.l.b16 %v1987
    %v2438 = vunpack.c.h.b16 %v1987
    %v2439 = vunpack.c.l.b16 %v1988
    %v2440 = vunpack.c.h.b16 %v1988
    %v2441 = vunpack.c.l.b16 %v1989
    %v2442 = vunpack.c.h.b16 %v1989
    %v2443 = vunpack.c.l.b16 %v1990
    %v2444 = vunpack.c.h.b16 %v1990
    %v2445 = vunpack.c.l.b16 %v1991
    %v2446 = vunpack.c.h.b16 %v1991
    %v2447 = vunpack.c.l.b16 %v1992
    %v2448 = vunpack.c.h.b16 %v1992
    %v2449 = vunpack.c.l.b16 %v1993
    %v2450 = vunpack.c.h.b16 %v1993
    %v2451 = vunpack.c.l.b16 %v1994
    %v2452 = vunpack.c.h.b16 %v1994
    %v2453 = vunpack.c.l.b16 %v1995
    %v2454 = vunpack.c.h.b16 %v1995
    %v2455 = vunpack.c.l.b16 %v1996
    %v2456 = vunpack.c.h.b16 %v1996
    %v2457 = vunpack.c.l.b16 %v1997
    %v2458 = vunpack.c.h.b16 %v1997
    %v2459 = vunpack.c.l.b16 %v1998
    %v2460 = vunpack.c.h.b16 %v1998
    %v2461 = vunpack.c.l.b16 %v1999
    %v2462 = vunpack.c.h.b16 %v1999
    %v2463 = vunpack.c.l.b16 %v2000
    %v2464 = vunpack.c.h.b16 %v2000
    %v2465 = vunpack.c.l.b16 %v2001
    %v2466 = vunpack.c.h.b16 %v2001
    %v2467 = vunpack.c.l.b16 %v2002
    %v2468 = vunpack.c.h.b16 %v2002
    %v2469 = vunpack.c.l.b16 %v2003
    %v2470 = vunpack.c.h.b16 %v2003
    %v2471 = vunpack.c.l.b16 %v2004
    %v2472 = vunpack.c.h.b16 %v2004
    %v2473 = vunpack.c.l.b16 %v2005
    %v2474 = vunpack.c.h.b16 %v2005
    %v2475 = vunpack.c.l.b16 %v2006
    %v2476 = vunpack.c.h.b16 %v2006
    %v2477 = vunpack.c.l.b16 %v2007
    %v2478 = vunpack.c.h.b16 %v2007
    %v2479 = vunpack.c.l.b16 %v2008
    %v2480 = vunpack.c.h.b16 %v2008
    %v2481 = vunpack.c.l.b16 %v2009
    %v2482 = vunpack.c.h.b16 %v2009
    %v2483 = vunpack.c.l.b16 %v2010
    %v2484 = vunpack.c.h.b16 %v2010
    %v2485 = vunpack.c.l.b16 %v2011
    %v2486 = vunpack.c.h.b16 %v2011
    %v2487 = vunpack.c.l.b16 %v2012
    %v2488 = vunpack.c.h.b16 %v2012
    %v2489 = vunpack.c.l.b16 %v2013
    %v2490 = vunpack.c.h.b16 %v2013
    %v2491 = vunpack.c.l.b16 %v2014
    %v2492 = vunpack.c.h.b16 %v2014
    %v2493 = vunpack.c.l.b16 %v2015
    %v2494 = vunpack.c.h.b16 %v2015
    %v2495 = vunpack.c.l.b16 %v2016
    %v2496 = vunpack.c.h.b16 %v2016
    %v2497 = vunpack.c.l.b16 %v2017
    %v2498 = vunpack.c.h.b16 %v2017
    %v2499 = vunpack.c.l.b16 %v2018
    %v2500 = vunpack.c.h.b16 %v2018
    %v2501 = vunpack.c.l.b16 %v2019
    %v2502 = vunpack.c.h.b16 %v2019
    %v2503 = vunpack.c.l.b16 %v2020
    %v2504 = vunpack.c.h.b16 %v2020
    %v2505 = vunpack.c.l.b16 %v2021
    %v2506 = vunpack.c.h.b16 %v2021
    %v2507 = vunpack.c.l.b16 %v2022
    %v2508 = vunpack.c.h.b16 %v2022
    %v2509 = vunpack.c.l.b16 %v2023
    %v2510 = vunpack.c.h.b16 %v2023
    %v2511 = vunpack.c.l.b16 %v2024
    %v2512 = vunpack.c.h.b16 %v2024
    %v2513 = vunpack.c.l.b16 %v2025
    %v2514 = vunpack.c.h.b16 %v2025
    %v2515 = vunpack.c.l.b16 %v2026
    %v2516 = vunpack.c.h.b16 %v2026
    %v2517 = vunpack.c.l.b16 %v2027
    %v2518 = vunpack.c.h.b16 %v2027
    %v2519 = vunpack.c.l.b16 %v2028
    %v2520 = vunpack.c.h.b16 %v2028
    %v2521 = vunpack.c.l.b16 %v2029
    %v2522 = vunpack.c.h.b16 %v2029
    %v2523 = vunpack.c.l.b16 %v2030
    %v2524 = vunpack.c.h.b16 %v2030
    %v2525 = vunpack.c.l.b16 %v2031
    %v2526 = vunpack.c.h.b16 %v2031
    %v2527 = vunpack.c.l.b16 %v2032
    %v2528 = vunpack.c.h.b16 %v2032
    %v2529 = vunpack.c.l.b16 %v2033
    %v2530 = vunpack.c.h.b16 %v2033
    %v2531 = vunpack.c.l.b16 %v2034
    %v2532 = vunpack.c.h.b16 %v2034
    %v2533 = vunpack.c.l.b16 %v2035
    %v2534 = vunpack.c.h.b16 %v2035
    %v2535 = vunpack.c.l.b16 %v2036
    %v2536 = vunpack.c.h.b16 %v2036
    %v2537 = vunpack.c.l.b16 %v2037
    %v2538 = vunpack.c.h.b16 %v2037
    %v2539 = vunpack.c.l.b16 %v2038
    %v2540 = vunpack.c.h.b16 %v2038
    %v2541 = vunpack.c.l.b16 %v2039
    %v2542 = vunpack.c.h.b16 %v2039
    %v2543 = vunpack.c.l.b16 %v2040
    %v2544 = vunpack.c.h.b16 %v2040
    %v2545 = vunpack.c.l.b16 %v2041
    %v2546 = vunpack.c.h.b16 %v2041
    %v2547 = vunpack.c.l.b16 %v2042
    %v2548 = vunpack.c.h.b16 %v2042
    %v2549 = vunpack.c.l.b16 %v2043
    %v2550 = vunpack.c.h.b16 %v2043
    %v2551 = vunpack.c.l.b16 %v2044
    %v2552 = vunpack.c.h.b16 %v2044
    %v2553 = vunpack.c.l.b16 %v2045
    %v2554 = vunpack.c.h.b16 %v2045
    %v2555 = vunpack.c.l.b16 %v2046
    %v2556 = vunpack.c.h.b16 %v2046
    %v2557 = vunpack.c.l.b16 %v2047
    %v2558 = vunpack.c.h.b16 %v2047
    %v2559 = vunpack.c.l.b16 %v2048
    %v2560 = vunpack.c.h.b16 %v2048
    %v2561 = vunpack.c.l.b16 %v2049
    %v2562 = vunpack.c.h.b16 %v2049
    %v2563 = vunpack.c.l.b16 %v2050
    %v2564 = vunpack.c.h.b16 %v2050
    %v2565 = vunpack.c.l.b16 %v2051
    %v2566 = vunpack.c.h.b16 %v2051
    %v2567 = vunpack.c.l.b16 %v2052
    %v2568 = vunpack.c.h.b16 %v2052
    %v2569 = vunpack.c.l.b16 %v2053
    %v2570 = vunpack.c.h.b16 %v2053
    %v2571 = vunpack.c.l.b16 %v2054
    %v2572 = vunpack.c.h.b16 %v2054
    %v2573 = vunpack.c.l.b16 %v2055
    %v2574 = vunpack.c.h.b16 %v2055
    %v2575 = vunpack.c.l.b16 %v2056
    %v2576 = vunpack.c.h.b16 %v2056
    %v2577 = vunpack.c.l.b16 %v2057
    %v2578 = vunpack.c.h.b16 %v2057
    %v2579 = vunpack.c.l.b16 %v2058
    %v2580 = vunpack.c.h.b16 %v2058
    %v2581 = vunpack.c.l.b16 %v2059
    %v2582 = vunpack.c.h.b16 %v2059
    %v2583 = vunpack.c.l.b16 %v2060
    %v2584 = vunpack.c.h.b16 %v2060
    %v2585 = vunpack.c.l.b16 %v2061
    %v2586 = vunpack.c.h.b16 %v2061
    %v2587 = vunpack.c.l.b16 %v2062
    %v2588 = vunpack.c.h.b16 %v2062
    %v2589 = vunpack.c.l.b16 %v2063
    %v2590 = vunpack.c.h.b16 %v2063
    %v2591 = vunpack.c.l.b16 %v2064
    %v2592 = vunpack.c.h.b16 %v2064
    %v2593 = vunpack.c.l.b16 %v2065
    %v2594 = vunpack.c.h.b16 %v2065
    %v2595 = vunpack.c.l.b16 %v2066
    %v2596 = vunpack.c.h.b16 %v2066
    %v2597 = vunpack.c.l.b16 %v2067
    %v2598 = vunpack.c.h.b16 %v2067
    %v2599 = vunpack.c.l.b16 %v2068
    %v2600 = vunpack.c.h.b16 %v2068
    %v2601 = vunpack.c.l.b16 %v2069
    %v2602 = vunpack.c.h.b16 %v2069
    %v2603 = vunpack.c.l.b16 %v2070
    %v2604 = vunpack.c.h.b16 %v2070
    %v2605 = vpack.c.b16 %v2295, %v2285
    %v2606 = vpack.c.b16 %v2296, %v2286
    %v2607 = vpack.c.b16 %v2297, %v2287
    %v2608 = vpack.c.b16 %v2298, %v2288
    %v2609 = vpack.c.b16 %v2299, %v2289
    %v2610 = vpack.c.b16 %v2300, %v2290
    %v2611 = vpack.c.b16 %v2301, %v2291
    %v2612 = vpack.c.b16 %v2302, %v2292
    %v2613 = vpack.c.b16 %v2303, %v2293
    %v2614 = vpack.c.b16 %v2304, %v2294
    %v2615 = vpack.c.b16 %v2315, %v2305
    %v2616 = vpack.c.b16 %v2316, %v2306
    %v2617 = vpack.c.b16 %v2317, %v2307
    %v2618 = vpack.c.b16 %v2318, %v2308
    %v2619 = vpack.c.b16 %v2319, %v2309
    %v2620 = vpack.c.b16 %v2320, %v2310
    %v2621 = vpack.c.b16 %v2321, %v2311
    %v2622 = vpack.c.b16 %v2322, %v2312
    %v2623 = vpack.c.b16 %v2323, %v2313
    %v2624 = vpack.c.b16 %v2324, %v2314
    %v2625 = vpack.c.b16 %v2335, %v2325
    %v2626 = vpack.c.b16 %v2336, %v2326
    %v2627 = vpack.c.b16 %v2337, %v2327
    %v2628 = vpack.c.b16 %v2338, %v2328
    %v2629 = vpack.c.b16 %v2339, %v2329
    %v2630 = vpack.c.b16 %v2340, %v2330
    %v2631 = vpack.c.b16 %v2341, %v2331
    %v2632 = vpack.c.b16 %v2342, %v2332
    %v2633 = vpack.c.b16 %v2343, %v2333
    %v2634 = vpack.c.b16 %v2344, %v2334
    %v2635 = vpack.c.b16 %v2355, %v2345
    %v2636 = vpack.c.b16 %v2356, %v2346
    %v2637 = vpack.c.b16 %v2357, %v2347
    %v2638 = vpack.c.b16 %v2358, %v2348
    %v2639 = vpack.c.b16 %v2359, %v2349
    %v2640 = vpack.c.b16 %v2360, %v2350
    %v2641 = vpack.c.b16 %v2361, %v2351
    %v2642 = vpack.c.b16 %v2362, %v2352
    %v2643 = vpack.c.b16 %v2363, %v2353
    %v2644 = vpack.c.b16 %v2364, %v2354
    %v2645 = vpack.c.b16 %v2375, %v2365
    %v2646 = vpack.c.b16 %v2376, %v2366
    %v2647 = vpack.c.b16 %v2377, %v2367
    %v2648 = vpack.c.b16 %v2378, %v2368
    %v2649 = vpack.c.b16 %v2379, %v2369
    %v2650 = vpack.c.b16 %v2380, %v2370
    %v2651 = vpack.c.b16 %v2381, %v2371
    %v2652 = vpack.c.b16 %v2382, %v2372
    %v2653 = vpack.c.b16 %v2383, %v2373
    %v2654 = vpack.c.b16 %v2384, %v2374
    %v2655 = vpack.c.b16 %v2395, %v2385
    %v2656 = vpack.c.b16 %v2396, %v2386
    %v2657 = vpack.c.b16 %v2397, %v2387
    %v2658 = vpack.c.b16 %v2398, %v2388
    %v2659 = vpack.c.b16 %v2399, %v2389
    %v2660 = vpack.c.b16 %v2400, %v2390
    %v2661 = vpack.c.b16 %v2401, %v2391
    %v2662 = vpack.c.b16 %v2402, %v2392
    %v2663 = vpack.c.b16 %v2403, %v2393
    %v2664 = vpack.c.b16 %v2404, %v2394
    %v2665 = vpack.c.b16 %v2415, %v2405
    %v2666 = vpack.c.b16 %v2416, %v2406
    %v2667 = vpack.c.b16 %v2417, %v2407
    %v2668 = vpack.c.b16 %v2418, %v2408
    %v2669 = vpack.c.b16 %v2419, %v2409
    %v2670 = vpack.c.b16 %v2420, %v2410
    %v2671 = vpack.c.b16 %v2421, %v2411
    %v2672 = vpack.c.b16 %v2422, %v2412
    %v2673 = vpack.c.b16 %v2423, %v2413
    %v2674 = vpack.c.b16 %v2424, %v2414
    %v2675 = vpack.c.b16 %v2435, %v2425
    %v2676 = vpack.c.b16 %v2436, %v2426
    %v2677 = vpack.c.b16 %v2437, %v2427
    %v2678 = vpack.c.b16 %v2438, %v2428
    %v2679 = vpack.c.b16 %v2439, %v2429
    %v2680 = vpack.c.b16 %v2440, %v2430
    %v2681 = vpack.c.b16 %v2441, %v2431
    %v2682 = vpack.c.b16 %v2442, %v2432
    %v2683 = vpack.c.b16 %v2443, %v2433
    %v2684 = vpack.c.b16 %v2444, %v2434
    %v2685 = vpack.c.b16 %v2455, %v2445
    %v2686 = vpack.c.b16 %v2456, %v2446
    %v2687 = vpack.c.b16 %v2457, %v2447
    %v2688 = vpack.c.b16 %v2458, %v2448
    %v2689 = vpack.c.b16 %v2459, %v2449
    %v2690 = vpack.c.b16 %v2460, %v2450
    %v2691 = vpack.c.b16 %v2461, %v2451
    %v2692 = vpack.c.b16 %v2462, %v2452
    %v2693 = vpack.c.b16 %v2463, %v2453
    %v2694 = vpack.c.b16 %v2464, %v2454
    %v2695 = vpack.c.b16 %v2475, %v2465
    %v2696 = vpack.c.b16 %v2476, %v2466
    %v2697 = vpack.c.b16 %v2477, %v2467
    %v2698 = vpack.c.b16 %v2478, %v2468
    %v2699 = vpack.c.b16 %v2479, %v2469
    %v2700 = vpack.c.b16 %v2480, %v2470
    %v2701 = vpack.c.b16 %v2481, %v2471
    %v2702 = vpack.c.b16 %v2482, %v2472
    %v2703 = vpack.c.b16 %v2483, %v2473
    %v2704 = vpack.c.b16 %v2484, %v2474
    %v2705 = vpack.c.b16 %v2495, %v2485
    %v2706 = vpack.c.b16 %v2496, %v2486
    %v2707 = vpack.c.b16 %v2497, %v2487
    %v2708 = vpack.c.b16 %v2498, %v2488
    %v2709 = vpack.c.b16 %v2499, %v2489
    %v2710 = vpack.c.b16 %v2500, %v2490
    %v2711 = vpack.c.b16 %v2501, %v2491
    %v2712 = vpack.c.b16 %v2502, %v2492
    %v2713 = vpack.c.b16 %v2503, %v2493
    %v2714 = vpack.c.b16 %v2504, %v2494
    %v2715 = vpack.c.b16 %v2515, %v2505
    %v2716 = vpack.c.b16 %v2516, %v2506
    %v2717 = vpack.c.b16 %v2517, %v2507
    %v2718 = vpack.c.b16 %v2518, %v2508
    %v2719 = vpack.c.b16 %v2519, %v2509
    %v2720 = vpack.c.b16 %v2520, %v2510
    %v2721 = vpack.c.b16 %v2521, %v2511
    %v2722 = vpack.c.b16 %v2522, %v2512
    %v2723 = vpack.c.b16 %v2523, %v2513
    %v2724 = vpack.c.b16 %v2524, %v2514
    %v2725 = vpack.c.b16 %v2535, %v2525
    %v2726 = vpack.c.b16 %v2536, %v2526
    %v2727 = vpack.c.b16 %v2537, %v2527
    %v2728 = vpack.c.b16 %v2538, %v2528
    %v2729 = vpack.c.b16 %v2539, %v2529
    %v2730 = vpack.c.b16 %v2540, %v2530
    %v2731 = vpack.c.b16 %v2541, %v2531
    %v2732 = vpack.c.b16 %v2542, %v2532
    %v2733 = vpack.c.b16 %v2543, %v2533
    %v2734 = vpack.c.b16 %v2544, %v2534
    %v2735 = vpack.c.b16 %v2555, %v2545
    %v2736 = vpack.c.b16 %v2556, %v2546
    %v2737 = vpack.c.b16 %v2557, %v2547
    %v2738 = vpack.c.b16 %v2558, %v2548
    %v2739 = vpack.c.b16 %v2559, %v2549
    %v2740 = vpack.c.b16 %v2560, %v2550
    %v2741 = vpack.c.b16 %v2561, %v2551
    %v2742 = vpack.c.b16 %v2562, %v2552
    %v2743 = vpack.c.b16 %v2563, %v2553
    %v2744 = vpack.c.b16 %v2564, %v2554
    %v2745 = vpack.c.b16 %v2575, %v2565
    %v2746 = vpack.c.b16 %v2576, %v2566
    %v2747 = vpack.c.b16 %v2577, %v2567
    %v2748 = vpack.c.b16 %v2578, %v2568
    %v2749 = vpack.c.b16 %v2579, %v2569
    %v2750 = vpack.c.b16 %v2580, %v2570
    %v2751 = vpack.c.b16 %v2581, %v2571
    %v2752 = vpack.c.b16 %v2582, %v2572
    %v2753 = vpack.c.b16 %v2583, %v2573
    %v2754 = vpack.c.b16 %v2584, %v2574
    %v2755 = vpack.c.b16 %v2595, %v2585
    %v2756 = vpack.c.b16 %v2596, %v2586
    %v2757 = vpack.c.b16 %v2597, %v2587
    %v2758 = vpack.c.b16 %v2598, %v2588
    %v2759 = vpack.c.b16 %v2599, %v2589
    %v2760 = vpack.c.b16 %v2600, %v2590
    %v2761 = vpack.c.b16 %v2601, %v2591
    %v2762 = vpack.c.b16 %v2602, %v2592
    %v2763 = vpack.c.b16 %v2603, %v2593
    %v2764 = vpack.c.b16 %v2604, %v2594
    %2925 = vmatprep.subr.bf16.mxu0 %v2676
    %2926 = vmatpush1.bf16.msra.mxu0 %v2675
    %2927 = vmatprep.subr.bf16.mxu0 %v2666
    %2928 = vmatpush1.bf16.msra.mxu0 %v2665
    %2929 = vmatprep.subr.bf16.mxu0 %v2656
    %2930 = vmatpush1.bf16.msra.mxu0 %v2655
    %2931 = vmatprep.subr.bf16.mxu0 %v2646
    %2932 = vmatpush1.bf16.msra.mxu0 %v2645
    %2933 = vmatprep.subr.bf16.mxu0 %v2636
    %2934 = vmatpush1.bf16.msra.mxu0 %v2635
    %2935 = vmatprep.subr.bf16.mxu0 %v2626
    %2936 = vmatpush1.bf16.msra.mxu0 %v2625
    %2937 = vmatprep.subr.bf16.mxu0 %v2616
    %2938 = vmatpush1.bf16.msra.mxu0 %v2615
    %2939 = vmatprep.subr.bf16.mxu0 %v2606
    %2940 = vmatpush1.bf16.msra.mxu0 %v2605
    %2941 = vmatprep.subr.bf16.mxu0 %v2756
    %2942 = vmatpush2.bf16.msra.mxu0 %v2755
    %2943 = vmatprep.subr.bf16.mxu0 %v2746
    %2944 = vmatpush2.bf16.msra.mxu0 %v2745
    %2945 = vmatprep.subr.bf16.mxu0 %v2736
    %2946 = vmatpush2.bf16.msra.mxu0 %v2735
    %2947 = vmatprep.subr.bf16.mxu0 %v2726
    %2948 = vmatpush2.bf16.msra.mxu0 %v2725
    %2949 = vmatprep.subr.bf16.mxu0 %v2716
    %2950 = vmatpush2.bf16.msra.mxu0 %v2715
    %2951 = vmatprep.subr.bf16.mxu0 %v2706
    %2952 = vmatpush2.bf16.msra.mxu0 %v2705
    %2953 = vmatprep.subr.bf16.mxu0 %v2696
    %2954 = vmatpush2.bf16.msra.mxu0 %v2695
    %2955 = vmatprep.subr.bf16.mxu0 %v2686
    %2956 = vmatpush2.bf16.msra.mxu0 %v2685
    %2957 = vmatprep.mubr.bf16.mxu0 %v1896
    %2958 = vmatmul.mubr.bf16.gmra.mxu0 %v1895
    %v2959 = vpop.f32.mrf.mxu0
    %v2960 = vadd.f32 %v2078, %v2959
    %v2961 = vpop.f32.mrf.mxu0
    %v2962 = vadd.f32 %v2082, %v2961
    %v2963 = vpop.f32.mrf.mxu0
    %v2964 = vadd.f32 %v2078, %v2963
    %v2965 = vpop.f32.mrf.mxu0
    %v2966 = vadd.f32 %v2082, %v2965
    %2967 = vmatprep.mubr.bf16.mxu0 %v1898
    %2968 = vmatmul.mubr.bf16.gmra.mxu0 %v1897
    %v2969 = vpop.f32.mrf.mxu0
    %v2970 = vadd.f32 %v2078, %v2969
    %v2971 = vpop.f32.mrf.mxu0
    %v2972 = vadd.f32 %v2082, %v2971
    %v2973 = vpop.f32.mrf.mxu0
    %v2974 = vadd.f32 %v2078, %v2973
    %v2975 = vpop.f32.mrf.mxu0
    %v2976 = vadd.f32 %v2082, %v2975
    %2977 = vmatprep.mubr.bf16.mxu0 %v1900
    %2978 = vmatmul.mubr.bf16.gmra.mxu0 %v1899
    %v2979 = vpop.f32.mrf.mxu0
    %v2980 = vadd.f32 %v2078, %v2979
    %v2981 = vpop.f32.mrf.mxu0
    %v2982 = vadd.f32 %v2082, %v2981
    %v2983 = vpop.f32.mrf.mxu0
    %v2984 = vadd.f32 %v2078, %v2983
    %v2985 = vpop.f32.mrf.mxu0
    %v2986 = vadd.f32 %v2082, %v2985
    %2987 = vmatprep.mubr.bf16.mxu0 %v1902
    %2988 = vmatmul.mubr.bf16.gmra.mxu0 %v1901
    %v2989 = vpop.f32.mrf.mxu0
    %v2990 = vadd.f32 %v2078, %v2989
    %v2991 = vpop.f32.mrf.mxu0
    %v2992 = vadd.f32 %v2082, %v2991
    %v2993 = vpop.f32.mrf.mxu0
    %v2994 = vadd.f32 %v2078, %v2993
    %v2995 = vpop.f32.mrf.mxu0
    %v2996 = vadd.f32 %v2082, %v2995
    %2997 = vmatprep.mubr.bf16.mxu0 %v1904
    %2998 = vmatmul.mubr.bf16.gmra.mxu0 %v1903
    %v2999 = vpop.f32.mrf.mxu0
    %v3000 = vadd.f32 %v2078, %v2999
    %v3001 = vpop.f32.mrf.mxu0
    %v3002 = vadd.f32 %v2082, %v3001
    %v3003 = vpop.f32.mrf.mxu0
    %v3004 = vadd.f32 %v2078, %v3003
    %v3005 = vpop.f32.mrf.mxu0
    %v3006 = vadd.f32 %v2082, %v3005
    %3007 = vmatprep.mubr.bf16.mxu0 %v1906
    %3008 = vmatmul.mubr.bf16.gmra.mxu0 %v1905
    %v3009 = vpop.f32.mrf.mxu0
    %v3010 = vadd.f32 %v2078, %v3009
    %v3011 = vpop.f32.mrf.mxu0
    %v3012 = vadd.f32 %v2082, %v3011
    %v3013 = vpop.f32.mrf.mxu0
    %v3014 = vadd.f32 %v2078, %v3013
    %v3015 = vpop.f32.mrf.mxu0
    %v3016 = vadd.f32 %v2082, %v3015
    %3017 = vmatprep.mubr.bf16.mxu0 %v1908
    %3018 = vmatmul.mubr.bf16.gmra.mxu0 %v1907
    %v3019 = vpop.f32.mrf.mxu0
    %v3020 = vadd.f32 %v2078, %v3019
    %v3021 = vpop.f32.mrf.mxu0
    %v3022 = vadd.f32 %v2082, %v3021
    %v3023 = vpop.f32.mrf.mxu0
    %v3024 = vadd.f32 %v2078, %v3023
    %v3025 = vpop.f32.mrf.mxu0
    %v3026 = vadd.f32 %v2082, %v3025
    %3027 = vmatprep.mubr.bf16.mxu0 %v1910
    %3028 = vmatmul.mubr.bf16.gmra.mxu0 %v1909
    %v3029 = vpop.f32.mrf.mxu0
    %v3030 = vadd.f32 %v2078, %v3029
    %v3031 = vpop.f32.mrf.mxu0
    %v3032 = vadd.f32 %v2082, %v3031
    %v3033 = vpop.f32.mrf.mxu0
    %v3034 = vadd.f32 %v2078, %v3033
    %v3035 = vpop.f32.mrf.mxu0
    %v3036 = vadd.f32 %v2082, %v3035
    %3037 = vdwg.mxu0
    %3038 = vmatprep.subr.bf16.mxu0 %v2678
    %3039 = vmatpush1.bf16.msra.mxu0 %v2677
    %3040 = vmatprep.subr.bf16.mxu0 %v2668
    %3041 = vmatpush1.bf16.msra.mxu0 %v2667
    %3042 = vmatprep.subr.bf16.mxu0 %v2658
    %3043 = vmatpush1.bf16.msra.mxu0 %v2657
    %3044 = vmatprep.subr.bf16.mxu0 %v2648
    %3045 = vmatpush1.bf16.msra.mxu0 %v2647
    %3046 = vmatprep.subr.bf16.mxu0 %v2638
    %3047 = vmatpush1.bf16.msra.mxu0 %v2637
    %3048 = vmatprep.subr.bf16.mxu0 %v2628
    %3049 = vmatpush1.bf16.msra.mxu0 %v2627
    %3050 = vmatprep.subr.bf16.mxu0 %v2618
    %3051 = vmatpush1.bf16.msra.mxu0 %v2617
    %3052 = vmatprep.subr.bf16.mxu0 %v2608
    %3053 = vmatpush1.bf16.msra.mxu0 %v2607
    %3054 = vmatprep.subr.bf16.mxu0 %v2758
    %3055 = vmatpush2.bf16.msra.mxu0 %v2757
    %3056 = vmatprep.subr.bf16.mxu0 %v2748
    %3057 = vmatpush2.bf16.msra.mxu0 %v2747
    %3058 = vmatprep.subr.bf16.mxu0 %v2738
    %3059 = vmatpush2.bf16.msra.mxu0 %v2737
    %3060 = vmatprep.subr.bf16.mxu0 %v2728
    %3061 = vmatpush2.bf16.msra.mxu0 %v2727
    %3062 = vmatprep.subr.bf16.mxu0 %v2718
    %3063 = vmatpush2.bf16.msra.mxu0 %v2717
    %3064 = vmatprep.subr.bf16.mxu0 %v2708
    %3065 = vmatpush2.bf16.msra.mxu0 %v2707
    %3066 = vmatprep.subr.bf16.mxu0 %v2698
    %3067 = vmatpush2.bf16.msra.mxu0 %v2697
    %3068 = vmatprep.subr.bf16.mxu0 %v2688
    %3069 = vmatpush2.bf16.msra.mxu0 %v2687
    %3070 = vmatprep.mubr.bf16.mxu0 %v1896
    %3071 = vmatmul.mubr.bf16.gmra.mxu0 %v1895
    %v3072 = vpop.f32.mrf.mxu0
    %v3073 = vadd.f32 %v2086, %v3072
    %v3074 = vpop.f32.mrf.mxu0
    %v3075 = vadd.f32 %v2090, %v3074
    %v3076 = vpop.f32.mrf.mxu0
    %v3077 = vadd.f32 %v2086, %v3076
    %v3078 = vpop.f32.mrf.mxu0
    %v3079 = vadd.f32 %v2090, %v3078
    %3080 = vmatprep.mubr.bf16.mxu0 %v1898
    %3081 = vmatmul.mubr.bf16.gmra.mxu0 %v1897
    %v3082 = vpop.f32.mrf.mxu0
    %v3083 = vadd.f32 %v2086, %v3082
    %v3084 = vpop.f32.mrf.mxu0
    %v3085 = vadd.f32 %v2090, %v3084
    %v3086 = vpop.f32.mrf.mxu0
    %v3087 = vadd.f32 %v2086, %v3086
    %v3088 = vpop.f32.mrf.mxu0
    %v3089 = vadd.f32 %v2090, %v3088
    %3090 = vmatprep.mubr.bf16.mxu0 %v1900
    %3091 = vmatmul.mubr.bf16.gmra.mxu0 %v1899
    %v3092 = vpop.f32.mrf.mxu0
    %v3093 = vadd.f32 %v2086, %v3092
    %v3094 = vpop.f32.mrf.mxu0
    %v3095 = vadd.f32 %v2090, %v3094
    %v3096 = vpop.f32.mrf.mxu0
    %v3097 = vadd.f32 %v2086, %v3096
    %v3098 = vpop.f32.mrf.mxu0
    %v3099 = vadd.f32 %v2090, %v3098
    %3100 = vmatprep.mubr.bf16.mxu0 %v1902
    %3101 = vmatmul.mubr.bf16.gmra.mxu0 %v1901
    %v3102 = vpop.f32.mrf.mxu0
    %v3103 = vadd.f32 %v2086, %v3102
    %v3104 = vpop.f32.mrf.mxu0
    %v3105 = vadd.f32 %v2090, %v3104
    %v3106 = vpop.f32.mrf.mxu0
    %v3107 = vadd.f32 %v2086, %v3106
    %v3108 = vpop.f32.mrf.mxu0
    %v3109 = vadd.f32 %v2090, %v3108
    %3110 = vmatprep.mubr.bf16.mxu0 %v1904
    %3111 = vmatmul.mubr.bf16.gmra.mxu0 %v1903
    %v3112 = vpop.f32.mrf.mxu0
    %v3113 = vadd.f32 %v2086, %v3112
    %v3114 = vpop.f32.mrf.mxu0
    %v3115 = vadd.f32 %v2090, %v3114
    %v3116 = vpop.f32.mrf.mxu0
    %v3117 = vadd.f32 %v2086, %v3116
    %v3118 = vpop.f32.mrf.mxu0
    %v3119 = vadd.f32 %v2090, %v3118
    %3120 = vmatprep.mubr.bf16.mxu0 %v1906
    %3121 = vmatmul.mubr.bf16.gmra.mxu0 %v1905
    %v3122 = vpop.f32.mrf.mxu0
    %v3123 = vadd.f32 %v2086, %v3122
    %v3124 = vpop.f32.mrf.mxu0
    %v3125 = vadd.f32 %v2090, %v3124
    %v3126 = vpop.f32.mrf.mxu0
    %v3127 = vadd.f32 %v2086, %v3126
    %v3128 = vpop.f32.mrf.mxu0
    %v3129 = vadd.f32 %v2090, %v3128
    %3130 = vmatprep.mubr.bf16.mxu0 %v1908
    %3131 = vmatmul.mubr.bf16.gmra.mxu0 %v1907
    %v3132 = vpop.f32.mrf.mxu0
    %v3133 = vadd.f32 %v2086, %v3132
    %v3134 = vpop.f32.mrf.mxu0
    %v3135 = vadd.f32 %v2090, %v3134
    %v3136 = vpop.f32.mrf.mxu0
    %v3137 = vadd.f32 %v2086, %v3136
    %v3138 = vpop.f32.mrf.mxu0
    %v3139 = vadd.f32 %v2090, %v3138
    %3140 = vmatprep.mubr.bf16.mxu0 %v1910
    %3141 = vmatmul.mubr.bf16.gmra.mxu0 %v1909
    %v3142 = vpop.f32.mrf.mxu0
    %v3143 = vadd.f32 %v2086, %v3142
    %v3144 = vpop.f32.mrf.mxu0
    %v3145 = vadd.f32 %v2090, %v3144
    %v3146 = vpop.f32.mrf.mxu0
    %v3147 = vadd.f32 %v2086, %v3146
    %v3148 = vpop.f32.mrf.mxu0
    %v3149 = vadd.f32 %v2090, %v3148
    %3150 = vdwg.mxu0
    %3151 = vmatprep.subr.bf16.mxu0 %v2680
    %3152 = vmatpush1.bf16.msra.mxu0 %v2679
    %3153 = vmatprep.subr.bf16.mxu0 %v2670
    %3154 = vmatpush1.bf16.msra.mxu0 %v2669
    %3155 = vmatprep.subr.bf16.mxu0 %v2660
    %3156 = vmatpush1.bf16.msra.mxu0 %v2659
    %3157 = vmatprep.subr.bf16.mxu0 %v2650
    %3158 = vmatpush1.bf16.msra.mxu0 %v2649
    %3159 = vmatprep.subr.bf16.mxu0 %v2640
    %3160 = vmatpush1.bf16.msra.mxu0 %v2639
    %3161 = vmatprep.subr.bf16.mxu0 %v2630
    %3162 = vmatpush1.bf16.msra.mxu0 %v2629
    %3163 = vmatprep.subr.bf16.mxu0 %v2620
    %3164 = vmatpush1.bf16.msra.mxu0 %v2619
    %3165 = vmatprep.subr.bf16.mxu0 %v2610
    %3166 = vmatpush1.bf16.msra.mxu0 %v2609
    %3167 = vmatprep.subr.bf16.mxu0 %v2760
    %3168 = vmatpush2.bf16.msra.mxu0 %v2759
    %3169 = vmatprep.subr.bf16.mxu0 %v2750
    %3170 = vmatpush2.bf16.msra.mxu0 %v2749
    %3171 = vmatprep.subr.bf16.mxu0 %v2740
    %3172 = vmatpush2.bf16.msra.mxu0 %v2739
    %3173 = vmatprep.subr.bf16.mxu0 %v2730
    %3174 = vmatpush2.bf16.msra.mxu0 %v2729
    %3175 = vmatprep.subr.bf16.mxu0 %v2720
    %3176 = vmatpush2.bf16.msra.mxu0 %v2719
    %3177 = vmatprep.subr.bf16.mxu0 %v2710
    %3178 = vmatpush2.bf16.msra.mxu0 %v2709
    %3179 = vmatprep.subr.bf16.mxu0 %v2700
    %3180 = vmatpush2.bf16.msra.mxu0 %v2699
    %3181 = vmatprep.subr.bf16.mxu0 %v2690
    %3182 = vmatpush2.bf16.msra.mxu0 %v2689
    %3183 = vmatprep.mubr.bf16.mxu0 %v1896
    %3184 = vmatmul.mubr.bf16.gmra.mxu0 %v1895
    %v3185 = vpop.f32.mrf.mxu0
    %v3186 = vadd.f32 %v2094, %v3185
    %v3187 = vpop.f32.mrf.mxu0
    %v3188 = vadd.f32 %v2098, %v3187
    %v3189 = vpop.f32.mrf.mxu0
    %v3190 = vadd.f32 %v2094, %v3189
    %v3191 = vpop.f32.mrf.mxu0
    %v3192 = vadd.f32 %v2098, %v3191
    %3193 = vmatprep.mubr.bf16.mxu0 %v1898
    %3194 = vmatmul.mubr.bf16.gmra.mxu0 %v1897
    %v3195 = vpop.f32.mrf.mxu0
    %v3196 = vadd.f32 %v2094, %v3195
    %v3197 = vpop.f32.mrf.mxu0
    %v3198 = vadd.f32 %v2098, %v3197
    %v3199 = vpop.f32.mrf.mxu0
    %v3200 = vadd.f32 %v2094, %v3199
    %v3201 = vpop.f32.mrf.mxu0
    %v3202 = vadd.f32 %v2098, %v3201
    %3203 = vmatprep.mubr.bf16.mxu0 %v1900
    %3204 = vmatmul.mubr.bf16.gmra.mxu0 %v1899
    %v3205 = vpop.f32.mrf.mxu0
    %v3206 = vadd.f32 %v2094, %v3205
    %v3207 = vpop.f32.mrf.mxu0
    %v3208 = vadd.f32 %v2098, %v3207
    %v3209 = vpop.f32.mrf.mxu0
    %v3210 = vadd.f32 %v2094, %v3209
    %v3211 = vpop.f32.mrf.mxu0
    %v3212 = vadd.f32 %v2098, %v3211
    %3213 = vmatprep.mubr.bf16.mxu0 %v1902
    %3214 = vmatmul.mubr.bf16.gmra.mxu0 %v1901
    %v3215 = vpop.f32.mrf.mxu0
    %v3216 = vadd.f32 %v2094, %v3215
    %v3217 = vpop.f32.mrf.mxu0
    %v3218 = vadd.f32 %v2098, %v3217
    %v3219 = vpop.f32.mrf.mxu0
    %v3220 = vadd.f32 %v2094, %v3219
    %v3221 = vpop.f32.mrf.mxu0
    %v3222 = vadd.f32 %v2098, %v3221
    %3223 = vmatprep.mubr.bf16.mxu0 %v1904
    %3224 = vmatmul.mubr.bf16.gmra.mxu0 %v1903
    %v3225 = vpop.f32.mrf.mxu0
    %v3226 = vadd.f32 %v2094, %v3225
    %v3227 = vpop.f32.mrf.mxu0
    %v3228 = vadd.f32 %v2098, %v3227
    %v3229 = vpop.f32.mrf.mxu0
    %v3230 = vadd.f32 %v2094, %v3229
    %v3231 = vpop.f32.mrf.mxu0
    %v3232 = vadd.f32 %v2098, %v3231
    %3233 = vmatprep.mubr.bf16.mxu0 %v1906
    %3234 = vmatmul.mubr.bf16.gmra.mxu0 %v1905
    %v3235 = vpop.f32.mrf.mxu0
    %v3236 = vadd.f32 %v2094, %v3235
    %v3237 = vpop.f32.mrf.mxu0
    %v3238 = vadd.f32 %v2098, %v3237
    %v3239 = vpop.f32.mrf.mxu0
    %v3240 = vadd.f32 %v2094, %v3239
    %v3241 = vpop.f32.mrf.mxu0
    %v3242 = vadd.f32 %v2098, %v3241
    %3243 = vmatprep.mubr.bf16.mxu0 %v1908
    %3244 = vmatmul.mubr.bf16.gmra.mxu0 %v1907
    %v3245 = vpop.f32.mrf.mxu0
    %v3246 = vadd.f32 %v2094, %v3245
    %v3247 = vpop.f32.mrf.mxu0
    %v3248 = vadd.f32 %v2098, %v3247
    %v3249 = vpop.f32.mrf.mxu0
    %v3250 = vadd.f32 %v2094, %v3249
    %v3251 = vpop.f32.mrf.mxu0
    %v3252 = vadd.f32 %v2098, %v3251
    %3253 = vmatprep.mubr.bf16.mxu0 %v1910
    %3254 = vmatmul.mubr.bf16.gmra.mxu0 %v1909
    %v3255 = vpop.f32.mrf.mxu0
    %v3256 = vadd.f32 %v2094, %v3255
    %v3257 = vpop.f32.mrf.mxu0
    %v3258 = vadd.f32 %v2098, %v3257
    %v3259 = vpop.f32.mrf.mxu0
    %v3260 = vadd.f32 %v2094, %v3259
    %v3261 = vpop.f32.mrf.mxu0
    %v3262 = vadd.f32 %v2098, %v3261
    %3263 = vdwg.mxu0
    %3264 = vmatprep.subr.bf16.mxu0 %v2682
    %3265 = vmatpush1.bf16.msra.mxu0 %v2681
    %3266 = vmatprep.subr.bf16.mxu0 %v2672
    %3267 = vmatpush1.bf16.msra.mxu0 %v2671
    %3268 = vmatprep.subr.bf16.mxu0 %v2662
    %3269 = vmatpush1.bf16.msra.mxu0 %v2661
    %3270 = vmatprep.subr.bf16.mxu0 %v2652
    %3271 = vmatpush1.bf16.msra.mxu0 %v2651
    %3272 = vmatprep.subr.bf16.mxu0 %v2642
    %3273 = vmatpush1.bf16.msra.mxu0 %v2641
    %3274 = vmatprep.subr.bf16.mxu0 %v2632
    %3275 = vmatpush1.bf16.msra.mxu0 %v2631
    %3276 = vmatprep.subr.bf16.mxu0 %v2622
    %3277 = vmatpush1.bf16.msra.mxu0 %v2621
    %3278 = vmatprep.subr.bf16.mxu0 %v2612
    %3279 = vmatpush1.bf16.msra.mxu0 %v2611
    %3280 = vmatprep.subr.bf16.mxu0 %v2762
    %3281 = vmatpush2.bf16.msra.mxu0 %v2761
    %3282 = vmatprep.subr.bf16.mxu0 %v2752
    %3283 = vmatpush2.bf16.msra.mxu0 %v2751
    %3284 = vmatprep.subr.bf16.mxu0 %v2742
    %3285 = vmatpush2.bf16.msra.mxu0 %v2741
    %3286 = vmatprep.subr.bf16.mxu0 %v2732
    %3287 = vmatpush2.bf16.msra.mxu0 %v2731
    %3288 = vmatprep.subr.bf16.mxu0 %v2722
    %3289 = vmatpush2.bf16.msra.mxu0 %v2721
    %3290 = vmatprep.subr.bf16.mxu0 %v2712
    %3291 = vmatpush2.bf16.msra.mxu0 %v2711
    %3292 = vmatprep.subr.bf16.mxu0 %v2702
    %3293 = vmatpush2.bf16.msra.mxu0 %v2701
    %3294 = vmatprep.subr.bf16.mxu0 %v2692
    %3295 = vmatpush2.bf16.msra.mxu0 %v2691
    %3296 = vmatprep.mubr.bf16.mxu0 %v1896
    %3297 = vmatmul.mubr.bf16.gmra.mxu0 %v1895
    %v3298 = vpop.f32.mrf.mxu0
    %v3299 = vadd.f32 %v2102, %v3298
    %v3300 = vpop.f32.mrf.mxu0
    %v3301 = vadd.f32 %v2106, %v3300
    %v3302 = vpop.f32.mrf.mxu0
    %v3303 = vadd.f32 %v2102, %v3302
    %v3304 = vpop.f32.mrf.mxu0
    %v3305 = vadd.f32 %v2106, %v3304
    %3306 = vmatprep.mubr.bf16.mxu0 %v1898
    %3307 = vmatmul.mubr.bf16.gmra.mxu0 %v1897
    %v3308 = vpop.f32.mrf.mxu0
    %v3309 = vadd.f32 %v2102, %v3308
    %v3310 = vpop.f32.mrf.mxu0
    %v3311 = vadd.f32 %v2106, %v3310
    %v3312 = vpop.f32.mrf.mxu0
    %v3313 = vadd.f32 %v2102, %v3312
    %v3314 = vpop.f32.mrf.mxu0
    %v3315 = vadd.f32 %v2106, %v3314
    %3316 = vmatprep.mubr.bf16.mxu0 %v1900
    %3317 = vmatmul.mubr.bf16.gmra.mxu0 %v1899
    %v3318 = vpop.f32.mrf.mxu0
    %v3319 = vadd.f32 %v2102, %v3318
    %v3320 = vpop.f32.mrf.mxu0
    %v3321 = vadd.f32 %v2106, %v3320
    %v3322 = vpop.f32.mrf.mxu0
    %v3323 = vadd.f32 %v2102, %v3322
    %v3324 = vpop.f32.mrf.mxu0
    %v3325 = vadd.f32 %v2106, %v3324
    %3326 = vmatprep.mubr.bf16.mxu0 %v1902
    %3327 = vmatmul.mubr.bf16.gmra.mxu0 %v1901
    %v3328 = vpop.f32.mrf.mxu0
    %v3329 = vadd.f32 %v2102, %v3328
    %v3330 = vpop.f32.mrf.mxu0
    %v3331 = vadd.f32 %v2106, %v3330
    %v3332 = vpop.f32.mrf.mxu0
    %v3333 = vadd.f32 %v2102, %v3332
    %v3334 = vpop.f32.mrf.mxu0
    %v3335 = vadd.f32 %v2106, %v3334
    %3336 = vmatprep.mubr.bf16.mxu0 %v1904
    %3337 = vmatmul.mubr.bf16.gmra.mxu0 %v1903
    %v3338 = vpop.f32.mrf.mxu0
    %v3339 = vadd.f32 %v2102, %v3338
    %v3340 = vpop.f32.mrf.mxu0
    %v3341 = vadd.f32 %v2106, %v3340
    %v3342 = vpop.f32.mrf.mxu0
    %v3343 = vadd.f32 %v2102, %v3342
    %v3344 = vpop.f32.mrf.mxu0
    %v3345 = vadd.f32 %v2106, %v3344
    %3346 = vmatprep.mubr.bf16.mxu0 %v1906
    %3347 = vmatmul.mubr.bf16.gmra.mxu0 %v1905
    %v3348 = vpop.f32.mrf.mxu0
    %v3349 = vadd.f32 %v2102, %v3348
    %v3350 = vpop.f32.mrf.mxu0
    %v3351 = vadd.f32 %v2106, %v3350
    %v3352 = vpop.f32.mrf.mxu0
    %v3353 = vadd.f32 %v2102, %v3352
    %v3354 = vpop.f32.mrf.mxu0
    %v3355 = vadd.f32 %v2106, %v3354
    %3356 = vmatprep.mubr.bf16.mxu0 %v1908
    %3357 = vmatmul.mubr.bf16.gmra.mxu0 %v1907
    %v3358 = vpop.f32.mrf.mxu0
    %v3359 = vadd.f32 %v2102, %v3358
    %v3360 = vpop.f32.mrf.mxu0
    %v3361 = vadd.f32 %v2106, %v3360
    %v3362 = vpop.f32.mrf.mxu0
    %v3363 = vadd.f32 %v2102, %v3362
    %v3364 = vpop.f32.mrf.mxu0
    %v3365 = vadd.f32 %v2106, %v3364
    %3366 = vmatprep.mubr.bf16.mxu0 %v1910
    %3367 = vmatmul.mubr.bf16.gmra.mxu0 %v1909
    %v3368 = vpop.f32.mrf.mxu0
    %v3369 = vadd.f32 %v2102, %v3368
    %v3370 = vpop.f32.mrf.mxu0
    %v3371 = vadd.f32 %v2106, %v3370
    %v3372 = vpop.f32.mrf.mxu0
    %v3373 = vadd.f32 %v2102, %v3372
    %v3374 = vpop.f32.mrf.mxu0
    %v3375 = vadd.f32 %v2106, %v3374
    %3376 = vdwg.mxu0
    %3377 = vmatprep.subr.bf16.mxu0 %v2684
    %3378 = vmatpush1.bf16.msra.mxu0 %v2683
    %3379 = vmatprep.subr.bf16.mxu0 %v2674
    %3380 = vmatpush1.bf16.msra.mxu0 %v2673
    %3381 = vmatprep.subr.bf16.mxu0 %v2664
    %3382 = vmatpush1.bf16.msra.mxu0 %v2663
    %3383 = vmatprep.subr.bf16.mxu0 %v2654
    %3384 = vmatpush1.bf16.msra.mxu0 %v2653
    %3385 = vmatprep.subr.bf16.mxu0 %v2644
    %3386 = vmatpush1.bf16.msra.mxu0 %v2643
    %3387 = vmatprep.subr.bf16.mxu0 %v2634
    %3388 = vmatpush1.bf16.msra.mxu0 %v2633
    %3389 = vmatprep.subr.bf16.mxu0 %v2624
    %3390 = vmatpush1.bf16.msra.mxu0 %v2623
    %3391 = vmatprep.subr.bf16.mxu0 %v2614
    %3392 = vmatpush1.bf16.msra.mxu0 %v2613
    %3393 = vmatprep.subr.bf16.mxu0 %v2764
    %3394 = vmatpush2.bf16.msra.mxu0 %v2763
    %3395 = vmatprep.subr.bf16.mxu0 %v2754
    %3396 = vmatpush2.bf16.msra.mxu0 %v2753
    %3397 = vmatprep.subr.bf16.mxu0 %v2744
    %3398 = vmatpush2.bf16.msra.mxu0 %v2743
    %3399 = vmatprep.subr.bf16.mxu0 %v2734
    %3400 = vmatpush2.bf16.msra.mxu0 %v2733
    %3401 = vmatprep.subr.bf16.mxu0 %v2724
    %3402 = vmatpush2.bf16.msra.mxu0 %v2723
    %3403 = vmatprep.subr.bf16.mxu0 %v2714
    %3404 = vmatpush2.bf16.msra.mxu0 %v2713
    %3405 = vmatprep.subr.bf16.mxu0 %v2704
    %3406 = vmatpush2.bf16.msra.mxu0 %v2703
    %3407 = vmatprep.subr.bf16.mxu0 %v2694
    %3408 = vmatpush2.bf16.msra.mxu0 %v2693
    %3409 = vmatprep.mubr.bf16.mxu0 %v1896
    %3410 = vmatmul.mubr.bf16.gmra.mxu0 %v1895
    %v3411 = vpop.f32.mrf.mxu0
    %v3412 = vadd.f32 %v2110, %v3411
    %v3413 = vpop.f32.mrf.mxu0
    %v3414 = vadd.f32 %v2114, %v3413
    %v3415 = vpop.f32.mrf.mxu0
    %v3416 = vadd.f32 %v2110, %v3415
    %v3417 = vpop.f32.mrf.mxu0
    %v3418 = vadd.f32 %v2114, %v3417
    %3419 = vmatprep.mubr.bf16.mxu0 %v1898
    %3420 = vmatmul.mubr.bf16.gmra.mxu0 %v1897
    %v3421 = vpop.f32.mrf.mxu0
    %v3422 = vadd.f32 %v2110, %v3421
    %v3423 = vpop.f32.mrf.mxu0
    %v3424 = vadd.f32 %v2114, %v3423
    %v3425 = vpop.f32.mrf.mxu0
    %v3426 = vadd.f32 %v2110, %v3425
    %v3427 = vpop.f32.mrf.mxu0
    %v3428 = vadd.f32 %v2114, %v3427
    %3429 = vmatprep.mubr.bf16.mxu0 %v1900
    %3430 = vmatmul.mubr.bf16.gmra.mxu0 %v1899
    %v3431 = vpop.f32.mrf.mxu0
    %v3432 = vadd.f32 %v2110, %v3431
    %v3433 = vpop.f32.mrf.mxu0
    %v3434 = vadd.f32 %v2114, %v3433
    %v3435 = vpop.f32.mrf.mxu0
    %v3436 = vadd.f32 %v2110, %v3435
    %v3437 = vpop.f32.mrf.mxu0
    %v3438 = vadd.f32 %v2114, %v3437
    %3439 = vmatprep.mubr.bf16.mxu0 %v1902
    %3440 = vmatmul.mubr.bf16.gmra.mxu0 %v1901
    %v3441 = vpop.f32.mrf.mxu0
    %v3442 = vadd.f32 %v2110, %v3441
    %v3443 = vpop.f32.mrf.mxu0
    %v3444 = vadd.f32 %v2114, %v3443
    %v3445 = vpop.f32.mrf.mxu0
    %v3446 = vadd.f32 %v2110, %v3445
    %v3447 = vpop.f32.mrf.mxu0
    %v3448 = vadd.f32 %v2114, %v3447
    %3449 = vmatprep.mubr.bf16.mxu0 %v1904
    %3450 = vmatmul.mubr.bf16.gmra.mxu0 %v1903
    %v3451 = vpop.f32.mrf.mxu0
    %v3452 = vadd.f32 %v2110, %v3451
    %v3453 = vpop.f32.mrf.mxu0
    %v3454 = vadd.f32 %v2114, %v3453
    %v3455 = vpop.f32.mrf.mxu0
    %v3456 = vadd.f32 %v2110, %v3455
    %v3457 = vpop.f32.mrf.mxu0
    %v3458 = vadd.f32 %v2114, %v3457
    %3459 = vmatprep.mubr.bf16.mxu0 %v1906
    %3460 = vmatmul.mubr.bf16.gmra.mxu0 %v1905
    %v3461 = vpop.f32.mrf.mxu0
    %v3462 = vadd.f32 %v2110, %v3461
    %v3463 = vpop.f32.mrf.mxu0
    %v3464 = vadd.f32 %v2114, %v3463
    %v3465 = vpop.f32.mrf.mxu0
    %v3466 = vadd.f32 %v2110, %v3465
    %v3467 = vpop.f32.mrf.mxu0
    %v3468 = vadd.f32 %v2114, %v3467
    %3469 = vmatprep.mubr.bf16.mxu0 %v1908
    %3470 = vmatmul.mubr.bf16.gmra.mxu0 %v1907
    %v3471 = vpop.f32.mrf.mxu0
    %v3472 = vadd.f32 %v2110, %v3471
    %v3473 = vpop.f32.mrf.mxu0
    %v3474 = vadd.f32 %v2114, %v3473
    %v3475 = vpop.f32.mrf.mxu0
    %v3476 = vadd.f32 %v2110, %v3475
    %v3477 = vpop.f32.mrf.mxu0
    %v3478 = vadd.f32 %v2114, %v3477
    %3479 = vmatprep.mubr.bf16.mxu0 %v1910
    %3480 = vmatmul.mubr.bf16.gmra.mxu0 %v1909
    %v3481 = vpop.f32.mrf.mxu0
    %v3482 = vadd.f32 %v2110, %v3481
    %v3483 = vpop.f32.mrf.mxu0
    %v3484 = vadd.f32 %v2114, %v3483
    %v3485 = vpop.f32.mrf.mxu0
    %v3486 = vadd.f32 %v2110, %v3485
    %v3487 = vpop.f32.mrf.mxu0
    %v3488 = vadd.f32 %v2114, %v3487
    %3489 = vdwg.mxu0
    %v3490 = vmax.f32 %v2960, %v3073
    %v3491 = vmax.f32 %v2962, %v3075
    %v3492 = vmax.f32 %v2964, %v3077
    %v3493 = vmax.f32 %v2966, %v3079
    %v3494 = vmax.f32 %v2970, %v3083
    %v3495 = vmax.f32 %v2972, %v3085
    %v3496 = vmax.f32 %v2974, %v3087
    %v3497 = vmax.f32 %v2976, %v3089
    %v3498 = vmax.f32 %v2980, %v3093
    %v3499 = vmax.f32 %v2982, %v3095
    %v3500 = vmax.f32 %v2984, %v3097
    %v3501 = vmax.f32 %v2986, %v3099
    %v3502 = vmax.f32 %v2990, %v3103
    %v3503 = vmax.f32 %v2992, %v3105
    %v3504 = vmax.f32 %v2994, %v3107
    %v3505 = vmax.f32 %v2996, %v3109
    %v3506 = vmax.f32 %v3000, %v3113
    %v3507 = vmax.f32 %v3002, %v3115
    %v3508 = vmax.f32 %v3004, %v3117
    %v3509 = vmax.f32 %v3006, %v3119
    %v3510 = vmax.f32 %v3010, %v3123
    %v3511 = vmax.f32 %v3012, %v3125
    %v3512 = vmax.f32 %v3014, %v3127
    %v3513 = vmax.f32 %v3016, %v3129
    %v3514 = vmax.f32 %v3020, %v3133
    %v3515 = vmax.f32 %v3022, %v3135
    %v3516 = vmax.f32 %v3024, %v3137
    %v3517 = vmax.f32 %v3026, %v3139
    %v3518 = vmax.f32 %v3030, %v3143
    %v3519 = vmax.f32 %v3032, %v3145
    %v3520 = vmax.f32 %v3034, %v3147
    %v3521 = vmax.f32 %v3036, %v3149
    %v3522 = vmax.f32 %v3490, %v3186
    %v3523 = vmax.f32 %v3491, %v3188
    %v3524 = vmax.f32 %v3492, %v3190
    %v3525 = vmax.f32 %v3493, %v3192
    %v3526 = vmax.f32 %v3494, %v3196
    %v3527 = vmax.f32 %v3495, %v3198
    %v3528 = vmax.f32 %v3496, %v3200
    %v3529 = vmax.f32 %v3497, %v3202
    %v3530 = vmax.f32 %v3498, %v3206
    %v3531 = vmax.f32 %v3499, %v3208
    %v3532 = vmax.f32 %v3500, %v3210
    %v3533 = vmax.f32 %v3501, %v3212
    %v3534 = vmax.f32 %v3502, %v3216
    %v3535 = vmax.f32 %v3503, %v3218
    %v3536 = vmax.f32 %v3504, %v3220
    %v3537 = vmax.f32 %v3505, %v3222
    %v3538 = vmax.f32 %v3506, %v3226
    %v3539 = vmax.f32 %v3507, %v3228
    %v3540 = vmax.f32 %v3508, %v3230
    %v3541 = vmax.f32 %v3509, %v3232
    %v3542 = vmax.f32 %v3510, %v3236
    %v3543 = vmax.f32 %v3511, %v3238
    %v3544 = vmax.f32 %v3512, %v3240
    %v3545 = vmax.f32 %v3513, %v3242
    %v3546 = vmax.f32 %v3514, %v3246
    %v3547 = vmax.f32 %v3515, %v3248
    %v3548 = vmax.f32 %v3516, %v3250
    %v3549 = vmax.f32 %v3517, %v3252
    %v3550 = vmax.f32 %v3518, %v3256
    %v3551 = vmax.f32 %v3519, %v3258
    %v3552 = vmax.f32 %v3520, %v3260
    %v3553 = vmax.f32 %v3521, %v3262
    %v3554 = vmax.f32 %v3522, %v3299
    %v3555 = vmax.f32 %v3523, %v3301
    %v3556 = vmax.f32 %v3524, %v3303
    %v3557 = vmax.f32 %v3525, %v3305
    %v3558 = vmax.f32 %v3526, %v3309
    %v3559 = vmax.f32 %v3527, %v3311
    %v3560 = vmax.f32 %v3528, %v3313
    %v3561 = vmax.f32 %v3529, %v3315
    %v3562 = vmax.f32 %v3530, %v3319
    %v3563 = vmax.f32 %v3531, %v3321
    %v3564 = vmax.f32 %v3532, %v3323
    %v3565 = vmax.f32 %v3533, %v3325
    %v3566 = vmax.f32 %v3534, %v3329
    %v3567 = vmax.f32 %v3535, %v3331
    %v3568 = vmax.f32 %v3536, %v3333
    %v3569 = vmax.f32 %v3537, %v3335
    %v3570 = vmax.f32 %v3538, %v3339
    %v3571 = vmax.f32 %v3539, %v3341
    %v3572 = vmax.f32 %v3540, %v3343
    %v3573 = vmax.f32 %v3541, %v3345
    %v3574 = vmax.f32 %v3542, %v3349
    %v3575 = vmax.f32 %v3543, %v3351
    %v3576 = vmax.f32 %v3544, %v3353
    %v3577 = vmax.f32 %v3545, %v3355
    %v3578 = vmax.f32 %v3546, %v3359
    %v3579 = vmax.f32 %v3547, %v3361
    %v3580 = vmax.f32 %v3548, %v3363
    %v3581 = vmax.f32 %v3549, %v3365
    %v3582 = vmax.f32 %v3550, %v3369
    %v3583 = vmax.f32 %v3551, %v3371
    %v3584 = vmax.f32 %v3552, %v3373
    %v3585 = vmax.f32 %v3553, %v3375
    %v3586 = vmax.f32 %v3554, %v3412
    %v3587 = vmax.f32 %v3555, %v3414
    %v3588 = vmax.f32 %v3556, %v3416
    %v3589 = vmax.f32 %v3557, %v3418
    %v3590 = vmax.f32 %v3558, %v3422
    %v3591 = vmax.f32 %v3559, %v3424
    %v3592 = vmax.f32 %v3560, %v3426
    %v3593 = vmax.f32 %v3561, %v3428
    %v3594 = vmax.f32 %v3562, %v3432
    %v3595 = vmax.f32 %v3563, %v3434
    %v3596 = vmax.f32 %v3564, %v3436
    %v3597 = vmax.f32 %v3565, %v3438
    %v3598 = vmax.f32 %v3566, %v3442
    %v3599 = vmax.f32 %v3567, %v3444
    %v3600 = vmax.f32 %v3568, %v3446
    %v3601 = vmax.f32 %v3569, %v3448
    %v3602 = vmax.f32 %v3570, %v3452
    %v3603 = vmax.f32 %v3571, %v3454
    %v3604 = vmax.f32 %v3572, %v3456
    %v3605 = vmax.f32 %v3573, %v3458
    %v3606 = vmax.f32 %v3574, %v3462
    %v3607 = vmax.f32 %v3575, %v3464
    %v3608 = vmax.f32 %v3576, %v3466
    %v3609 = vmax.f32 %v3577, %v3468
    %v3610 = vmax.f32 %v3578, %v3472
    %v3611 = vmax.f32 %v3579, %v3474
    %v3612 = vmax.f32 %v3580, %v3476
    %v3613 = vmax.f32 %v3581, %v3478
    %v3614 = vmax.f32 %v3582, %v3482
    %v3615 = vmax.f32 %v3583, %v3484
    %v3616 = vmax.f32 %v3584, %v3486
    %v3617 = vmax.f32 %v3585, %v3488
    %v3618 = vld [vmem:[%s5] sm:$0x3]
    %v3620 = vlaneseq
    %v3621 = vshrl.u32 %v3620, 7
    %v3622 = vsub.s32 0, %v3621
    %v3623 = vrot.slane %v3618, %v3622
    %v3624 = vlaneseq
    %v3625 = vshrl.u32 %v3624, 7
    %v3626 = vsub.s32 1, %v3625
    %v3627 = vrot.slane %v3618, %v3626
    %v3630 = vmul.f32 %v3586, %v3623
    %v3631 = vmul.f32 %v3587, %v3627
    %v3632 = vmul.f32 %v3588, %v3623
    %v3633 = vmul.f32 %v3589, %v3627
    %v3634 = vmul.f32 %v3590, %v3623
    %v3635 = vmul.f32 %v3591, %v3627
    %v3636 = vmul.f32 %v3592, %v3623
    %v3637 = vmul.f32 %v3593, %v3627
    %v3638 = vmul.f32 %v3594, %v3623
    %v3639 = vmul.f32 %v3595, %v3627
    %v3640 = vmul.f32 %v3596, %v3623
    %v3641 = vmul.f32 %v3597, %v3627
    %v3642 = vmul.f32 %v3598, %v3623
    %v3643 = vmul.f32 %v3599, %v3627
    %v3644 = vmul.f32 %v3600, %v3623
    %v3645 = vmul.f32 %v3601, %v3627
    %v3646 = vmul.f32 %v3602, %v3623
    %v3647 = vmul.f32 %v3603, %v3627
    %v3648 = vmul.f32 %v3604, %v3623
    %v3649 = vmul.f32 %v3605, %v3627
    %v3650 = vmul.f32 %v3606, %v3623
    %v3651 = vmul.f32 %v3607, %v3627
    %v3652 = vmul.f32 %v3608, %v3623
    %v3653 = vmul.f32 %v3609, %v3627
    %v3654 = vmul.f32 %v3610, %v3623
    %v3655 = vmul.f32 %v3611, %v3627
    %v3656 = vmul.f32 %v3612, %v3623
    %v3657 = vmul.f32 %v3613, %v3627
    %v3658 = vmul.f32 %v3614, %v3623
    %v3659 = vmul.f32 %v3615, %v3627
    %v3660 = vmul.f32 %v3616, %v3623
    %v3661 = vmul.f32 %v3617, %v3627
    %v3662 = vadd.f32 %v3630, %v3631
    %3663 = vadd.xlane.f32.xlu0 %v3662
    %v3664 = vpop.xlane.xlu0 %3663
    %v3665 = vadd.f32 %v3632, %v3633
    %3666 = vadd.xlane.f32.xlu0 %v3665
    %v3667 = vpop.xlane.xlu0 %3666
    %v3668 = vadd.f32 %v3634, %v3635
    %3669 = vadd.xlane.f32.xlu0 %v3668
    %v3670 = vpop.xlane.xlu0 %3669
    %v3671 = vadd.f32 %v3636, %v3637
    %3672 = vadd.xlane.f32.xlu0 %v3671
    %v3673 = vpop.xlane.xlu0 %3672
    %v3674 = vadd.f32 %v3638, %v3639
    %3675 = vadd.xlane.f32.xlu0 %v3674
    %v3676 = vpop.xlane.xlu0 %3675
    %v3677 = vadd.f32 %v3640, %v3641
    %3678 = vadd.xlane.f32.xlu0 %v3677
    %v3679 = vpop.xlane.xlu0 %3678
    %v3680 = vadd.f32 %v3642, %v3643
    %3681 = vadd.xlane.f32.xlu0 %v3680
    %v3682 = vpop.xlane.xlu0 %3681
    %v3683 = vadd.f32 %v3644, %v3645
    %3684 = vadd.xlane.f32.xlu0 %v3683
    %v3685 = vpop.xlane.xlu0 %3684
    %v3686 = vadd.f32 %v3646, %v3647
    %3687 = vadd.xlane.f32.xlu0 %v3686
    %v3688 = vpop.xlane.xlu0 %3687
    %v3689 = vadd.f32 %v3648, %v3649
    %3690 = vadd.xlane.f32.xlu0 %v3689
    %v3691 = vpop.xlane.xlu0 %3690
    %v3692 = vadd.f32 %v3650, %v3651
    %3693 = vadd.xlane.f32.xlu0 %v3692
    %v3694 = vpop.xlane.xlu0 %3693
    %v3695 = vadd.f32 %v3652, %v3653
    %3696 = vadd.xlane.f32.xlu0 %v3695
    %v3697 = vpop.xlane.xlu0 %3696
    %v3698 = vadd.f32 %v3654, %v3655
    %3699 = vadd.xlane.f32.xlu0 %v3698
    %v3700 = vpop.xlane.xlu0 %3699
    %v3701 = vadd.f32 %v3656, %v3657
    %3702 = vadd.xlane.f32.xlu0 %v3701
    %v3703 = vpop.xlane.xlu0 %3702
    %v3704 = vadd.f32 %v3658, %v3659
    %3705 = vadd.xlane.f32.xlu0 %v3704
    %v3706 = vpop.xlane.xlu0 %3705
    %v3707 = vadd.f32 %v3660, %v3661
    %3708 = vadd.xlane.f32.xlu0 %v3707
    %v3709 = vpop.xlane.xlu0 %3708
    %v3710 = vld [vmem:[#allocation2] sm:$0x1]
    %v3712 = vlaneseq
    %v3713 = vshrl.u32 %v3712, 7
    %v3714 = vsub.s32 0, %v3713
    %v3715 = vrot.slane %v3710, %v3714
    %v3717 = vadd.f32 %v3664, %v3715
    %v3718 = vadd.f32 %v3667, %v3715
    %v3719 = vadd.f32 %v3670, %v3715
    %v3720 = vadd.f32 %v3673, %v3715
    %v3721 = vadd.f32 %v3676, %v3715
    %v3722 = vadd.f32 %v3679, %v3715
    %v3723 = vadd.f32 %v3682, %v3715
    %v3724 = vadd.f32 %v3685, %v3715
    %v3725 = vadd.f32 %v3688, %v3715
    %v3726 = vadd.f32 %v3691, %v3715
    %v3727 = vadd.f32 %v3694, %v3715
    %v3728 = vadd.f32 %v3697, %v3715
    %v3729 = vadd.f32 %v3700, %v3715
    %v3730 = vadd.f32 %v3703, %v3715
    %v3731 = vadd.f32 %v3706, %v3715
    %v3732 = vadd.f32 %v3709, %v3715
    %v3733 = vxor.u32 %v3717, 2147483648
    %v3734 = vxor.u32 %v3718, 2147483648
    %v3735 = vxor.u32 %v3719, 2147483648
    %v3736 = vxor.u32 %v3720, 2147483648
    %v3737 = vxor.u32 %v3721, 2147483648
    %v3738 = vxor.u32 %v3722, 2147483648
    %v3739 = vxor.u32 %v3723, 2147483648
    %v3740 = vxor.u32 %v3724, 2147483648
    %v3741 = vxor.u32 %v3725, 2147483648
    %v3742 = vxor.u32 %v3726, 2147483648
    %v3743 = vxor.u32 %v3727, 2147483648
    %v3744 = vxor.u32 %v3728, 2147483648
    %v3745 = vxor.u32 %v3729, 2147483648
    %v3746 = vxor.u32 %v3730, 2147483648
    %v3747 = vxor.u32 %v3731, 2147483648
    %v3748 = vxor.u32 %v3732, 2147483648
    %v3749 = vmul.f32 %v3733, 1.442695
    %v3750 = vpow.pop %v3749
    %v3751 = vmul.f32 %v3734, 1.442695
    %v3752 = vpow.pop %v3751
    %v3753 = vmul.f32 %v3735, 1.442695
    %v3754 = vpow.pop %v3753
    %v3755 = vmul.f32 %v3736, 1.442695
    %v3756 = vpow.pop %v3755
    %v3757 = vmul.f32 %v3737, 1.442695
    %v3758 = vpow.pop %v3757
    %v3759 = vmul.f32 %v3738, 1.442695
    %v3760 = vpow.pop %v3759
    %v3761 = vmul.f32 %v3739, 1.442695
    %v3762 = vpow.pop %v3761
    %v3763 = vmul.f32 %v3740, 1.442695
    %v3764 = vpow.pop %v3763
    %v3765 = vmul.f32 %v3741, 1.442695
    %v3766 = vpow.pop %v3765
    %v3767 = vmul.f32 %v3742, 1.442695
    %v3768 = vpow.pop %v3767
    %v3769 = vmul.f32 %v3743, 1.442695
    %v3770 = vpow.pop %v3769
    %v3771 = vmul.f32 %v3744, 1.442695
    %v3772 = vpow.pop %v3771
    %v3773 = vmul.f32 %v3745, 1.442695
    %v3774 = vpow.pop %v3773
    %v3775 = vmul.f32 %v3746, 1.442695
    %v3776 = vpow.pop %v3775
    %v3777 = vmul.f32 %v3747, 1.442695
    %v3778 = vpow.pop %v3777
    %v3779 = vmul.f32 %v3748, 1.442695
    %v3780 = vpow.pop %v3779
    %v3781 = vadd.f32 %v3750, 1.0
    %v3782 = vadd.f32 %v3752, 1.0
    %v3783 = vadd.f32 %v3754, 1.0
    %v3784 = vadd.f32 %v3756, 1.0
    %v3785 = vadd.f32 %v3758, 1.0
    %v3786 = vadd.f32 %v3760, 1.0
    %v3787 = vadd.f32 %v3762, 1.0
    %v3788 = vadd.f32 %v3764, 1.0
    %v3789 = vadd.f32 %v3766, 1.0
    %v3790 = vadd.f32 %v3768, 1.0
    %v3791 = vadd.f32 %v3770, 1.0
    %v3792 = vadd.f32 %v3772, 1.0
    %v3793 = vadd.f32 %v3774, 1.0
    %v3794 = vadd.f32 %v3776, 1.0
    %v3795 = vadd.f32 %v3778, 1.0
    %v3796 = vadd.f32 %v3780, 1.0
    %v3797 = vrcp.pop %v3781
    %v3798 = vmul.f32 1.0, %v3797
    %v3799 = vrcp.pop %v3782
    %v3800 = vmul.f32 1.0, %v3799
    %v3801 = vrcp.pop %v3783
    %v3802 = vmul.f32 1.0, %v3801
    %v3803 = vrcp.pop %v3784
    %v3804 = vmul.f32 1.0, %v3803
    %v3805 = vrcp.pop %v3785
    %v3806 = vmul.f32 1.0, %v3805
    %v3807 = vrcp.pop %v3786
    %v3808 = vmul.f32 1.0, %v3807
    %v3809 = vrcp.pop %v3787
    %v3810 = vmul.f32 1.0, %v3809
    %v3811 = vrcp.pop %v3788
    %v3812 = vmul.f32 1.0, %v3811
    %v3813 = vrcp.pop %v3789
    %v3814 = vmul.f32 1.0, %v3813
    %v3815 = vrcp.pop %v3790
    %v3816 = vmul.f32 1.0, %v3815
    %v3817 = vrcp.pop %v3791
    %v3818 = vmul.f32 1.0, %v3817
    %v3819 = vrcp.pop %v3792
    %v3820 = vmul.f32 1.0, %v3819
    %v3821 = vrcp.pop %v3793
    %v3822 = vmul.f32 1.0, %v3821
    %v3823 = vrcp.pop %v3794
    %v3824 = vmul.f32 1.0, %v3823
    %v3825 = vrcp.pop %v3795
    %v3826 = vmul.f32 1.0, %v3825
    %v3827 = vrcp.pop %v3796
    %v3828 = vmul.f32 1.0, %v3827
    %vm3829 = vcmask 7168
    %3830 = vst.msk [vmem:[%s7] sm:$0xff] %vm3829, %v3798
    %3831 = vst.msk [vmem:[%s7 + $0x8] sm:$0xff] %vm3829, %v3800
    %3832 = vst.msk [vmem:[%s7 + $0x10] sm:$0xff] %vm3829, %v3802
    %3833 = vst.msk [vmem:[%s7 + $0x18] sm:$0xff] %vm3829, %v3804
    %3834 = vst.msk [vmem:[%s7 + $0x20] sm:$0xff] %vm3829, %v3806
    %3835 = vst.msk [vmem:[%s7 + $0x28] sm:$0xff] %vm3829, %v3808
    %3836 = vst.msk [vmem:[%s7 + $0x30] sm:$0xff] %vm3829, %v3810
    %3837 = vst.msk [vmem:[%s7 + $0x38] sm:$0xff] %vm3829, %v3812
    %3838 = vst.msk [vmem:[%s7 + $0x40] sm:$0xff] %vm3829, %v3814
    %3839 = vst.msk [vmem:[%s7 + $0x48] sm:$0xff] %vm3829, %v3816
    %3840 = vst.msk [vmem:[%s7 + $0x50] sm:$0xff] %vm3829, %v3818
    %3841 = vst.msk [vmem:[%s7 + $0x58] sm:$0xff] %vm3829, %v3820
    %3842 = vst.msk [vmem:[%s7 + $0x60] sm:$0xff] %vm3829, %v3822
    %3843 = vst.msk [vmem:[%s7 + $0x68] sm:$0xff] %vm3829, %v3824
    %3844 = vst.msk [vmem:[%s7 + $0x70] sm:$0xff] %vm3829, %v3826
    %3845 = vst.msk [vmem:[%s7 + $0x78] sm:$0xff] %vm3829, %v3828
    // Predicated region
    $region50: #{tpu_custom_call.1} parent=1 // pred_check
      _
    $region51: #{tpu_custom_call.1} parent=1 // pred_check_branch
      %3847 = sbr.rel (0) target = $region53
    $region52: #{tpu_custom_call.1} parent=1 // pred_region
      _
    $region53: #{tpu_custom_call.1} parent=1 // pred_fallthru
      _
    // Predicated region
    $region54: #{tpu_custom_call.1} parent=1 // pred_check
      _
    $region55: #{tpu_custom_call.1} parent=1 // pred_check_branch
      %3849 = sbr.rel (0) target = $region57
    $region56: #{tpu_custom_call.1} parent=1 // pred_region
      _
    $region57: #{tpu_custom_call.1} parent=1 // pred_fallthru
      _
    %3850 = vsyncpa [#allocation4], 1
    %3851 = vsyncpa [#allocation6], 1
    %3852 = vsyncpa [#allocation9], 1

</llo_original>
